<compile_context>
chip_gen: v5e
topology: v5e:2x2
jax: 0.10.0
libtpu: 0.0.40
codegen_flags: <defaults>
</compile_context>

<pallas_src>
import jax
import jax.numpy as jnp
import numpy as np
from jax import lax
from jax.experimental import pallas as pl
from jax.experimental.pallas import tpu as pltpu

_LANES = 128  # TPU lane width; channels are padded to a multiple of this.


def _resblock_kernel(xpad_ref, w1_ref, s1_ref, b1_ref, w2_ref, s2_ref, b2_ref,
                     out_ref, mid_ref):
    """Fused ResBlock for one image.

    xpad_ref: (1, H+2, W+2, Cp)  zero-padded NHWC input, bf16, channel-padded
    w1_ref  : (3, 3*Cp, Cop)     conv1 weights, kx folded into K, bf16
    s1_ref  : (1, Cop)           folded BN1 scale, f32
    b1_ref  : (1, Cop)           folded BN1 bias,  f32
    w2_ref  : (3, 3*Cop, Cop)    conv2 weights, kx folded into K, bf16
    s2_ref  : (1, Cop)           folded BN2 scale, f32
    b2_ref  : (1, Cop)           folded BN2 bias,  f32
    out_ref : (1, H, W, Cop)     f32 output
    mid_ref : (H+2, W+2, Cop)    f32 VMEM scratch (padded conv1 output)
    """
    H = out_ref.shape[1]
    W = out_ref.shape[2]
    Co = out_ref.shape[3]

    xp = xpad_ref[0]  # (H+2, W+2, Cp) bf16

    def conv3x3(src, w_ref, cin):
        # One MXU matmul per ky; the 3 kx taps are concatenated along the lane
        # (channel) dim, so K = 3*cin instead of 9 shallow K=cin matmuls.
        acc = None
        for ky in range(3):
            rows = src[ky:ky + H]                               # (H, W+2, cin)
            slab = jnp.concatenate(
                [rows[:, 0:W, :], rows[:, 1:W + 1, :], rows[:, 2:W + 2, :]],
                axis=-1).reshape(H * W, 3 * cin)                # (H*W, 3*cin) bf16
            part = jnp.dot(slab, w_ref[ky],
                           preferred_element_type=jnp.float32)  # (H*W, Co) f32
            acc = part if acc is None else acc + part
        return acc

    # ---- conv1 -> BN1 -> ReLU (f32 epilogue on the f32 MXU accumulator) ----
    acc1 = conv3x3(xp, w1_ref, xp.shape[-1])
    out1 = jnp.maximum(acc1 * s1_ref[...] + b1_ref[...], 0.0)   # (H*W, Co) f32

    # ---- re-pad intermediate: zero only the 1-wide halo, overwrite interior ----
    mid_ref[0:1, :, :] = jnp.zeros((1, W + 2, Co), mid_ref.dtype)
    mid_ref[H + 1:H + 2, :, :] = jnp.zeros((1, W + 2, Co), mid_ref.dtype)
    mid_ref[:, 0:1, :] = jnp.zeros((H + 2, 1, Co), mid_ref.dtype)
    mid_ref[:, W + 1:W + 2, :] = jnp.zeros((H + 2, 1, Co), mid_ref.dtype)
    mid_ref[1:H + 1, 1:W + 1, :] = out1.reshape(H, W, Co)

    # ---- conv2 -> BN2 -> +identity -> ReLU ----
    mid = mid_ref[...].astype(jnp.bfloat16)                     # bf16 MXU operand
    acc2 = conv3x3(mid, w2_ref, Co)
    out2 = (acc2 * s2_ref[...] + b2_ref[...]).reshape(H, W, Co)
    identity = xp[1:H + 1, 1:W + 1, :].astype(jnp.float32)      # Cp == Cop here
    res = jnp.maximum(out2 + identity, 0.0)
    out_ref[0] = res.astype(out_ref.dtype)                      # lane-dense store


def _fold_bn(gamma, beta, mean, var, cop, eps=1e-5):
    scale = gamma / jnp.sqrt(var + eps)
    bias = beta - mean * scale
    scale = jnp.pad(scale, (0, cop - scale.shape[0]))
    bias = jnp.pad(bias, (0, cop - bias.shape[0]))
    return (scale.reshape(1, -1).astype(jnp.float32),
            bias.reshape(1, -1).astype(jnp.float32))


def _prep_conv_weight(w_oihw, cinp, coutp):
    """PyTorch OIHW -> (ky, kx*cinp + cin, cout), channel-padded, bf16."""
    cout, cin = w_oihw.shape[0], w_oihw.shape[1]
    w = jnp.transpose(w_oihw, (2, 3, 1, 0))                     # (3, 3, cin, cout)
    w = jnp.pad(w, ((0, 0), (0, 0), (0, cinp - cin), (0, coutp - cout)))
    return w.reshape(3, 3 * cinp, coutp).astype(jnp.bfloat16)


@jax.jit
def resblock_forward(x_nchw, params):
    """ResBlock forward. x_nchw: (B, C, H, W) float32, returns same shape."""
    x = jnp.transpose(x_nchw, (0, 2, 3, 1))                     # NHWC
    B, H, W, Cin = x.shape
    Cout, win = params["w1"].shape[0], params["w1"].shape[1]
    # Residual path assumes stride=1, downsample=None, Cin == Cout.
    assert Cin == win and Cin == Cout, "identity path requires Cin == Cout"

    Cp = ((Cin + _LANES - 1) // _LANES) * _LANES
    Cop = ((Cout + _LANES - 1) // _LANES) * _LANES

    # Single pad op: 1-px spatial halo + channel padding to a lane multiple.
    # bf16 operands halve the HBM bytes DMA'd per image.
    xpad = jnp.pad(x, ((0, 0), (1, 1), (1, 1), (0, Cp - Cin))).astype(jnp.bfloat16)

    w1 = _prep_conv_weight(params["w1"], Cp, Cop)
    w2 = _prep_conv_weight(params["w2"], Cop, Cop)
    s1, b1 = _fold_bn(params["bn1_gamma"], params["bn1_beta"],
                      params["bn1_mean"], params["bn1_var"], Cop)
    s2, b2 = _fold_bn(params["bn2_gamma"], params["bn2_beta"],
                      params["bn2_mean"], params["bn2_var"], Cop)

    # TODO(synk): for large H/W (e.g. 224x224 ResNet stages) add an H-tile grid
    # axis with a 2-row halo so the per-step block fits v7x's 64 MiB VMEM and
    # both TensorCores get work even when B == 1.
    out_nhwc = pl.pallas_call(
        _resblock_kernel,
        out_shape=jax.ShapeDtypeStruct((B, H, W, Cop), jnp.float32),
        grid_spec=pltpu.PrefetchScalarGridSpec(
            num_scalar_prefetch=0,
            grid=(B,),
            in_specs=[
                pl.BlockSpec((1, H + 2, W + 2, Cp), lambda b: (b, 0, 0, 0)),
                pl.BlockSpec((3, 3 * Cp, Cop), lambda b: (0, 0, 0)),
                pl.BlockSpec((1, Cop), lambda b: (0, 0)),
                pl.BlockSpec((1, Cop), lambda b: (0, 0)),
                pl.BlockSpec((3, 3 * Cop, Cop), lambda b: (0, 0, 0)),
                pl.BlockSpec((1, Cop), lambda b: (0, 0)),
                pl.BlockSpec((1, Cop), lambda b: (0, 0)),
            ],
            out_specs=pl.BlockSpec((1, H, W, Cop), lambda b: (b, 0, 0, 0)),
            scratch_shapes=[pltpu.VMEM((H + 2, W + 2, Cop), jnp.float32)],
        ),
        compiler_params=pltpu.CompilerParams(
            dimension_semantics=("parallel",),
            vmem_limit_bytes=32 * 1024 * 1024),
    )(xpad, w1, s1, b1, w2, s2, b2)

    out_nhwc = out_nhwc[..., :Cout]
    return jnp.transpose(out_nhwc, (0, 3, 1, 2))                # back to NCHW


def _reference_forward(x_nchw, params):
    """Pure-JAX reference (lax.conv) with matching bf16 operand rounding."""
    x = jnp.transpose(x_nchw, (0, 2, 3, 1))
    xb = x.astype(jnp.bfloat16)
    w1 = jnp.transpose(params["w1"], (2, 3, 1, 0)).astype(jnp.bfloat16)
    w2 = jnp.transpose(params["w2"], (2, 3, 1, 0)).astype(jnp.bfloat16)
    C = params["w1"].shape[0]
    s1, b1 = _fold_bn(params["bn1_gamma"], params["bn1_beta"],
                      params["bn1_mean"], params["bn1_var"], C)
    s2, b2 = _fold_bn(params["bn2_gamma"], params["bn2_beta"],
                      params["bn2_mean"], params["bn2_var"], C)

    def conv(a, w):
        return lax.conv_general_dilated(
            a, w, window_strides=(1, 1), padding="SAME",
            dimension_numbers=("NHWC", "HWIO", "NHWC"),
            preferred_element_type=jnp.float32)

    o1 = conv(xb, w1) * s1.reshape(1, 1, 1, -1) + b1.reshape(1, 1, 1, -1)
    o1 = jnp.maximum(o1, 0.0)
    o2 = conv(o1.astype(jnp.bfloat16), w2) * s2.reshape(1, 1, 1, -1) \
        + b2.reshape(1, 1, 1, -1)
    out = jnp.maximum(o2 + xb.astype(jnp.float32), 0.0)
    return jnp.transpose(out, (0, 3, 1, 2))


def _init_params(key, inplanes, planes):
    ks = jax.random.split(key, 6)
    return {
        "w1": 0.1 * jax.random.normal(ks[0], (planes, inplanes, 3, 3), jnp.float32),
        "w2": 0.1 * jax.random.normal(ks[1], (planes, planes, 3, 3), jnp.float32),
        "bn1_gamma": 1.0 + 0.1 * jax.random.normal(ks[2], (planes,), jnp.float32),
        "bn1_beta": 0.1 * jax.random.normal(ks[3], (planes,), jnp.float32),
        "bn1_mean": jnp.zeros((planes,), jnp.float32),
        "bn1_var": jnp.ones((planes,), jnp.float32),
        "bn2_gamma": 1.0 + 0.1 * jax.random.normal(ks[4], (planes,), jnp.float32),
        "bn2_beta": 0.1 * jax.random.normal(ks[5], (planes,), jnp.float32),
        "bn2_mean": jnp.zeros((planes,), jnp.float32),
        "bn2_var": jnp.ones((planes,), jnp.float32),
    }


if __name__ == "__main__":
    # TODO(synk): PyTorch BatchNorm2d in train mode uses batch statistics;
    # this kernel implements eval-mode (running-stats) BN folded into scale/bias.
    key = jax.random.PRNGKey(0)
    kx_, kp = jax.random.split(key)
    B, C, H, W = 2, 4, 16, 16  # inplanes == planes, stride=1, downsample=None
    x = jax.random.normal(kx_, (B, C, H, W), jnp.float32)
    params = _init_params(kp, C, C)

    out = jax.block_until_ready(resblock_forward(x, params))
    ref = jax.block_until_ready(_reference_forward(x, params))
    np.testing.assert_allclose(np.asarray(out), np.asarray(ref),
                               rtol=2e-3, atol=2e-3)
    print("KERNEL_OK")
</pallas_src>

<mosaic_0001>
module attributes {stable_mosaic.version = 11 : i64} {
  func.func @_resblock_kernel(%arg0: i32, %arg1: memref<1x18x18x128xbf16, #tpu.memory_space<vmem>>, %arg2: memref<3x384x128xbf16, #tpu.memory_space<vmem>>, %arg3: memref<1x128xf32, #tpu.memory_space<vmem>>, %arg4: memref<1x128xf32, #tpu.memory_space<vmem>>, %arg5: memref<3x384x128xbf16, #tpu.memory_space<vmem>>, %arg6: memref<1x128xf32, #tpu.memory_space<vmem>>, %arg7: memref<1x128xf32, #tpu.memory_space<vmem>>, %arg8: memref<1x16x16x128xf32, #tpu.memory_space<vmem>>, %arg9: memref<18x18x128xf32, #tpu.memory_space<vmem>>) attributes {dimension_semantics = [#tpu.dimension_semantics<parallel>], iteration_bounds = array<i64: 2>, scalar_prefetch = 0 : i64, scratch_operands = 1 : i64, tpu.core_type = #tpu.core_type<tc>, window_params = [{transform_indices = @transform_0, window_bounds = array<i64: 1, 18, 18, 128>}, {pipeline_mode = #tpu.pipeline_mode<synchronous>, transform_indices = @transform_1, window_bounds = array<i64: 3, 384, 128>}, {pipeline_mode = #tpu.pipeline_mode<synchronous>, transform_indices = @transform_2, window_bounds = array<i64: 1, 128>}, {pipeline_mode = #tpu.pipeline_mode<synchronous>, transform_indices = @transform_3, window_bounds = array<i64: 1, 128>}, {pipeline_mode = #tpu.pipeline_mode<synchronous>, transform_indices = @transform_4, window_bounds = array<i64: 3, 384, 128>}, {pipeline_mode = #tpu.pipeline_mode<synchronous>, transform_indices = @transform_5, window_bounds = array<i64: 1, 128>}, {pipeline_mode = #tpu.pipeline_mode<synchronous>, transform_indices = @transform_6, window_bounds = array<i64: 1, 128>}, {transform_indices = @transform_7, window_bounds = array<i64: 1, 16, 16, 128>}]} {
    %c0 = arith.constant 0 : index
    %c0_0 = arith.constant 0 : index
    %c0_1 = arith.constant 0 : index
    %c0_2 = arith.constant 0 : index
    %0 = vector.load %arg1[%c0, %c0_0, %c0_1, %c0_2] : memref<1x18x18x128xbf16, #tpu.memory_space<vmem>>, vector<1x18x18x128xbf16>
    %1 = vector.shape_cast %0 : vector<1x18x18x128xbf16> to vector<18x18x128xbf16>
    %2 = vector.extract_strided_slice %1 {offsets = [0, 0, 0], sizes = [16, 18, 128], strides = [1, 1, 1]} : vector<18x18x128xbf16> to vector<16x18x128xbf16>
    %3 = vector.extract_strided_slice %2 {offsets = [0, 0, 0], sizes = [16, 16, 128], strides = [1, 1, 1]} : vector<16x18x128xbf16> to vector<16x16x128xbf16>
    %4 = vector.extract_strided_slice %2 {offsets = [0, 1, 0], sizes = [16, 16, 128], strides = [1, 1, 1]} : vector<16x18x128xbf16> to vector<16x16x128xbf16>
    %5 = vector.extract_strided_slice %2 {offsets = [0, 2, 0], sizes = [16, 16, 128], strides = [1, 1, 1]} : vector<16x18x128xbf16> to vector<16x16x128xbf16>
    %6 = tpu.concatenate %3, %4, %5 in 2 : vector<16x16x128xbf16>, vector<16x16x128xbf16>, vector<16x16x128xbf16> -> vector<16x16x384xbf16>
    %7 = vector.shape_cast %6 : vector<16x16x384xbf16> to vector<256x384xbf16>
    %c0_3 = arith.constant 0 : index
    %c0_4 = arith.constant 0 : index
    %c0_5 = arith.constant 0 : index
    %8 = vector.load %arg2[%c0_3, %c0_4, %c0_5] : memref<3x384x128xbf16, #tpu.memory_space<vmem>>, vector<1x384x128xbf16>
    %9 = vector.shape_cast %8 : vector<1x384x128xbf16> to vector<384x128xbf16>
    %cst = arith.constant dense<0.000000e+00> : vector<256x128xf32>
    %10 = tpu.matmul %7, %9, %cst {dimension_numbers = #tpu.dot_dimension_numbers<[1], [0], [0], [1], [0, 0, 1, 1], [], []>} : vector<256x384xbf16>, vector<384x128xbf16>, vector<256x128xf32> -> vector<256x128xf32>
    %11 = vector.extract_strided_slice %1 {offsets = [1, 0, 0], sizes = [16, 18, 128], strides = [1, 1, 1]} : vector<18x18x128xbf16> to vector<16x18x128xbf16>
    %12 = vector.extract_strided_slice %11 {offsets = [0, 0, 0], sizes = [16, 16, 128], strides = [1, 1, 1]} : vector<16x18x128xbf16> to vector<16x16x128xbf16>
    %13 = vector.extract_strided_slice %11 {offsets = [0, 1, 0], sizes = [16, 16, 128], strides = [1, 1, 1]} : vector<16x18x128xbf16> to vector<16x16x128xbf16>
    %14 = vector.extract_strided_slice %11 {offsets = [0, 2, 0], sizes = [16, 16, 128], strides = [1, 1, 1]} : vector<16x18x128xbf16> to vector<16x16x128xbf16>
    %15 = tpu.concatenate %12, %13, %14 in 2 : vector<16x16x128xbf16>, vector<16x16x128xbf16>, vector<16x16x128xbf16> -> vector<16x16x384xbf16>
    %16 = vector.shape_cast %15 : vector<16x16x384xbf16> to vector<256x384xbf16>
    %c1 = arith.constant 1 : index
    %c0_6 = arith.constant 0 : index
    %c0_7 = arith.constant 0 : index
    %17 = vector.load %arg2[%c1, %c0_6, %c0_7] : memref<3x384x128xbf16, #tpu.memory_space<vmem>>, vector<1x384x128xbf16>
    %18 = vector.shape_cast %17 : vector<1x384x128xbf16> to vector<384x128xbf16>
    %cst_8 = arith.constant dense<0.000000e+00> : vector<256x128xf32>
    %19 = tpu.matmul %16, %18, %cst_8 {dimension_numbers = #tpu.dot_dimension_numbers<[1], [0], [0], [1], [0, 0, 1, 1], [], []>} : vector<256x384xbf16>, vector<384x128xbf16>, vector<256x128xf32> -> vector<256x128xf32>
    %20 = arith.addf %10, %19 : vector<256x128xf32>
    %21 = vector.extract_strided_slice %1 {offsets = [2, 0, 0], sizes = [16, 18, 128], strides = [1, 1, 1]} : vector<18x18x128xbf16> to vector<16x18x128xbf16>
    %22 = vector.extract_strided_slice %21 {offsets = [0, 0, 0], sizes = [16, 16, 128], strides = [1, 1, 1]} : vector<16x18x128xbf16> to vector<16x16x128xbf16>
    %23 = vector.extract_strided_slice %21 {offsets = [0, 1, 0], sizes = [16, 16, 128], strides = [1, 1, 1]} : vector<16x18x128xbf16> to vector<16x16x128xbf16>
    %24 = vector.extract_strided_slice %21 {offsets = [0, 2, 0], sizes = [16, 16, 128], strides = [1, 1, 1]} : vector<16x18x128xbf16> to vector<16x16x128xbf16>
    %25 = tpu.concatenate %22, %23, %24 in 2 : vector<16x16x128xbf16>, vector<16x16x128xbf16>, vector<16x16x128xbf16> -> vector<16x16x384xbf16>
    %26 = vector.shape_cast %25 : vector<16x16x384xbf16> to vector<256x384xbf16>
    %c2 = arith.constant 2 : index
    %c0_9 = arith.constant 0 : index
    %c0_10 = arith.constant 0 : index
    %27 = vector.load %arg2[%c2, %c0_9, %c0_10] : memref<3x384x128xbf16, #tpu.memory_space<vmem>>, vector<1x384x128xbf16>
    %28 = vector.shape_cast %27 : vector<1x384x128xbf16> to vector<384x128xbf16>
    %cst_11 = arith.constant dense<0.000000e+00> : vector<256x128xf32>
    %29 = tpu.matmul %26, %28, %cst_11 {dimension_numbers = #tpu.dot_dimension_numbers<[1], [0], [0], [1], [0, 0, 1, 1], [], []>} : vector<256x384xbf16>, vector<384x128xbf16>, vector<256x128xf32> -> vector<256x128xf32>
    %30 = arith.addf %20, %29 : vector<256x128xf32>
    %c0_12 = arith.constant 0 : index
    %c0_13 = arith.constant 0 : index
    %31 = vector.load %arg3[%c0_12, %c0_13] : memref<1x128xf32, #tpu.memory_space<vmem>>, vector<1x128xf32>
    %32 = vector.broadcast %31 : vector<1x128xf32> to vector<256x128xf32>
    %33 = arith.mulf %30, %32 : vector<256x128xf32>
    %c0_14 = arith.constant 0 : index
    %c0_15 = arith.constant 0 : index
    %34 = vector.load %arg4[%c0_14, %c0_15] : memref<1x128xf32, #tpu.memory_space<vmem>>, vector<1x128xf32>
    %35 = vector.broadcast %34 : vector<1x128xf32> to vector<256x128xf32>
    %36 = arith.addf %33, %35 : vector<256x128xf32>
    %cst_16 = arith.constant 0.000000e+00 : f32
    %37 = vector.broadcast %cst_16 : f32 to vector<256x128xf32>
    %38 = arith.maximumf %36, %37 : vector<256x128xf32>
    %cst_17 = arith.constant 0.000000e+00 : f32
    %39 = vector.broadcast %cst_17 : f32 to vector<1x18x128xf32>
    %c0_18 = arith.constant 0 : index
    %c0_19 = arith.constant 0 : index
    %c0_20 = arith.constant 0 : index
    %40 = vector.load %arg9[%c0_18, %c0_19, %c0_20] : memref<18x18x128xf32, #tpu.memory_space<vmem>>, vector<1x18x128xf32>
    tpu.vector_store %arg9[%c0_18, %c0_19, %c0_20], %39 {strides = array<i32>} : memref<18x18x128xf32, #tpu.memory_space<vmem>>, vector<1x18x128xf32>,
    %cst_21 = arith.constant 0.000000e+00 : f32
    %41 = vector.broadcast %cst_21 : f32 to vector<1x18x128xf32>
    %c17 = arith.constant 17 : index
    %c0_22 = arith.constant 0 : index
    %c0_23 = arith.constant 0 : index
    %42 = vector.load %arg9[%c17, %c0_22, %c0_23] : memref<18x18x128xf32, #tpu.memory_space<vmem>>, vector<1x18x128xf32>
    tpu.vector_store %arg9[%c17, %c0_22, %c0_23], %41 {strides = array<i32>} : memref<18x18x128xf32, #tpu.memory_space<vmem>>, vector<1x18x128xf32>,
    %cst_24 = arith.constant 0.000000e+00 : f32
    %43 = vector.broadcast %cst_24 : f32 to vector<18x1x128xf32>
    %c0_25 = arith.constant 0 : index
    %c0_26 = arith.constant 0 : index
    %c0_27 = arith.constant 0 : index
    %44 = vector.load %arg9[%c0_25, %c0_26, %c0_27] : memref<18x18x128xf32, #tpu.memory_space<vmem>>, vector<18x1x128xf32>
    tpu.vector_store %arg9[%c0_25, %c0_26, %c0_27], %43 {strides = array<i32>} : memref<18x18x128xf32, #tpu.memory_space<vmem>>, vector<18x1x128xf32>,
    %cst_28 = arith.constant 0.000000e+00 : f32
    %45 = vector.broadcast %cst_28 : f32 to vector<18x1x128xf32>
    %c0_29 = arith.constant 0 : index
    %c17_30 = arith.constant 17 : index
    %c0_31 = arith.constant 0 : index
    %46 = vector.load %arg9[%c0_29, %c17_30, %c0_31] : memref<18x18x128xf32, #tpu.memory_space<vmem>>, vector<18x1x128xf32>
    tpu.vector_store %arg9[%c0_29, %c17_30, %c0_31], %45 {strides = array<i32>} : memref<18x18x128xf32, #tpu.memory_space<vmem>>, vector<18x1x128xf32>,
    %47 = vector.shape_cast %38 : vector<256x128xf32> to vector<16x16x128xf32>
    %c1_32 = arith.constant 1 : index
    %c1_33 = arith.constant 1 : index
    %c0_34 = arith.constant 0 : index
    %48 = vector.load %arg9[%c1_32, %c1_33, %c0_34] : memref<18x18x128xf32, #tpu.memory_space<vmem>>, vector<16x16x128xf32>
    tpu.vector_store %arg9[%c1_32, %c1_33, %c0_34], %47 {strides = array<i32>} : memref<18x18x128xf32, #tpu.memory_space<vmem>>, vector<16x16x128xf32>,
    %c0_35 = arith.constant 0 : index
    %c0_36 = arith.constant 0 : index
    %c0_37 = arith.constant 0 : index
    %49 = vector.load %arg9[%c0_35, %c0_36, %c0_37] : memref<18x18x128xf32, #tpu.memory_space<vmem>>, vector<18x18x128xf32>
    %50 = arith.truncf %49 : vector<18x18x128xf32> to vector<18x18x128xbf16>
    %51 = vector.extract_strided_slice %50 {offsets = [0, 0, 0], sizes = [16, 18, 128], strides = [1, 1, 1]} : vector<18x18x128xbf16> to vector<16x18x128xbf16>
    %52 = vector.extract_strided_slice %51 {offsets = [0, 0, 0], sizes = [16, 16, 128], strides = [1, 1, 1]} : vector<16x18x128xbf16> to vector<16x16x128xbf16>
    %53 = vector.extract_strided_slice %51 {offsets = [0, 1, 0], sizes = [16, 16, 128], strides = [1, 1, 1]} : vector<16x18x128xbf16> to vector<16x16x128xbf16>
    %54 = vector.extract_strided_slice %51 {offsets = [0, 2, 0], sizes = [16, 16, 128], strides = [1, 1, 1]} : vector<16x18x128xbf16> to vector<16x16x128xbf16>
    %55 = tpu.concatenate %52, %53, %54 in 2 : vector<16x16x128xbf16>, vector<16x16x128xbf16>, vector<16x16x128xbf16> -> vector<16x16x384xbf16>
    %56 = vector.shape_cast %55 : vector<16x16x384xbf16> to vector<256x384xbf16>
    %c0_38 = arith.constant 0 : index
    %c0_39 = arith.constant 0 : index
    %c0_40 = arith.constant 0 : index
    %57 = vector.load %arg5[%c0_38, %c0_39, %c0_40] : memref<3x384x128xbf16, #tpu.memory_space<vmem>>, vector<1x384x128xbf16>
    %58 = vector.shape_cast %57 : vector<1x384x128xbf16> to vector<384x128xbf16>
    %cst_41 = arith.constant dense<0.000000e+00> : vector<256x128xf32>
    %59 = tpu.matmul %56, %58, %cst_41 {dimension_numbers = #tpu.dot_dimension_numbers<[1], [0], [0], [1], [0, 0, 1, 1], [], []>} : vector<256x384xbf16>, vector<384x128xbf16>, vector<256x128xf32> -> vector<256x128xf32>
    %60 = vector.extract_strided_slice %50 {offsets = [1, 0, 0], sizes = [16, 18, 128], strides = [1, 1, 1]} : vector<18x18x128xbf16> to vector<16x18x128xbf16>
    %61 = vector.extract_strided_slice %60 {offsets = [0, 0, 0], sizes = [16, 16, 128], strides = [1, 1, 1]} : vector<16x18x128xbf16> to vector<16x16x128xbf16>
    %62 = vector.extract_strided_slice %60 {offsets = [0, 1, 0], sizes = [16, 16, 128], strides = [1, 1, 1]} : vector<16x18x128xbf16> to vector<16x16x128xbf16>
    %63 = vector.extract_strided_slice %60 {offsets = [0, 2, 0], sizes = [16, 16, 128], strides = [1, 1, 1]} : vector<16x18x128xbf16> to vector<16x16x128xbf16>
    %64 = tpu.concatenate %61, %62, %63 in 2 : vector<16x16x128xbf16>, vector<16x16x128xbf16>, vector<16x16x128xbf16> -> vector<16x16x384xbf16>
    %65 = vector.shape_cast %64 : vector<16x16x384xbf16> to vector<256x384xbf16>
    %c1_42 = arith.constant 1 : index
    %c0_43 = arith.constant 0 : index
    %c0_44 = arith.constant 0 : index
    %66 = vector.load %arg5[%c1_42, %c0_43, %c0_44] : memref<3x384x128xbf16, #tpu.memory_space<vmem>>, vector<1x384x128xbf16>
    %67 = vector.shape_cast %66 : vector<1x384x128xbf16> to vector<384x128xbf16>
    %cst_45 = arith.constant dense<0.000000e+00> : vector<256x128xf32>
    %68 = tpu.matmul %65, %67, %cst_45 {dimension_numbers = #tpu.dot_dimension_numbers<[1], [0], [0], [1], [0, 0, 1, 1], [], []>} : vector<256x384xbf16>, vector<384x128xbf16>, vector<256x128xf32> -> vector<256x128xf32>
    %69 = arith.addf %59, %68 : vector<256x128xf32>
    %70 = vector.extract_strided_slice %50 {offsets = [2, 0, 0], sizes = [16, 18, 128], strides = [1, 1, 1]} : vector<18x18x128xbf16> to vector<16x18x128xbf16>
    %71 = vector.extract_strided_slice %70 {offsets = [0, 0, 0], sizes = [16, 16, 128], strides = [1, 1, 1]} : vector<16x18x128xbf16> to vector<16x16x128xbf16>
    %72 = vector.extract_strided_slice %70 {offsets = [0, 1, 0], sizes = [16, 16, 128], strides = [1, 1, 1]} : vector<16x18x128xbf16> to vector<16x16x128xbf16>
    %73 = vector.extract_strided_slice %70 {offsets = [0, 2, 0], sizes = [16, 16, 128], strides = [1, 1, 1]} : vector<16x18x128xbf16> to vector<16x16x128xbf16>
    %74 = tpu.concatenate %71, %72, %73 in 2 : vector<16x16x128xbf16>, vector<16x16x128xbf16>, vector<16x16x128xbf16> -> vector<16x16x384xbf16>
    %75 = vector.shape_cast %74 : vector<16x16x384xbf16> to vector<256x384xbf16>
    %c2_46 = arith.constant 2 : index
    %c0_47 = arith.constant 0 : index
    %c0_48 = arith.constant 0 : index
    %76 = vector.load %arg5[%c2_46, %c0_47, %c0_48] : memref<3x384x128xbf16, #tpu.memory_space<vmem>>, vector<1x384x128xbf16>
    %77 = vector.shape_cast %76 : vector<1x384x128xbf16> to vector<384x128xbf16>
    %cst_49 = arith.constant dense<0.000000e+00> : vector<256x128xf32>
    %78 = tpu.matmul %75, %77, %cst_49 {dimension_numbers = #tpu.dot_dimension_numbers<[1], [0], [0], [1], [0, 0, 1, 1], [], []>} : vector<256x384xbf16>, vector<384x128xbf16>, vector<256x128xf32> -> vector<256x128xf32>
    %79 = arith.addf %69, %78 : vector<256x128xf32>
    %c0_50 = arith.constant 0 : index
    %c0_51 = arith.constant 0 : index
    %80 = vector.load %arg6[%c0_50, %c0_51] : memref<1x128xf32, #tpu.memory_space<vmem>>, vector<1x128xf32>
    %81 = vector.broadcast %80 : vector<1x128xf32> to vector<256x128xf32>
    %82 = arith.mulf %79, %81 : vector<256x128xf32>
    %c0_52 = arith.constant 0 : index
    %c0_53 = arith.constant 0 : index
    %83 = vector.load %arg7[%c0_52, %c0_53] : memref<1x128xf32, #tpu.memory_space<vmem>>, vector<1x128xf32>
    %84 = vector.broadcast %83 : vector<1x128xf32> to vector<256x128xf32>
    %85 = arith.addf %82, %84 : vector<256x128xf32>
    %86 = vector.shape_cast %85 : vector<256x128xf32> to vector<16x16x128xf32>
    %87 = vector.extract_strided_slice %1 {offsets = [1, 1, 0], sizes = [16, 16, 128], strides = [1, 1, 1]} : vector<18x18x128xbf16> to vector<16x16x128xbf16>
    %88 = arith.extf %87 : vector<16x16x128xbf16> to vector<16x16x128xf32>
    %89 = arith.addf %86, %88 : vector<16x16x128xf32>
    %cst_54 = arith.constant 0.000000e+00 : f32
    %90 = vector.broadcast %cst_54 : f32 to vector<16x16x128xf32>
    %91 = arith.maximumf %89, %90 : vector<16x16x128xf32>
    %c0_55 = arith.constant 0 : index
    %c0_56 = arith.constant 0 : index
    %c0_57 = arith.constant 0 : index
    %c0_58 = arith.constant 0 : index
    %92 = vector.load %arg8[%c0_55, %c0_56, %c0_57, %c0_58] : memref<1x16x16x128xf32, #tpu.memory_space<vmem>>, vector<1x16x16x128xf32>
    %93 = vector.shape_cast %92 : vector<1x16x16x128xf32> to vector<16x16x128xf32>
    %94 = vector.shape_cast %91 : vector<16x16x128xf32> to vector<1x16x16x128xf32>
    tpu.vector_store %arg8[%c0_55, %c0_56, %c0_57, %c0_58], %94 {strides = array<i32>} : memref<1x16x16x128xf32, #tpu.memory_space<vmem>>, vector<1x16x16x128xf32>,
    return
  }
  func.func @transform_0(%arg0: i32) -> (i32, i32, i32, i32) {
    %c0_i32 = arith.constant 0 : i32
    %c0_i32_0 = arith.constant 0 : i32
    %c0_i32_1 = arith.constant 0 : i32
    %c0_i32_2 = arith.constant 0 : i32
    return %arg0, %c0_i32, %c0_i32_0, %c0_i32_1 : i32, i32, i32, i32
  }
  func.func @transform_1(%arg0: i32) -> (i32, i32, i32) {
    %c0_i32 = arith.constant 0 : i32
    %c0_i32_0 = arith.constant 0 : i32
    %c0_i32_1 = arith.constant 0 : i32
    %c0_i32_2 = arith.constant 0 : i32
    return %c0_i32, %c0_i32_0, %c0_i32_1 : i32, i32, i32
  }
  func.func @transform_2(%arg0: i32) -> (i32, i32) {
    %c0_i32 = arith.constant 0 : i32
    %c0_i32_0 = arith.constant 0 : i32
    %c0_i32_1 = arith.constant 0 : i32
    return %c0_i32, %c0_i32_0 : i32, i32
  }
  func.func @transform_3(%arg0: i32) -> (i32, i32) {
    %c0_i32 = arith.constant 0 : i32
    %c0_i32_0 = arith.constant 0 : i32
    %c0_i32_1 = arith.constant 0 : i32
    return %c0_i32, %c0_i32_0 : i32, i32
  }
  func.func @transform_4(%arg0: i32) -> (i32, i32, i32) {
    %c0_i32 = arith.constant 0 : i32
    %c0_i32_0 = arith.constant 0 : i32
    %c0_i32_1 = arith.constant 0 : i32
    %c0_i32_2 = arith.constant 0 : i32
    return %c0_i32, %c0_i32_0, %c0_i32_1 : i32, i32, i32
  }
  func.func @transform_5(%arg0: i32) -> (i32, i32) {
    %c0_i32 = arith.constant 0 : i32
    %c0_i32_0 = arith.constant 0 : i32
    %c0_i32_1 = arith.constant 0 : i32
    return %c0_i32, %c0_i32_0 : i32, i32
  }
  func.func @transform_6(%arg0: i32) -> (i32, i32) {
    %c0_i32 = arith.constant 0 : i32
    %c0_i32_0 = arith.constant 0 : i32
    %c0_i32_1 = arith.constant 0 : i32
    return %c0_i32, %c0_i32_0 : i32, i32
  }
  func.func @transform_7(%arg0: i32) -> (i32, i32, i32, i32) {
    %c0_i32 = arith.constant 0 : i32
    %c0_i32_0 = arith.constant 0 : i32
    %c0_i32_1 = arith.constant 0 : i32
    %c0_i32_2 = arith.constant 0 : i32
    return %arg0, %c0_i32, %c0_i32_0, %c0_i32_1 : i32, i32, i32, i32
  }
}

</mosaic_0001>

<llo_original>
// kernel: resblock_forward.1
$region0: #{resblock_forward.1}
  #allocation0 [shape = 'u32[]', space=smem, size = 0x4, offset = 0x4, fixed_abs, tag = 'smem constant byte address 0x4 - core index']
  #allocation1 [shape = 'u32[72,128]{1,0:T(1,128)}', space=vmem, size = 0x9000, scoped, tag = 'internal scratch']
  #allocation2 [shape = 'f32[18,18,128]{2,1,0:T(8,128)}', space=vmem, size = 0x36000, scoped, tag = 'scratch operand']
  %s0 = inlined_call_operand.vmem [shape: bf16[2,18,18,128], index: 0, kind: input, shape index: {}]
  %s1 = inlined_call_operand.vmem [shape: bf16[3,384,128], index: 1, kind: input, shape index: {}]
  %s2 = inlined_call_operand.vmem [shape: f32[1,128], index: 2, kind: input, shape index: {}]
  %s3 = inlined_call_operand.vmem [shape: f32[1,128], index: 3, kind: input, shape index: {}]
  %s4 = inlined_call_operand.vmem [shape: bf16[3,384,128], index: 4, kind: input, shape index: {}]
  %s5 = inlined_call_operand.vmem [shape: f32[1,128], index: 5, kind: input, shape index: {}]
  %s6 = inlined_call_operand.vmem [shape: f32[1,128], index: 6, kind: input, shape index: {}]
  %s7 = inlined_call_operand.vmem [shape: f32[2,16,16,128], index: 7, kind: output, shape index: {}]
  %s8 = sld [smem:[#allocation0]]
  $region61: #{resblock_forward.1} parent=0
    _
  %s10 = ssub.s32 1, %s8
  %s11 = scalar_select 0, %s10, %s8
  loop: start=0, step=1, limit=4
  $region2: #{resblock_forward.1} parent=0 // loop_pre_header
    _
  $region3: #{resblock_forward.1} parent=0 // loop_header
    %s13 = sphi 0, %s17
    %p14 = scmp.ge.s32.totalorder %s13, 4
    %s23 = sphi 0, %s25
    %s26 = sphi 0, %s23
    %s27 = sphi 0, %s26
    %s43 = sphi 0, %s27
    %s47 = sphi 0, %s47
    %s49 = sphi 0, %s47
    %s50 = sphi 0, %s49
    %s64 = sphi 0, %s50
    %s68 = sphi 0, %s68
    %s70 = sphi 0, %s68
    %s71 = sphi 0, %s70
    %s85 = sphi 0, %s71
    %s89 = sphi 0, %s89
    %s91 = sphi 0, %s89
    %s92 = sphi 0, %s91
    %s106 = sphi 0, %s92
    %s110 = sphi 0, %s110
    %s112 = sphi 0, %s110
    %s113 = sphi 0, %s112
    %s127 = sphi 0, %s113
    %s131 = sphi 0, %s131
    %s133 = sphi 0, %s131
    %s134 = sphi 0, %s133
    %s148 = sphi 0, %s134
    %s152 = sphi 0, %s152
    %s154 = sphi 0, %s152
    %s155 = sphi 0, %s154
    %s169 = sphi 0, %s155
    %s175 = sphi 0, %s177
    %s178 = sphi 0, %s175
    %s179 = sphi 0, %s178
    %s195 = sphi 0, %s179
  $region4: #{resblock_forward.1} parent=0 // loop_header_branch
    %16 = sbr.rel (%p14) target = $region8
  $region5: #{resblock_forward.1} parent=0 // loop_body
    %s18 = ssub.s32 %s13, 1
    %s19 = ssub.s32 %s13, 2
    %s20 = sadd.s32 %s13, 1
    %s21 = ssub.s32 %s13, %s20
    %p22 = scmp.eq.s32.totalorder %s21, 0
    %s24 = sadd.s32 %s23, 1
    %s25 = scalar_select %p22, %s23, %s24
    %p28 = pneg %p22
    %p29 = scmp.eq.s32.totalorder %s13, 1
    %p30 = por %p28, %p29
    %p31 = scmp.ne.s32.totalorder %s23, %s26
    %p32 = scmp.eq.s32.totalorder %s13, 0
    %p33 = por %p31, %p32
    %p34 = scmp.ne.s32.totalorder %s23, %s26
    %p35 = scmp.eq.s32.totalorder %s18, 1
    %p36 = por %p34, %p35
    %p37 = scmp.ne.s32.totalorder %s26, %s27
    %p38 = scmp.eq.s32.totalorder %s18, 0
    %p39 = por %p37, %p38
    %p40 = scmp.ne.s32.totalorder %s26, %s27
    %p41 = scmp.eq.s32.totalorder %s19, 1
    %p42 = por %p40, %p41
    %p44 = scmp.ne.s32.totalorder %s27, %s43
    %p45 = scmp.eq.s32.totalorder %s19, 0
    %p46 = por %p44, %p45
    %s48 = sadd.s32 %s47, 1
    %p51 = scmp.eq.s32.totalorder %s13, 1
    %p52 = scmp.ne.s32.totalorder %s47, %s49
    %p53 = scmp.eq.s32.totalorder %s13, 0
    %p54 = por %p52, %p53
    %p55 = scmp.ne.s32.totalorder %s47, %s49
    %p56 = scmp.eq.s32.totalorder %s18, 1
    %p57 = por %p55, %p56
    %p58 = scmp.ne.s32.totalorder %s49, %s50
    %p59 = scmp.eq.s32.totalorder %s18, 0
    %p60 = por %p58, %p59
    %p61 = scmp.ne.s32.totalorder %s49, %s50
    %p62 = scmp.eq.s32.totalorder %s19, 1
    %p63 = por %p61, %p62
    %p65 = scmp.ne.s32.totalorder %s50, %s64
    %p66 = scmp.eq.s32.totalorder %s19, 0
    %p67 = por %p65, %p66
    %s69 = sadd.s32 %s68, 1
    %p72 = scmp.eq.s32.totalorder %s13, 1
    %p73 = scmp.ne.s32.totalorder %s68, %s70
    %p74 = scmp.eq.s32.totalorder %s13, 0
    %p75 = por %p73, %p74
    %p76 = scmp.ne.s32.totalorder %s68, %s70
    %p77 = scmp.eq.s32.totalorder %s18, 1
    %p78 = por %p76, %p77
    %p79 = scmp.ne.s32.totalorder %s70, %s71
    %p80 = scmp.eq.s32.totalorder %s18, 0
    %p81 = por %p79, %p80
    %p82 = scmp.ne.s32.totalorder %s70, %s71
    %p83 = scmp.eq.s32.totalorder %s19, 1
    %p84 = por %p82, %p83
    %p86 = scmp.ne.s32.totalorder %s71, %s85
    %p87 = scmp.eq.s32.totalorder %s19, 0
    %p88 = por %p86, %p87
    %s90 = sadd.s32 %s89, 1
    %p93 = scmp.eq.s32.totalorder %s13, 1
    %p94 = scmp.ne.s32.totalorder %s89, %s91
    %p95 = scmp.eq.s32.totalorder %s13, 0
    %p96 = por %p94, %p95
    %p97 = scmp.ne.s32.totalorder %s89, %s91
    %p98 = scmp.eq.s32.totalorder %s18, 1
    %p99 = por %p97, %p98
    %p100 = scmp.ne.s32.totalorder %s91, %s92
    %p101 = scmp.eq.s32.totalorder %s18, 0
    %p102 = por %p100, %p101
    %p103 = scmp.ne.s32.totalorder %s91, %s92
    %p104 = scmp.eq.s32.totalorder %s19, 1
    %p105 = por %p103, %p104
    %p107 = scmp.ne.s32.totalorder %s92, %s106
    %p108 = scmp.eq.s32.totalorder %s19, 0
    %p109 = por %p107, %p108
    %s111 = sadd.s32 %s110, 1
    %p114 = scmp.eq.s32.totalorder %s13, 1
    %p115 = scmp.ne.s32.totalorder %s110, %s112
    %p116 = scmp.eq.s32.totalorder %s13, 0
    %p117 = por %p115, %p116
    %p118 = scmp.ne.s32.totalorder %s110, %s112
    %p119 = scmp.eq.s32.totalorder %s18, 1
    %p120 = por %p118, %p119
    %p121 = scmp.ne.s32.totalorder %s112, %s113
    %p122 = scmp.eq.s32.totalorder %s18, 0
    %p123 = por %p121, %p122
    %p124 = scmp.ne.s32.totalorder %s112, %s113
    %p125 = scmp.eq.s32.totalorder %s19, 1
    %p126 = por %p124, %p125
    %p128 = scmp.ne.s32.totalorder %s113, %s127
    %p129 = scmp.eq.s32.totalorder %s19, 0
    %p130 = por %p128, %p129
    %s132 = sadd.s32 %s131, 1
    %p135 = scmp.eq.s32.totalorder %s13, 1
    %p136 = scmp.ne.s32.totalorder %s131, %s133
    %p137 = scmp.eq.s32.totalorder %s13, 0
    %p138 = por %p136, %p137
    %p139 = scmp.ne.s32.totalorder %s131, %s133
    %p140 = scmp.eq.s32.totalorder %s18, 1
    %p141 = por %p139, %p140
    %p142 = scmp.ne.s32.totalorder %s133, %s134
    %p143 = scmp.eq.s32.totalorder %s18, 0
    %p144 = por %p142, %p143
    %p145 = scmp.ne.s32.totalorder %s133, %s134
    %p146 = scmp.eq.s32.totalorder %s19, 1
    %p147 = por %p145, %p146
    %p149 = scmp.ne.s32.totalorder %s134, %s148
    %p150 = scmp.eq.s32.totalorder %s19, 0
    %p151 = por %p149, %p150
    %s153 = sadd.s32 %s152, 1
    %p156 = scmp.eq.s32.totalorder %s13, 1
    %p157 = scmp.ne.s32.totalorder %s152, %s154
    %p158 = scmp.eq.s32.totalorder %s13, 0
    %p159 = por %p157, %p158
    %p160 = scmp.ne.s32.totalorder %s152, %s154
    %p161 = scmp.eq.s32.totalorder %s18, 1
    %p162 = por %p160, %p161
    %p163 = scmp.ne.s32.totalorder %s154, %s155
    %p164 = scmp.eq.s32.totalorder %s18, 0
    %p165 = por %p163, %p164
    %p166 = scmp.ne.s32.totalorder %s154, %s155
    %p167 = scmp.eq.s32.totalorder %s19, 1
    %p168 = por %p166, %p167
    %p170 = scmp.ne.s32.totalorder %s155, %s169
    %p171 = scmp.eq.s32.totalorder %s19, 0
    %p172 = por %p170, %p171
    %s173 = ssub.s32 %s13, %s20
    %p174 = scmp.eq.s32.totalorder %s173, 0
    %s176 = sadd.s32 %s175, 1
    %s177 = scalar_select %p174, %s175, %s176
    %p180 = pneg %p174
    %p181 = scmp.eq.s32.totalorder %s13, 1
    %p182 = por %p180, %p181
    %p183 = scmp.ne.s32.totalorder %s175, %s178
    %p184 = scmp.eq.s32.totalorder %s13, 0
    %p185 = por %p183, %p184
    %p186 = scmp.ne.s32.totalorder %s175, %s178
    %p187 = scmp.eq.s32.totalorder %s18, 1
    %p188 = por %p186, %p187
    %p189 = scmp.ne.s32.totalorder %s178, %s179
    %p190 = scmp.eq.s32.totalorder %s18, 0
    %p191 = por %p189, %p190
    %p192 = scmp.ne.s32.totalorder %s178, %s179
    %p193 = scmp.eq.s32.totalorder %s19, 1
    %p194 = por %p192, %p193
    %p196 = scmp.ne.s32.totalorder %s179, %s195
    %p197 = scmp.eq.s32.totalorder %s19, 0
    %p198 = por %p196, %p197
    %p199 = scmp.le.s32.totalorder 1, %s13
    %p200 = scmp.lt.s32.totalorder %s13, 3
    %p201 = pnand %p199, %p200
    %p202 = pneg %p201
    // Predicated region
    $region9: #{resblock_forward.1} parent=5 // pred_check
      _
    $region10: #{resblock_forward.1} parent=5 // pred_check_branch
      %204 = sbr.rel (%p201) target = $region12
    $region11: #{resblock_forward.1} parent=5 // pred_region
      %s205 = ssub.s32 %s13, 1
      // Predicated region
      $region13: #{resblock_forward.1} parent=11 // pred_check
        %p206 = pneg %p60
      $region14: #{resblock_forward.1} parent=11 // pred_check_branch
        %208 = sbr.rel (%p206) target = $region16
      $region15: #{resblock_forward.1} parent=11 // pred_region
        _
      $region16: #{resblock_forward.1} parent=11 // pred_fallthru
        _
      // Predicated region
      $region17: #{resblock_forward.1} parent=11 // pred_check
        %p209 = pneg %p81
      $region18: #{resblock_forward.1} parent=11 // pred_check_branch
        %211 = sbr.rel (%p209) target = $region20
      $region19: #{resblock_forward.1} parent=11 // pred_region
        _
      $region20: #{resblock_forward.1} parent=11 // pred_fallthru
        _
      // Predicated region
      $region21: #{resblock_forward.1} parent=11 // pred_check
        %p212 = pneg %p102
      $region22: #{resblock_forward.1} parent=11 // pred_check_branch
        %214 = sbr.rel (%p212) target = $region24
      $region23: #{resblock_forward.1} parent=11 // pred_region
        _
      $region24: #{resblock_forward.1} parent=11 // pred_fallthru
        _
      // Predicated region
      $region25: #{resblock_forward.1} parent=11 // pred_check
        %p215 = pneg %p123
      $region26: #{resblock_forward.1} parent=11 // pred_check_branch
        %217 = sbr.rel (%p215) target = $region28
      $region27: #{resblock_forward.1} parent=11 // pred_region
        _
      $region28: #{resblock_forward.1} parent=11 // pred_fallthru
        _
      // Predicated region
      $region29: #{resblock_forward.1} parent=11 // pred_check
        %p218 = pneg %p144
      $region30: #{resblock_forward.1} parent=11 // pred_check_branch
        %220 = sbr.rel (%p218) target = $region32
      $region31: #{resblock_forward.1} parent=11 // pred_region
        _
      $region32: #{resblock_forward.1} parent=11 // pred_fallthru
        _
      // Predicated region
      $region33: #{resblock_forward.1} parent=11 // pred_check
        %p221 = pneg %p165
      $region34: #{resblock_forward.1} parent=11 // pred_check_branch
        %223 = sbr.rel (%p221) target = $region36
      $region35: #{resblock_forward.1} parent=11 // pred_region
        _
      $region36: #{resblock_forward.1} parent=11 // pred_fallthru
        _
    $region12: #{resblock_forward.1} parent=5 // pred_fallthru
      _
    %p224 = scmp.lt.s32.totalorder %s13, 2
    // Predicated region
    $region37: #{resblock_forward.1} parent=5 // pred_check
      %p225 = pneg %p224
    $region38: #{resblock_forward.1} parent=5 // pred_check_branch
      %227 = sbr.rel (%p225) target = $region40
    $region39: #{resblock_forward.1} parent=5 // pred_region
      // Predicated region
      $region41: #{resblock_forward.1} parent=39 // pred_check
        %p228 = pneg %p33
      $region42: #{resblock_forward.1} parent=39 // pred_check_branch
        %230 = sbr.rel (%p228) target = $region44
      $region43: #{resblock_forward.1} parent=39 // pred_region
        %p231 = scmp.lt.s32.totalorder %s13, 1
        %s232 = scalar_select %p231, %s13, 1
        %s233 = smul.addr %s232, 54
        %s234 = smul.addr %s233, 4
        %s235 = scalar_lea.vmem %s0, %s234
      $region44: #{resblock_forward.1} parent=39 // pred_fallthru
        _
    $region40: #{resblock_forward.1} parent=5 // pred_fallthru
      _
    %p236 = scmp.le.s32.totalorder 1, %s13
    %p237 = scmp.lt.s32.totalorder %s13, 3
    %p238 = pnand %p236, %p237
    %p239 = pneg %p238
    // Predicated region
    $region45: #{resblock_forward.1} parent=5 // pred_check
      _
    $region46: #{resblock_forward.1} parent=5 // pred_check_branch
      %241 = sbr.rel (%p238) target = $region48
    $region47: #{resblock_forward.1} parent=5 // pred_region
      %s242 = ssub.s32 %s13, 1
      %p243 = scmp.lt.s32.totalorder %s18, 1
      %s244 = scalar_select %p243, %s18, 1
      %s245 = smul.addr %s244, 54
      %s246 = smul.addr %s245, 4
      %s247 = scalar_lea.vmem %s0, %s246
      %p248 = pneg %p39
      %p249 = pneg %p36
      %p250 = pneg %p60
      %p251 = pneg %p57
      %p252 = pneg %p81
      %p253 = pneg %p78
      %p254 = pneg %p102
      %p255 = pneg %p99
      %p256 = pneg %p123
      %p257 = pneg %p120
      %p258 = pneg %p144
      %p259 = pneg %p141
      %p260 = pneg %p165
      %p261 = pneg %p162
      %p262 = pneg %p191
      %p263 = pneg %p188
      %p264 = scmp.lt.s32.totalorder %s18, 1
      %s265 = scalar_select %p264, %s18, 1
      %s266 = smul.addr %s265, 32
      %s267 = smul.addr %s266, 8
      %s268 = scalar_lea.vmem %s7, %s267
      %p269 = scmp.lt.s32.totalorder %s18, 1
      %s270 = scalar_select %p269, %s18, 1
      %s271 = smul.addr %s270, 54
      %s272 = smul.addr %s271, 4
      %s273 = scalar_lea.vmem %s0, %s272
      %p274 = scmp.lt.s32.totalorder %s18, 1
      %s275 = scalar_select %p274, %s18, 1
      %s276 = smul.addr %s275, 32
      %s277 = smul.addr %s276, 8
      %s278 = scalar_lea.vmem %s7, %s277
      %v279 = vld [vmem:[%s273] sm:$0xf]
      %v280 = vld [vmem:[%s273 + $0x4] sm:$0xf]
      %v281 = vld [vmem:[%s273 + $0x8] sm:$0x1]
      %v282 = vld [vmem:[%s273 + $0xc] sm:$0xf]
      %v283 = vld [vmem:[%s273 + $0x10] sm:$0xf]
      %v284 = vld [vmem:[%s273 + $0x14] sm:$0x1]
      %v285 = vld [vmem:[%s273 + $0x18] sm:$0xf]
      %v286 = vld [vmem:[%s273 + $0x1c] sm:$0xf]
      %v287 = vld [vmem:[%s273 + $0x20] sm:$0x1]
      %v288 = vld [vmem:[%s273 + $0x24] sm:$0xf]
      %v289 = vld [vmem:[%s273 + $0x28] sm:$0xf]
      %v290 = vld [vmem:[%s273 + $0x2c] sm:$0x1]
      %v291 = vld [vmem:[%s273 + $0x30] sm:$0xf]
      %v292 = vld [vmem:[%s273 + $0x34] sm:$0xf]
      %v293 = vld [vmem:[%s273 + $0x38] sm:$0x1]
      %v294 = vld [vmem:[%s273 + $0x3c] sm:$0xf]
      %v295 = vld [vmem:[%s273 + $0x40] sm:$0xf]
      %v296 = vld [vmem:[%s273 + $0x44] sm:$0x1]
      %v297 = vld [vmem:[%s273 + $0x48] sm:$0xf]
      %v298 = vld [vmem:[%s273 + $0x4c] sm:$0xf]
      %v299 = vld [vmem:[%s273 + $0x50] sm:$0x1]
      %v300 = vld [vmem:[%s273 + $0x54] sm:$0xf]
      %v301 = vld [vmem:[%s273 + $0x58] sm:$0xf]
      %v302 = vld [vmem:[%s273 + $0x5c] sm:$0x1]
      %v303 = vld [vmem:[%s273 + $0x60] sm:$0xf]
      %v304 = vld [vmem:[%s273 + $0x64] sm:$0xf]
      %v305 = vld [vmem:[%s273 + $0x68] sm:$0x1]
      %v306 = vld [vmem:[%s273 + $0x6c] sm:$0xf]
      %v307 = vld [vmem:[%s273 + $0x70] sm:$0xf]
      %v308 = vld [vmem:[%s273 + $0x74] sm:$0x1]
      %v309 = vld [vmem:[%s273 + $0x78] sm:$0xf]
      %v310 = vld [vmem:[%s273 + $0x7c] sm:$0xf]
      %v311 = vld [vmem:[%s273 + $0x80] sm:$0x1]
      %v312 = vld [vmem:[%s273 + $0x84] sm:$0xf]
      %v313 = vld [vmem:[%s273 + $0x88] sm:$0xf]
      %v314 = vld [vmem:[%s273 + $0x8c] sm:$0x1]
      %v315 = vld [vmem:[%s273 + $0x90] sm:$0xf]
      %v316 = vld [vmem:[%s273 + $0x94] sm:$0xf]
      %v317 = vld [vmem:[%s273 + $0x98] sm:$0x1]
      %v318 = vld [vmem:[%s273 + $0x9c] sm:$0xf]
      %v319 = vld [vmem:[%s273 + $0xa0] sm:$0xf]
      %v320 = vld [vmem:[%s273 + $0xa4] sm:$0x1]
      %v321 = vld [vmem:[%s273 + $0xa8] sm:$0xf]
      %v322 = vld [vmem:[%s273 + $0xac] sm:$0xf]
      %v323 = vld [vmem:[%s273 + $0xb0] sm:$0x1]
      %v324 = vld [vmem:[%s273 + $0xb4] sm:$0xf]
      %v325 = vld [vmem:[%s273 + $0xb8] sm:$0xf]
      %v326 = vld [vmem:[%s273 + $0xbc] sm:$0x1]
      %v327 = vld [vmem:[%s273 + $0xc0] sm:$0xf]
      %v328 = vld [vmem:[%s273 + $0xc4] sm:$0xf]
      %v329 = vld [vmem:[%s273 + $0xc8] sm:$0x1]
      %v330 = vld [vmem:[%s273 + $0xcc] sm:$0xf]
      %v331 = vld [vmem:[%s273 + $0xd0] sm:$0xf]
      %v332 = vld [vmem:[%s273 + $0xd4] sm:$0x1]
      %v365 = vunpack.c.l.b16 %v279
      %v366 = vunpack.c.l.b16 %v280
      %v367 = vunpack.c.l.b16 %v282
      %v368 = vunpack.c.l.b16 %v283
      %v369 = vunpack.c.l.b16 %v285
      %v370 = vunpack.c.l.b16 %v286
      %v371 = vunpack.c.l.b16 %v288
      %v372 = vunpack.c.l.b16 %v289
      %v373 = vunpack.c.l.b16 %v291
      %v374 = vunpack.c.l.b16 %v292
      %v375 = vunpack.c.l.b16 %v294
      %v376 = vunpack.c.l.b16 %v295
      %v377 = vunpack.c.l.b16 %v297
      %v378 = vunpack.c.l.b16 %v298
      %v379 = vunpack.c.l.b16 %v300
      %v380 = vunpack.c.l.b16 %v301
      %v381 = vunpack.c.l.b16 %v303
      %v382 = vunpack.c.l.b16 %v304
      %v383 = vunpack.c.l.b16 %v306
      %v384 = vunpack.c.l.b16 %v307
      %v385 = vunpack.c.l.b16 %v309
      %v386 = vunpack.c.l.b16 %v310
      %v387 = vunpack.c.l.b16 %v312
      %v388 = vunpack.c.l.b16 %v313
      %v389 = vunpack.c.l.b16 %v315
      %v390 = vunpack.c.l.b16 %v316
      %v391 = vunpack.c.l.b16 %v318
      %v392 = vunpack.c.l.b16 %v319
      %v393 = vunpack.c.l.b16 %v321
      %v394 = vunpack.c.l.b16 %v322
      %v395 = vunpack.c.l.b16 %v324
      %v396 = vunpack.c.l.b16 %v325
      %v397 = vpack.c.b16 %v366, %v365
      %v398 = vpack.c.b16 %v368, %v367
      %v399 = vpack.c.b16 %v370, %v369
      %v400 = vpack.c.b16 %v372, %v371
      %v401 = vpack.c.b16 %v374, %v373
      %v402 = vpack.c.b16 %v376, %v375
      %v403 = vpack.c.b16 %v378, %v377
      %v404 = vpack.c.b16 %v380, %v379
      %v405 = vpack.c.b16 %v382, %v381
      %v406 = vpack.c.b16 %v384, %v383
      %v407 = vpack.c.b16 %v386, %v385
      %v408 = vpack.c.b16 %v388, %v387
      %v409 = vpack.c.b16 %v390, %v389
      %v410 = vpack.c.b16 %v392, %v391
      %v411 = vpack.c.b16 %v394, %v393
      %v412 = vpack.c.b16 %v396, %v395
      %v445 = vunpack.c.l.b16 %v281
      %v446 = vunpack.c.l.b16 %v284
      %v447 = vunpack.c.l.b16 %v287
      %v448 = vunpack.c.l.b16 %v290
      %v449 = vunpack.c.l.b16 %v293
      %v450 = vunpack.c.l.b16 %v296
      %v451 = vunpack.c.l.b16 %v299
      %v452 = vunpack.c.l.b16 %v302
      %v453 = vunpack.c.l.b16 %v305
      %v454 = vunpack.c.l.b16 %v308
      %v455 = vunpack.c.l.b16 %v311
      %v456 = vunpack.c.l.b16 %v314
      %v457 = vunpack.c.l.b16 %v317
      %v458 = vunpack.c.l.b16 %v320
      %v459 = vunpack.c.l.b16 %v323
      %v460 = vunpack.c.l.b16 %v326
      %v461 = vpack.c.b16 %v445, %v445
      %v462 = vpack.c.b16 %v446, %v446
      %v463 = vpack.c.b16 %v447, %v447
      %v464 = vpack.c.b16 %v448, %v448
      %v465 = vpack.c.b16 %v449, %v449
      %v466 = vpack.c.b16 %v450, %v450
      %v467 = vpack.c.b16 %v451, %v451
      %v468 = vpack.c.b16 %v452, %v452
      %v469 = vpack.c.b16 %v453, %v453
      %v470 = vpack.c.b16 %v454, %v454
      %v471 = vpack.c.b16 %v455, %v455
      %v472 = vpack.c.b16 %v456, %v456
      %v473 = vpack.c.b16 %v457, %v457
      %v474 = vpack.c.b16 %v458, %v458
      %v475 = vpack.c.b16 %v459, %v459
      %v476 = vpack.c.b16 %v460, %v460
      %vm477 = vsmask.f32 7424
      %v479 = vshrl.u32 %v397, 16
      %v481 = vshll.u32 %v397, 16
      %v483 = vrot.slane %v481, 1
      %v484 = vor.u32 %v479, %v483
      %v486 = vshll.u32 %v461, 16
      %v488 = vrot.slane %v486, 1
      %v489 = vsel %vm477, %v484, %v488
      %v491 = vshrl.u32 %v398, 16
      %v493 = vshll.u32 %v398, 16
      %v495 = vrot.slane %v493, 1
      %v496 = vor.u32 %v491, %v495
      %v498 = vshll.u32 %v462, 16
      %v500 = vrot.slane %v498, 1
      %v501 = vsel %vm477, %v496, %v500
      %v503 = vshrl.u32 %v399, 16
      %v505 = vshll.u32 %v399, 16
      %v507 = vrot.slane %v505, 1
      %v508 = vor.u32 %v503, %v507
      %v510 = vshll.u32 %v463, 16
      %v512 = vrot.slane %v510, 1
      %v513 = vsel %vm477, %v508, %v512
      %v515 = vshrl.u32 %v400, 16
      %v517 = vshll.u32 %v400, 16
      %v519 = vrot.slane %v517, 1
      %v520 = vor.u32 %v515, %v519
      %v522 = vshll.u32 %v464, 16
      %v524 = vrot.slane %v522, 1
      %v525 = vsel %vm477, %v520, %v524
      %v527 = vshrl.u32 %v401, 16
      %v529 = vshll.u32 %v401, 16
      %v531 = vrot.slane %v529, 1
      %v532 = vor.u32 %v527, %v531
      %v534 = vshll.u32 %v465, 16
      %v536 = vrot.slane %v534, 1
      %v537 = vsel %vm477, %v532, %v536
      %v539 = vshrl.u32 %v402, 16
      %v541 = vshll.u32 %v402, 16
      %v543 = vrot.slane %v541, 1
      %v544 = vor.u32 %v539, %v543
      %v546 = vshll.u32 %v466, 16
      %v548 = vrot.slane %v546, 1
      %v549 = vsel %vm477, %v544, %v548
      %v551 = vshrl.u32 %v403, 16
      %v553 = vshll.u32 %v403, 16
      %v555 = vrot.slane %v553, 1
      %v556 = vor.u32 %v551, %v555
      %v558 = vshll.u32 %v467, 16
      %v560 = vrot.slane %v558, 1
      %v561 = vsel %vm477, %v556, %v560
      %v563 = vshrl.u32 %v404, 16
      %v565 = vshll.u32 %v404, 16
      %v567 = vrot.slane %v565, 1
      %v568 = vor.u32 %v563, %v567
      %v570 = vshll.u32 %v468, 16
      %v572 = vrot.slane %v570, 1
      %v573 = vsel %vm477, %v568, %v572
      %v575 = vshrl.u32 %v405, 16
      %v577 = vshll.u32 %v405, 16
      %v579 = vrot.slane %v577, 1
      %v580 = vor.u32 %v575, %v579
      %v582 = vshll.u32 %v469, 16
      %v584 = vrot.slane %v582, 1
      %v585 = vsel %vm477, %v580, %v584
      %v587 = vshrl.u32 %v406, 16
      %v589 = vshll.u32 %v406, 16
      %v591 = vrot.slane %v589, 1
      %v592 = vor.u32 %v587, %v591
      %v594 = vshll.u32 %v470, 16
      %v596 = vrot.slane %v594, 1
      %v597 = vsel %vm477, %v592, %v596
      %v599 = vshrl.u32 %v407, 16
      %v601 = vshll.u32 %v407, 16
      %v603 = vrot.slane %v601, 1
      %v604 = vor.u32 %v599, %v603
      %v606 = vshll.u32 %v471, 16
      %v608 = vrot.slane %v606, 1
      %v609 = vsel %vm477, %v604, %v608
      %v611 = vshrl.u32 %v408, 16
      %v613 = vshll.u32 %v408, 16
      %v615 = vrot.slane %v613, 1
      %v616 = vor.u32 %v611, %v615
      %v618 = vshll.u32 %v472, 16
      %v620 = vrot.slane %v618, 1
      %v621 = vsel %vm477, %v616, %v620
      %v623 = vshrl.u32 %v409, 16
      %v625 = vshll.u32 %v409, 16
      %v627 = vrot.slane %v625, 1
      %v628 = vor.u32 %v623, %v627
      %v630 = vshll.u32 %v473, 16
      %v632 = vrot.slane %v630, 1
      %v633 = vsel %vm477, %v628, %v632
      %v635 = vshrl.u32 %v410, 16
      %v637 = vshll.u32 %v410, 16
      %v639 = vrot.slane %v637, 1
      %v640 = vor.u32 %v635, %v639
      %v642 = vshll.u32 %v474, 16
      %v644 = vrot.slane %v642, 1
      %v645 = vsel %vm477, %v640, %v644
      %v647 = vshrl.u32 %v411, 16
      %v649 = vshll.u32 %v411, 16
      %v651 = vrot.slane %v649, 1
      %v652 = vor.u32 %v647, %v651
      %v654 = vshll.u32 %v475, 16
      %v656 = vrot.slane %v654, 1
      %v657 = vsel %vm477, %v652, %v656
      %v659 = vshrl.u32 %v412, 16
      %v661 = vshll.u32 %v412, 16
      %v663 = vrot.slane %v661, 1
      %v664 = vor.u32 %v659, %v663
      %v666 = vshll.u32 %v476, 16
      %v668 = vrot.slane %v666, 1
      %v669 = vsel %vm477, %v664, %v668
      %vm686 = vcmask 1046528
      %v687 = vrot.slane %v397, 1
      %v688 = vrot.slane %v461, 1
      %v689 = vsel %vm686, %v687, %v688
      %v690 = vrot.slane %v398, 1
      %v691 = vrot.slane %v462, 1
      %v692 = vsel %vm686, %v690, %v691
      %v693 = vrot.slane %v399, 1
      %v694 = vrot.slane %v463, 1
      %v695 = vsel %vm686, %v693, %v694
      %v696 = vrot.slane %v400, 1
      %v697 = vrot.slane %v464, 1
      %v698 = vsel %vm686, %v696, %v697
      %v699 = vrot.slane %v401, 1
      %v700 = vrot.slane %v465, 1
      %v701 = vsel %vm686, %v699, %v700
      %v702 = vrot.slane %v402, 1
      %v703 = vrot.slane %v466, 1
      %v704 = vsel %vm686, %v702, %v703
      %v705 = vrot.slane %v403, 1
      %v706 = vrot.slane %v467, 1
      %v707 = vsel %vm686, %v705, %v706
      %v708 = vrot.slane %v404, 1
      %v709 = vrot.slane %v468, 1
      %v710 = vsel %vm686, %v708, %v709
      %v711 = vrot.slane %v405, 1
      %v712 = vrot.slane %v469, 1
      %v713 = vsel %vm686, %v711, %v712
      %v714 = vrot.slane %v406, 1
      %v715 = vrot.slane %v470, 1
      %v716 = vsel %vm686, %v714, %v715
      %v717 = vrot.slane %v407, 1
      %v718 = vrot.slane %v471, 1
      %v719 = vsel %vm686, %v717, %v718
      %v720 = vrot.slane %v408, 1
      %v721 = vrot.slane %v472, 1
      %v722 = vsel %vm686, %v720, %v721
      %v723 = vrot.slane %v409, 1
      %v724 = vrot.slane %v473, 1
      %v725 = vsel %vm686, %v723, %v724
      %v726 = vrot.slane %v410, 1
      %v727 = vrot.slane %v474, 1
      %v728 = vsel %vm686, %v726, %v727
      %v729 = vrot.slane %v411, 1
      %v730 = vrot.slane %v475, 1
      %v731 = vsel %vm686, %v729, %v730
      %v732 = vrot.slane %v412, 1
      %v733 = vrot.slane %v476, 1
      %v734 = vsel %vm686, %v732, %v733
      %v751 = vld [vmem:[%s1] sm:$0xf]
      %v752 = vld [vmem:[%s1 + $0x4] sm:$0xf]
      %v753 = vld [vmem:[%s1 + $0x8] sm:$0xf]
      %v754 = vld [vmem:[%s1 + $0xc] sm:$0xf]
      %v755 = vld [vmem:[%s1 + $0x10] sm:$0xf]
      %v756 = vld [vmem:[%s1 + $0x14] sm:$0xf]
      %v757 = vld [vmem:[%s1 + $0x18] sm:$0xf]
      %v758 = vld [vmem:[%s1 + $0x1c] sm:$0xf]
      %v759 = vld [vmem:[%s1 + $0x20] sm:$0xf]
      %v760 = vld [vmem:[%s1 + $0x24] sm:$0xf]
      %v761 = vld [vmem:[%s1 + $0x28] sm:$0xf]
      %v762 = vld [vmem:[%s1 + $0x2c] sm:$0xf]
      %v763 = vld [vmem:[%s1 + $0x30] sm:$0xf]
      %v764 = vld [vmem:[%s1 + $0x34] sm:$0xf]
      %v765 = vld [vmem:[%s1 + $0x38] sm:$0xf]
      %v766 = vld [vmem:[%s1 + $0x3c] sm:$0xf]
      %v767 = vld [vmem:[%s1 + $0x40] sm:$0xf]
      %v768 = vld [vmem:[%s1 + $0x44] sm:$0xf]
      %v769 = vld [vmem:[%s1 + $0x48] sm:$0xf]
      %v770 = vld [vmem:[%s1 + $0x4c] sm:$0xf]
      %v771 = vld [vmem:[%s1 + $0x50] sm:$0xf]
      %v772 = vld [vmem:[%s1 + $0x54] sm:$0xf]
      %v773 = vld [vmem:[%s1 + $0x58] sm:$0xf]
      %v774 = vld [vmem:[%s1 + $0x5c] sm:$0xf]
      %v775 = vld [vmem:[%s1 + $0x60] sm:$0xf]
      %v776 = vld [vmem:[%s1 + $0x64] sm:$0xf]
      %v777 = vld [vmem:[%s1 + $0x68] sm:$0xf]
      %v778 = vld [vmem:[%s1 + $0x6c] sm:$0xf]
      %v779 = vld [vmem:[%s1 + $0x70] sm:$0xf]
      %v780 = vld [vmem:[%s1 + $0x74] sm:$0xf]
      %v781 = vld [vmem:[%s1 + $0x78] sm:$0xf]
      %v782 = vld [vmem:[%s1 + $0x7c] sm:$0xf]
      %v783 = vld [vmem:[%s1 + $0x80] sm:$0xf]
      %v784 = vld [vmem:[%s1 + $0x84] sm:$0xf]
      %v785 = vld [vmem:[%s1 + $0x88] sm:$0xf]
      %v786 = vld [vmem:[%s1 + $0x8c] sm:$0xf]
      %v787 = vld [vmem:[%s1 + $0x90] sm:$0xf]
      %v788 = vld [vmem:[%s1 + $0x94] sm:$0xf]
      %v789 = vld [vmem:[%s1 + $0x98] sm:$0xf]
      %v790 = vld [vmem:[%s1 + $0x9c] sm:$0xf]
      %v791 = vld [vmem:[%s1 + $0xa0] sm:$0xf]
      %v792 = vld [vmem:[%s1 + $0xa4] sm:$0xf]
      %v793 = vld [vmem:[%s1 + $0xa8] sm:$0xf]
      %v794 = vld [vmem:[%s1 + $0xac] sm:$0xf]
      %v795 = vld [vmem:[%s1 + $0xb0] sm:$0xf]
      %v796 = vld [vmem:[%s1 + $0xb4] sm:$0xf]
      %v797 = vld [vmem:[%s1 + $0xb8] sm:$0xf]
      %v798 = vld [vmem:[%s1 + $0xbc] sm:$0xf]
      %v801 = vunpack.c.l.b16 %v327
      %v802 = vunpack.c.l.b16 %v328
      %v803 = vpack.c.b16 %v802, %v801
      %v806 = vunpack.c.l.b16 %v329
      %v807 = vpack.c.b16 %v806, %v806
      %v809 = vshrl.u32 %v803, 16
      %v811 = vshll.u32 %v803, 16
      %v813 = vrot.slane %v811, 1
      %v814 = vor.u32 %v809, %v813
      %v816 = vshll.u32 %v807, 16
      %v818 = vrot.slane %v816, 1
      %v819 = vsel %vm477, %v814, %v818
      %v821 = vrot.slane %v803, 1
      %v822 = vrot.slane %v807, 1
      %v823 = vsel %vm686, %v821, %v822
      %s825 = scalar_lea.vmem %s1, 192
      %v826 = vld [vmem:[%s825] sm:$0xf]
      %v827 = vld [vmem:[%s825 + $0x4] sm:$0xf]
      %v828 = vld [vmem:[%s825 + $0x8] sm:$0xf]
      %v829 = vld [vmem:[%s825 + $0xc] sm:$0xf]
      %v830 = vld [vmem:[%s825 + $0x10] sm:$0xf]
      %v831 = vld [vmem:[%s825 + $0x14] sm:$0xf]
      %v832 = vld [vmem:[%s825 + $0x18] sm:$0xf]
      %v833 = vld [vmem:[%s825 + $0x1c] sm:$0xf]
      %v834 = vld [vmem:[%s825 + $0x20] sm:$0xf]
      %v835 = vld [vmem:[%s825 + $0x24] sm:$0xf]
      %v836 = vld [vmem:[%s825 + $0x28] sm:$0xf]
      %v837 = vld [vmem:[%s825 + $0x2c] sm:$0xf]
      %v838 = vld [vmem:[%s825 + $0x30] sm:$0xf]
      %v839 = vld [vmem:[%s825 + $0x34] sm:$0xf]
      %v840 = vld [vmem:[%s825 + $0x38] sm:$0xf]
      %v841 = vld [vmem:[%s825 + $0x3c] sm:$0xf]
      %v842 = vld [vmem:[%s825 + $0x40] sm:$0xf]
      %v843 = vld [vmem:[%s825 + $0x44] sm:$0xf]
      %v844 = vld [vmem:[%s825 + $0x48] sm:$0xf]
      %v845 = vld [vmem:[%s825 + $0x4c] sm:$0xf]
      %v846 = vld [vmem:[%s825 + $0x50] sm:$0xf]
      %v847 = vld [vmem:[%s825 + $0x54] sm:$0xf]
      %v848 = vld [vmem:[%s825 + $0x58] sm:$0xf]
      %v849 = vld [vmem:[%s825 + $0x5c] sm:$0xf]
      %v850 = vld [vmem:[%s825 + $0x60] sm:$0xf]
      %v851 = vld [vmem:[%s825 + $0x64] sm:$0xf]
      %v852 = vld [vmem:[%s825 + $0x68] sm:$0xf]
      %v853 = vld [vmem:[%s825 + $0x6c] sm:$0xf]
      %v854 = vld [vmem:[%s825 + $0x70] sm:$0xf]
      %v855 = vld [vmem:[%s825 + $0x74] sm:$0xf]
      %v856 = vld [vmem:[%s825 + $0x78] sm:$0xf]
      %v857 = vld [vmem:[%s825 + $0x7c] sm:$0xf]
      %v858 = vld [vmem:[%s825 + $0x80] sm:$0xf]
      %v859 = vld [vmem:[%s825 + $0x84] sm:$0xf]
      %v860 = vld [vmem:[%s825 + $0x88] sm:$0xf]
      %v861 = vld [vmem:[%s825 + $0x8c] sm:$0xf]
      %v862 = vld [vmem:[%s825 + $0x90] sm:$0xf]
      %v863 = vld [vmem:[%s825 + $0x94] sm:$0xf]
      %v864 = vld [vmem:[%s825 + $0x98] sm:$0xf]
      %v865 = vld [vmem:[%s825 + $0x9c] sm:$0xf]
      %v866 = vld [vmem:[%s825 + $0xa0] sm:$0xf]
      %v867 = vld [vmem:[%s825 + $0xa4] sm:$0xf]
      %v868 = vld [vmem:[%s825 + $0xa8] sm:$0xf]
      %v869 = vld [vmem:[%s825 + $0xac] sm:$0xf]
      %v870 = vld [vmem:[%s825 + $0xb0] sm:$0xf]
      %v871 = vld [vmem:[%s825 + $0xb4] sm:$0xf]
      %v872 = vld [vmem:[%s825 + $0xb8] sm:$0xf]
      %v873 = vld [vmem:[%s825 + $0xbc] sm:$0xf]
      %v922 = vunpack.c.l.b16 %v826
      %v923 = vunpack.c.l.b16 %v827
      %v924 = vunpack.c.l.b16 %v828
      %v925 = vunpack.c.l.b16 %v829
      %v926 = vunpack.c.l.b16 %v830
      %v927 = vunpack.c.l.b16 %v831
      %v928 = vunpack.c.l.b16 %v832
      %v929 = vunpack.c.l.b16 %v833
      %v930 = vunpack.c.l.b16 %v834
      %v931 = vunpack.c.l.b16 %v835
      %v932 = vunpack.c.l.b16 %v836
      %v933 = vunpack.c.l.b16 %v837
      %v934 = vunpack.c.l.b16 %v838
      %v935 = vunpack.c.l.b16 %v839
      %v936 = vunpack.c.l.b16 %v840
      %v937 = vunpack.c.l.b16 %v841
      %v938 = vunpack.c.l.b16 %v842
      %v939 = vunpack.c.l.b16 %v843
      %v940 = vunpack.c.l.b16 %v844
      %v941 = vunpack.c.l.b16 %v845
      %v942 = vunpack.c.l.b16 %v846
      %v943 = vunpack.c.l.b16 %v847
      %v944 = vunpack.c.l.b16 %v848
      %v945 = vunpack.c.l.b16 %v849
      %v946 = vunpack.c.l.b16 %v850
      %v947 = vunpack.c.l.b16 %v851
      %v948 = vunpack.c.l.b16 %v852
      %v949 = vunpack.c.l.b16 %v853
      %v950 = vunpack.c.l.b16 %v854
      %v951 = vunpack.c.l.b16 %v855
      %v952 = vunpack.c.l.b16 %v856
      %v953 = vunpack.c.l.b16 %v857
      %v954 = vunpack.c.l.b16 %v858
      %v955 = vunpack.c.l.b16 %v859
      %v956 = vunpack.c.l.b16 %v860
      %v957 = vunpack.c.l.b16 %v861
      %v958 = vunpack.c.l.b16 %v862
      %v959 = vunpack.c.l.b16 %v863
      %v960 = vunpack.c.l.b16 %v864
      %v961 = vunpack.c.l.b16 %v865
      %v962 = vunpack.c.l.b16 %v866
      %v963 = vunpack.c.l.b16 %v867
      %v964 = vunpack.c.l.b16 %v868
      %v965 = vunpack.c.l.b16 %v869
      %v966 = vunpack.c.l.b16 %v870
      %v967 = vunpack.c.l.b16 %v871
      %v968 = vunpack.c.l.b16 %v872
      %v969 = vunpack.c.l.b16 %v873
      %v970 = vpack.c.b16 %v923, %v922
      %v971 = vpack.c.b16 %v925, %v924
      %v972 = vpack.c.b16 %v927, %v926
      %v973 = vpack.c.b16 %v929, %v928
      %v974 = vpack.c.b16 %v931, %v930
      %v975 = vpack.c.b16 %v933, %v932
      %v976 = vpack.c.b16 %v935, %v934
      %v977 = vpack.c.b16 %v937, %v936
      %v978 = vpack.c.b16 %v939, %v938
      %v979 = vpack.c.b16 %v941, %v940
      %v980 = vpack.c.b16 %v943, %v942
      %v981 = vpack.c.b16 %v945, %v944
      %v982 = vpack.c.b16 %v947, %v946
      %v983 = vpack.c.b16 %v949, %v948
      %v984 = vpack.c.b16 %v951, %v950
      %v985 = vpack.c.b16 %v953, %v952
      %v986 = vpack.c.b16 %v955, %v954
      %v987 = vpack.c.b16 %v957, %v956
      %v988 = vpack.c.b16 %v959, %v958
      %v989 = vpack.c.b16 %v961, %v960
      %v990 = vpack.c.b16 %v963, %v962
      %v991 = vpack.c.b16 %v965, %v964
      %v992 = vpack.c.b16 %v967, %v966
      %v993 = vpack.c.b16 %v969, %v968
      %1018 = vmatpush.bf16.msra.mxu0 %v977
      %1019 = vmatpush.bf16.msra.mxu0 %v976
      %1020 = vmatpush.bf16.msra.mxu0 %v975
      %1021 = vmatpush.bf16.msra.mxu0 %v974
      %1022 = vmatpush.bf16.msra.mxu0 %v973
      %1023 = vmatpush.bf16.msra.mxu0 %v972
      %1024 = vmatpush.bf16.msra.mxu0 %v971
      %1025 = vmatpush.bf16.msra.mxu0 %v970
      %1026 = vmatmul.bf16.gmra.mxu0 %v398
      %v1027 = vpop.f32.mrf.mxu0
      %v1028 = vadd.f32 0.0, %v1027
      %v1029 = vpop.f32.mrf.mxu0
      %v1030 = vadd.f32 0.0, %v1029
      %1031 = vmatmul.bf16.gmra.mxu0 %v399
      %v1032 = vpop.f32.mrf.mxu0
      %v1033 = vadd.f32 0.0, %v1032
      %v1034 = vpop.f32.mrf.mxu0
      %v1035 = vadd.f32 0.0, %v1034
      %1036 = vmatmul.bf16.gmra.mxu0 %v400
      %v1037 = vpop.f32.mrf.mxu0
      %v1038 = vadd.f32 0.0, %v1037
      %v1039 = vpop.f32.mrf.mxu0
      %v1040 = vadd.f32 0.0, %v1039
      %1041 = vmatmul.bf16.gmra.mxu0 %v401
      %v1042 = vpop.f32.mrf.mxu0
      %v1043 = vadd.f32 0.0, %v1042
      %v1044 = vpop.f32.mrf.mxu0
      %v1045 = vadd.f32 0.0, %v1044
      %1046 = vmatmul.bf16.gmra.mxu0 %v402
      %v1047 = vpop.f32.mrf.mxu0
      %v1048 = vadd.f32 0.0, %v1047
      %v1049 = vpop.f32.mrf.mxu0
      %v1050 = vadd.f32 0.0, %v1049
      %1051 = vmatmul.bf16.gmra.mxu0 %v403
      %v1052 = vpop.f32.mrf.mxu0
      %v1053 = vadd.f32 0.0, %v1052
      %v1054 = vpop.f32.mrf.mxu0
      %v1055 = vadd.f32 0.0, %v1054
      %1056 = vmatmul.bf16.gmra.mxu0 %v404
      %v1057 = vpop.f32.mrf.mxu0
      %v1058 = vadd.f32 0.0, %v1057
      %v1059 = vpop.f32.mrf.mxu0
      %v1060 = vadd.f32 0.0, %v1059
      %1061 = vmatmul.bf16.gmra.mxu0 %v405
      %v1062 = vpop.f32.mrf.mxu0
      %v1063 = vadd.f32 0.0, %v1062
      %v1064 = vpop.f32.mrf.mxu0
      %v1065 = vadd.f32 0.0, %v1064
      %1066 = vmatmul.bf16.gmra.mxu0 %v406
      %v1067 = vpop.f32.mrf.mxu0
      %v1068 = vadd.f32 0.0, %v1067
      %v1069 = vpop.f32.mrf.mxu0
      %v1070 = vadd.f32 0.0, %v1069
      %1071 = vmatmul.bf16.gmra.mxu0 %v407
      %v1072 = vpop.f32.mrf.mxu0
      %v1073 = vadd.f32 0.0, %v1072
      %v1074 = vpop.f32.mrf.mxu0
      %v1075 = vadd.f32 0.0, %v1074
      %1076 = vmatmul.bf16.gmra.mxu0 %v408
      %v1077 = vpop.f32.mrf.mxu0
      %v1078 = vadd.f32 0.0, %v1077
      %v1079 = vpop.f32.mrf.mxu0
      %v1080 = vadd.f32 0.0, %v1079
      %1081 = vmatmul.bf16.gmra.mxu0 %v409
      %v1082 = vpop.f32.mrf.mxu0
      %v1083 = vadd.f32 0.0, %v1082
      %v1084 = vpop.f32.mrf.mxu0
      %v1085 = vadd.f32 0.0, %v1084
      %1086 = vmatmul.bf16.gmra.mxu0 %v410
      %v1087 = vpop.f32.mrf.mxu0
      %v1088 = vadd.f32 0.0, %v1087
      %v1089 = vpop.f32.mrf.mxu0
      %v1090 = vadd.f32 0.0, %v1089
      %1091 = vmatmul.bf16.gmra.mxu0 %v411
      %v1092 = vpop.f32.mrf.mxu0
      %v1093 = vadd.f32 0.0, %v1092
      %v1094 = vpop.f32.mrf.mxu0
      %v1095 = vadd.f32 0.0, %v1094
      %1096 = vmatmul.bf16.gmra.mxu0 %v412
      %v1097 = vpop.f32.mrf.mxu0
      %v1098 = vadd.f32 0.0, %v1097
      %v1099 = vpop.f32.mrf.mxu0
      %v1100 = vadd.f32 0.0, %v1099
      %1101 = vmatmul.bf16.gmra.mxu0 %v803
      %v1102 = vpop.f32.mrf.mxu0
      %v1103 = vadd.f32 0.0, %v1102
      %v1104 = vpop.f32.mrf.mxu0
      %v1105 = vadd.f32 0.0, %v1104
      %1106 = vdwg.mxu0
      %1107 = vmatpush.bf16.msra.mxu0 %v985
      %1108 = vmatpush.bf16.msra.mxu0 %v984
      %1109 = vmatpush.bf16.msra.mxu0 %v983
      %1110 = vmatpush.bf16.msra.mxu0 %v982
      %1111 = vmatpush.bf16.msra.mxu0 %v981
      %1112 = vmatpush.bf16.msra.mxu0 %v980
      %1113 = vmatpush.bf16.msra.mxu0 %v979
      %1114 = vmatpush.bf16.msra.mxu0 %v978
      %1115 = vmatmul.bf16.gmra.mxu0 %v501
      %v1116 = vpop.f32.mrf.mxu0
      %v1117 = vadd.f32 %v1028, %v1116
      %v1118 = vpop.f32.mrf.mxu0
      %v1119 = vadd.f32 %v1030, %v1118
      %1120 = vmatmul.bf16.gmra.mxu0 %v513
      %v1121 = vpop.f32.mrf.mxu0
      %v1122 = vadd.f32 %v1033, %v1121
      %v1123 = vpop.f32.mrf.mxu0
      %v1124 = vadd.f32 %v1035, %v1123
      %1125 = vmatmul.bf16.gmra.mxu0 %v525
      %v1126 = vpop.f32.mrf.mxu0
      %v1127 = vadd.f32 %v1038, %v1126
      %v1128 = vpop.f32.mrf.mxu0
      %v1129 = vadd.f32 %v1040, %v1128
      %1130 = vmatmul.bf16.gmra.mxu0 %v537
      %v1131 = vpop.f32.mrf.mxu0
      %v1132 = vadd.f32 %v1043, %v1131
      %v1133 = vpop.f32.mrf.mxu0
      %v1134 = vadd.f32 %v1045, %v1133
      %1135 = vmatmul.bf16.gmra.mxu0 %v549
      %v1136 = vpop.f32.mrf.mxu0
      %v1137 = vadd.f32 %v1048, %v1136
      %v1138 = vpop.f32.mrf.mxu0
      %v1139 = vadd.f32 %v1050, %v1138
      %1140 = vmatmul.bf16.gmra.mxu0 %v561
      %v1141 = vpop.f32.mrf.mxu0
      %v1142 = vadd.f32 %v1053, %v1141
      %v1143 = vpop.f32.mrf.mxu0
      %v1144 = vadd.f32 %v1055, %v1143
      %1145 = vmatmul.bf16.gmra.mxu0 %v573
      %v1146 = vpop.f32.mrf.mxu0
      %v1147 = vadd.f32 %v1058, %v1146
      %v1148 = vpop.f32.mrf.mxu0
      %v1149 = vadd.f32 %v1060, %v1148
      %1150 = vmatmul.bf16.gmra.mxu0 %v585
      %v1151 = vpop.f32.mrf.mxu0
      %v1152 = vadd.f32 %v1063, %v1151
      %v1153 = vpop.f32.mrf.mxu0
      %v1154 = vadd.f32 %v1065, %v1153
      %1155 = vmatmul.bf16.gmra.mxu0 %v597
      %v1156 = vpop.f32.mrf.mxu0
      %v1157 = vadd.f32 %v1068, %v1156
      %v1158 = vpop.f32.mrf.mxu0
      %v1159 = vadd.f32 %v1070, %v1158
      %1160 = vmatmul.bf16.gmra.mxu0 %v609
      %v1161 = vpop.f32.mrf.mxu0
      %v1162 = vadd.f32 %v1073, %v1161
      %v1163 = vpop.f32.mrf.mxu0
      %v1164 = vadd.f32 %v1075, %v1163
      %1165 = vmatmul.bf16.gmra.mxu0 %v621
      %v1166 = vpop.f32.mrf.mxu0
      %v1167 = vadd.f32 %v1078, %v1166
      %v1168 = vpop.f32.mrf.mxu0
      %v1169 = vadd.f32 %v1080, %v1168
      %1170 = vmatmul.bf16.gmra.mxu0 %v633
      %v1171 = vpop.f32.mrf.mxu0
      %v1172 = vadd.f32 %v1083, %v1171
      %v1173 = vpop.f32.mrf.mxu0
      %v1174 = vadd.f32 %v1085, %v1173
      %1175 = vmatmul.bf16.gmra.mxu0 %v645
      %v1176 = vpop.f32.mrf.mxu0
      %v1177 = vadd.f32 %v1088, %v1176
      %v1178 = vpop.f32.mrf.mxu0
      %v1179 = vadd.f32 %v1090, %v1178
      %1180 = vmatmul.bf16.gmra.mxu0 %v657
      %v1181 = vpop.f32.mrf.mxu0
      %v1182 = vadd.f32 %v1093, %v1181
      %v1183 = vpop.f32.mrf.mxu0
      %v1184 = vadd.f32 %v1095, %v1183
      %1185 = vmatmul.bf16.gmra.mxu0 %v669
      %v1186 = vpop.f32.mrf.mxu0
      %v1187 = vadd.f32 %v1098, %v1186
      %v1188 = vpop.f32.mrf.mxu0
      %v1189 = vadd.f32 %v1100, %v1188
      %1190 = vmatmul.bf16.gmra.mxu0 %v819
      %v1191 = vpop.f32.mrf.mxu0
      %v1192 = vadd.f32 %v1103, %v1191
      %v1193 = vpop.f32.mrf.mxu0
      %v1194 = vadd.f32 %v1105, %v1193
      %1195 = vdwg.mxu0
      %1196 = vmatpush.bf16.msra.mxu0 %v993
      %1197 = vmatpush.bf16.msra.mxu0 %v992
      %1198 = vmatpush.bf16.msra.mxu0 %v991
      %1199 = vmatpush.bf16.msra.mxu0 %v990
      %1200 = vmatpush.bf16.msra.mxu0 %v989
      %1201 = vmatpush.bf16.msra.mxu0 %v988
      %1202 = vmatpush.bf16.msra.mxu0 %v987
      %1203 = vmatpush.bf16.msra.mxu0 %v986
      %1204 = vmatmul.bf16.gmra.mxu0 %v692
      %v1205 = vpop.f32.mrf.mxu0
      %v1206 = vadd.f32 %v1117, %v1205
      %v1207 = vpop.f32.mrf.mxu0
      %v1208 = vadd.f32 %v1119, %v1207
      %1209 = vmatmul.bf16.gmra.mxu0 %v695
      %v1210 = vpop.f32.mrf.mxu0
      %v1211 = vadd.f32 %v1122, %v1210
      %v1212 = vpop.f32.mrf.mxu0
      %v1213 = vadd.f32 %v1124, %v1212
      %1214 = vmatmul.bf16.gmra.mxu0 %v698
      %v1215 = vpop.f32.mrf.mxu0
      %v1216 = vadd.f32 %v1127, %v1215
      %v1217 = vpop.f32.mrf.mxu0
      %v1218 = vadd.f32 %v1129, %v1217
      %1219 = vmatmul.bf16.gmra.mxu0 %v701
      %v1220 = vpop.f32.mrf.mxu0
      %v1221 = vadd.f32 %v1132, %v1220
      %v1222 = vpop.f32.mrf.mxu0
      %v1223 = vadd.f32 %v1134, %v1222
      %1224 = vmatmul.bf16.gmra.mxu0 %v704
      %v1225 = vpop.f32.mrf.mxu0
      %v1226 = vadd.f32 %v1137, %v1225
      %v1227 = vpop.f32.mrf.mxu0
      %v1228 = vadd.f32 %v1139, %v1227
      %1229 = vmatmul.bf16.gmra.mxu0 %v707
      %v1230 = vpop.f32.mrf.mxu0
      %v1231 = vadd.f32 %v1142, %v1230
      %v1232 = vpop.f32.mrf.mxu0
      %v1233 = vadd.f32 %v1144, %v1232
      %1234 = vmatmul.bf16.gmra.mxu0 %v710
      %v1235 = vpop.f32.mrf.mxu0
      %v1236 = vadd.f32 %v1147, %v1235
      %v1237 = vpop.f32.mrf.mxu0
      %v1238 = vadd.f32 %v1149, %v1237
      %1239 = vmatmul.bf16.gmra.mxu0 %v713
      %v1240 = vpop.f32.mrf.mxu0
      %v1241 = vadd.f32 %v1152, %v1240
      %v1242 = vpop.f32.mrf.mxu0
      %v1243 = vadd.f32 %v1154, %v1242
      %1244 = vmatmul.bf16.gmra.mxu0 %v716
      %v1245 = vpop.f32.mrf.mxu0
      %v1246 = vadd.f32 %v1157, %v1245
      %v1247 = vpop.f32.mrf.mxu0
      %v1248 = vadd.f32 %v1159, %v1247
      %1249 = vmatmul.bf16.gmra.mxu0 %v719
      %v1250 = vpop.f32.mrf.mxu0
      %v1251 = vadd.f32 %v1162, %v1250
      %v1252 = vpop.f32.mrf.mxu0
      %v1253 = vadd.f32 %v1164, %v1252
      %1254 = vmatmul.bf16.gmra.mxu0 %v722
      %v1255 = vpop.f32.mrf.mxu0
      %v1256 = vadd.f32 %v1167, %v1255
      %v1257 = vpop.f32.mrf.mxu0
      %v1258 = vadd.f32 %v1169, %v1257
      %1259 = vmatmul.bf16.gmra.mxu0 %v725
      %v1260 = vpop.f32.mrf.mxu0
      %v1261 = vadd.f32 %v1172, %v1260
      %v1262 = vpop.f32.mrf.mxu0
      %v1263 = vadd.f32 %v1174, %v1262
      %1264 = vmatmul.bf16.gmra.mxu0 %v728
      %v1265 = vpop.f32.mrf.mxu0
      %v1266 = vadd.f32 %v1177, %v1265
      %v1267 = vpop.f32.mrf.mxu0
      %v1268 = vadd.f32 %v1179, %v1267
      %1269 = vmatmul.bf16.gmra.mxu0 %v731
      %v1270 = vpop.f32.mrf.mxu0
      %v1271 = vadd.f32 %v1182, %v1270
      %v1272 = vpop.f32.mrf.mxu0
      %v1273 = vadd.f32 %v1184, %v1272
      %1274 = vmatmul.bf16.gmra.mxu0 %v734
      %v1275 = vpop.f32.mrf.mxu0
      %v1276 = vadd.f32 %v1187, %v1275
      %v1277 = vpop.f32.mrf.mxu0
      %v1278 = vadd.f32 %v1189, %v1277
      %1279 = vmatmul.bf16.gmra.mxu0 %v823
      %v1280 = vpop.f32.mrf.mxu0
      %v1281 = vadd.f32 %v1192, %v1280
      %v1282 = vpop.f32.mrf.mxu0
      %v1283 = vadd.f32 %v1194, %v1282
      %1284 = vdwg.mxu0
      %v1333 = vunpack.c.l.b16 %v751
      %v1334 = vunpack.c.l.b16 %v752
      %v1335 = vunpack.c.l.b16 %v753
      %v1336 = vunpack.c.l.b16 %v754
      %v1337 = vunpack.c.l.b16 %v755
      %v1338 = vunpack.c.l.b16 %v756
      %v1339 = vunpack.c.l.b16 %v757
      %v1340 = vunpack.c.l.b16 %v758
      %v1341 = vunpack.c.l.b16 %v759
      %v1342 = vunpack.c.l.b16 %v760
      %v1343 = vunpack.c.l.b16 %v761
      %v1344 = vunpack.c.l.b16 %v762
      %v1345 = vunpack.c.l.b16 %v763
      %v1346 = vunpack.c.l.b16 %v764
      %v1347 = vunpack.c.l.b16 %v765
      %v1348 = vunpack.c.l.b16 %v766
      %v1349 = vunpack.c.l.b16 %v767
      %v1350 = vunpack.c.l.b16 %v768
      %v1351 = vunpack.c.l.b16 %v769
      %v1352 = vunpack.c.l.b16 %v770
      %v1353 = vunpack.c.l.b16 %v771
      %v1354 = vunpack.c.l.b16 %v772
      %v1355 = vunpack.c.l.b16 %v773
      %v1356 = vunpack.c.l.b16 %v774
      %v1357 = vunpack.c.l.b16 %v775
      %v1358 = vunpack.c.l.b16 %v776
      %v1359 = vunpack.c.l.b16 %v777
      %v1360 = vunpack.c.l.b16 %v778
      %v1361 = vunpack.c.l.b16 %v779
      %v1362 = vunpack.c.l.b16 %v780
      %v1363 = vunpack.c.l.b16 %v781
      %v1364 = vunpack.c.l.b16 %v782
      %v1365 = vunpack.c.l.b16 %v783
      %v1366 = vunpack.c.l.b16 %v784
      %v1367 = vunpack.c.l.b16 %v785
      %v1368 = vunpack.c.l.b16 %v786
      %v1369 = vunpack.c.l.b16 %v787
      %v1370 = vunpack.c.l.b16 %v788
      %v1371 = vunpack.c.l.b16 %v789
      %v1372 = vunpack.c.l.b16 %v790
      %v1373 = vunpack.c.l.b16 %v791
      %v1374 = vunpack.c.l.b16 %v792
      %v1375 = vunpack.c.l.b16 %v793
      %v1376 = vunpack.c.l.b16 %v794
      %v1377 = vunpack.c.l.b16 %v795
      %v1378 = vunpack.c.l.b16 %v796
      %v1379 = vunpack.c.l.b16 %v797
      %v1380 = vunpack.c.l.b16 %v798
      %v1381 = vpack.c.b16 %v1334, %v1333
      %v1382 = vpack.c.b16 %v1336, %v1335
      %v1383 = vpack.c.b16 %v1338, %v1337
      %v1384 = vpack.c.b16 %v1340, %v1339
      %v1385 = vpack.c.b16 %v1342, %v1341
      %v1386 = vpack.c.b16 %v1344, %v1343
      %v1387 = vpack.c.b16 %v1346, %v1345
      %v1388 = vpack.c.b16 %v1348, %v1347
      %v1389 = vpack.c.b16 %v1350, %v1349
      %v1390 = vpack.c.b16 %v1352, %v1351
      %v1391 = vpack.c.b16 %v1354, %v1353
      %v1392 = vpack.c.b16 %v1356, %v1355
      %v1393 = vpack.c.b16 %v1358, %v1357
      %v1394 = vpack.c.b16 %v1360, %v1359
      %v1395 = vpack.c.b16 %v1362, %v1361
      %v1396 = vpack.c.b16 %v1364, %v1363
      %v1397 = vpack.c.b16 %v1366, %v1365
      %v1398 = vpack.c.b16 %v1368, %v1367
      %v1399 = vpack.c.b16 %v1370, %v1369
      %v1400 = vpack.c.b16 %v1372, %v1371
      %v1401 = vpack.c.b16 %v1374, %v1373
      %v1402 = vpack.c.b16 %v1376, %v1375
      %v1403 = vpack.c.b16 %v1378, %v1377
      %v1404 = vpack.c.b16 %v1380, %v1379
      %1429 = vmatpush.bf16.msra.mxu0 %v1388
      %1430 = vmatpush.bf16.msra.mxu0 %v1387
      %1431 = vmatpush.bf16.msra.mxu0 %v1386
      %1432 = vmatpush.bf16.msra.mxu0 %v1385
      %1433 = vmatpush.bf16.msra.mxu0 %v1384
      %1434 = vmatpush.bf16.msra.mxu0 %v1383
      %1435 = vmatpush.bf16.msra.mxu0 %v1382
      %1436 = vmatpush.bf16.msra.mxu0 %v1381
      %1437 = vmatmul.bf16.gmra.mxu0 %v397
      %v1438 = vpop.f32.mrf.mxu0
      %v1439 = vadd.f32 %v1206, %v1438
      %v1440 = vpop.f32.mrf.mxu0
      %v1441 = vadd.f32 %v1208, %v1440
      %1442 = vmatmul.bf16.gmra.mxu0 %v398
      %v1443 = vpop.f32.mrf.mxu0
      %v1444 = vadd.f32 %v1211, %v1443
      %v1445 = vpop.f32.mrf.mxu0
      %v1446 = vadd.f32 %v1213, %v1445
      %1447 = vmatmul.bf16.gmra.mxu0 %v399
      %v1448 = vpop.f32.mrf.mxu0
      %v1449 = vadd.f32 %v1216, %v1448
      %v1450 = vpop.f32.mrf.mxu0
      %v1451 = vadd.f32 %v1218, %v1450
      %1452 = vmatmul.bf16.gmra.mxu0 %v400
      %v1453 = vpop.f32.mrf.mxu0
      %v1454 = vadd.f32 %v1221, %v1453
      %v1455 = vpop.f32.mrf.mxu0
      %v1456 = vadd.f32 %v1223, %v1455
      %1457 = vmatmul.bf16.gmra.mxu0 %v401
      %v1458 = vpop.f32.mrf.mxu0
      %v1459 = vadd.f32 %v1226, %v1458
      %v1460 = vpop.f32.mrf.mxu0
      %v1461 = vadd.f32 %v1228, %v1460
      %1462 = vmatmul.bf16.gmra.mxu0 %v402
      %v1463 = vpop.f32.mrf.mxu0
      %v1464 = vadd.f32 %v1231, %v1463
      %v1465 = vpop.f32.mrf.mxu0
      %v1466 = vadd.f32 %v1233, %v1465
      %1467 = vmatmul.bf16.gmra.mxu0 %v403
      %v1468 = vpop.f32.mrf.mxu0
      %v1469 = vadd.f32 %v1236, %v1468
      %v1470 = vpop.f32.mrf.mxu0
      %v1471 = vadd.f32 %v1238, %v1470
      %1472 = vmatmul.bf16.gmra.mxu0 %v404
      %v1473 = vpop.f32.mrf.mxu0
      %v1474 = vadd.f32 %v1241, %v1473
      %v1475 = vpop.f32.mrf.mxu0
      %v1476 = vadd.f32 %v1243, %v1475
      %1477 = vmatmul.bf16.gmra.mxu0 %v405
      %v1478 = vpop.f32.mrf.mxu0
      %v1479 = vadd.f32 %v1246, %v1478
      %v1480 = vpop.f32.mrf.mxu0
      %v1481 = vadd.f32 %v1248, %v1480
      %1482 = vmatmul.bf16.gmra.mxu0 %v406
      %v1483 = vpop.f32.mrf.mxu0
      %v1484 = vadd.f32 %v1251, %v1483
      %v1485 = vpop.f32.mrf.mxu0
      %v1486 = vadd.f32 %v1253, %v1485
      %1487 = vmatmul.bf16.gmra.mxu0 %v407
      %v1488 = vpop.f32.mrf.mxu0
      %v1489 = vadd.f32 %v1256, %v1488
      %v1490 = vpop.f32.mrf.mxu0
      %v1491 = vadd.f32 %v1258, %v1490
      %1492 = vmatmul.bf16.gmra.mxu0 %v408
      %v1493 = vpop.f32.mrf.mxu0
      %v1494 = vadd.f32 %v1261, %v1493
      %v1495 = vpop.f32.mrf.mxu0
      %v1496 = vadd.f32 %v1263, %v1495
      %1497 = vmatmul.bf16.gmra.mxu0 %v409
      %v1498 = vpop.f32.mrf.mxu0
      %v1499 = vadd.f32 %v1266, %v1498
      %v1500 = vpop.f32.mrf.mxu0
      %v1501 = vadd.f32 %v1268, %v1500
      %1502 = vmatmul.bf16.gmra.mxu0 %v410
      %v1503 = vpop.f32.mrf.mxu0
      %v1504 = vadd.f32 %v1271, %v1503
      %v1505 = vpop.f32.mrf.mxu0
      %v1506 = vadd.f32 %v1273, %v1505
      %1507 = vmatmul.bf16.gmra.mxu0 %v411
      %v1508 = vpop.f32.mrf.mxu0
      %v1509 = vadd.f32 %v1276, %v1508
      %v1510 = vpop.f32.mrf.mxu0
      %v1511 = vadd.f32 %v1278, %v1510
      %1512 = vmatmul.bf16.gmra.mxu0 %v412
      %v1513 = vpop.f32.mrf.mxu0
      %v1514 = vadd.f32 %v1281, %v1513
      %v1515 = vpop.f32.mrf.mxu0
      %v1516 = vadd.f32 %v1283, %v1515
      %1517 = vdwg.mxu0
      %1518 = vmatpush.bf16.msra.mxu0 %v1396
      %1519 = vmatpush.bf16.msra.mxu0 %v1395
      %1520 = vmatpush.bf16.msra.mxu0 %v1394
      %1521 = vmatpush.bf16.msra.mxu0 %v1393
      %1522 = vmatpush.bf16.msra.mxu0 %v1392
      %1523 = vmatpush.bf16.msra.mxu0 %v1391
      %1524 = vmatpush.bf16.msra.mxu0 %v1390
      %1525 = vmatpush.bf16.msra.mxu0 %v1389
      %1526 = vmatmul.bf16.gmra.mxu0 %v489
      %v1527 = vpop.f32.mrf.mxu0
      %v1528 = vadd.f32 %v1439, %v1527
      %v1529 = vpop.f32.mrf.mxu0
      %v1530 = vadd.f32 %v1441, %v1529
      %1531 = vmatmul.bf16.gmra.mxu0 %v501
      %v1532 = vpop.f32.mrf.mxu0
      %v1533 = vadd.f32 %v1444, %v1532
      %v1534 = vpop.f32.mrf.mxu0
      %v1535 = vadd.f32 %v1446, %v1534
      %1536 = vmatmul.bf16.gmra.mxu0 %v513
      %v1537 = vpop.f32.mrf.mxu0
      %v1538 = vadd.f32 %v1449, %v1537
      %v1539 = vpop.f32.mrf.mxu0
      %v1540 = vadd.f32 %v1451, %v1539
      %1541 = vmatmul.bf16.gmra.mxu0 %v525
      %v1542 = vpop.f32.mrf.mxu0
      %v1543 = vadd.f32 %v1454, %v1542
      %v1544 = vpop.f32.mrf.mxu0
      %v1545 = vadd.f32 %v1456, %v1544
      %1546 = vmatmul.bf16.gmra.mxu0 %v537
      %v1547 = vpop.f32.mrf.mxu0
      %v1548 = vadd.f32 %v1459, %v1547
      %v1549 = vpop.f32.mrf.mxu0
      %v1550 = vadd.f32 %v1461, %v1549
      %1551 = vmatmul.bf16.gmra.mxu0 %v549
      %v1552 = vpop.f32.mrf.mxu0
      %v1553 = vadd.f32 %v1464, %v1552
      %v1554 = vpop.f32.mrf.mxu0
      %v1555 = vadd.f32 %v1466, %v1554
      %1556 = vmatmul.bf16.gmra.mxu0 %v561
      %v1557 = vpop.f32.mrf.mxu0
      %v1558 = vadd.f32 %v1469, %v1557
      %v1559 = vpop.f32.mrf.mxu0
      %v1560 = vadd.f32 %v1471, %v1559
      %1561 = vmatmul.bf16.gmra.mxu0 %v573
      %v1562 = vpop.f32.mrf.mxu0
      %v1563 = vadd.f32 %v1474, %v1562
      %v1564 = vpop.f32.mrf.mxu0
      %v1565 = vadd.f32 %v1476, %v1564
      %1566 = vmatmul.bf16.gmra.mxu0 %v585
      %v1567 = vpop.f32.mrf.mxu0
      %v1568 = vadd.f32 %v1479, %v1567
      %v1569 = vpop.f32.mrf.mxu0
      %v1570 = vadd.f32 %v1481, %v1569
      %1571 = vmatmul.bf16.gmra.mxu0 %v597
      %v1572 = vpop.f32.mrf.mxu0
      %v1573 = vadd.f32 %v1484, %v1572
      %v1574 = vpop.f32.mrf.mxu0
      %v1575 = vadd.f32 %v1486, %v1574
      %1576 = vmatmul.bf16.gmra.mxu0 %v609
      %v1577 = vpop.f32.mrf.mxu0
      %v1578 = vadd.f32 %v1489, %v1577
      %v1579 = vpop.f32.mrf.mxu0
      %v1580 = vadd.f32 %v1491, %v1579
      %1581 = vmatmul.bf16.gmra.mxu0 %v621
      %v1582 = vpop.f32.mrf.mxu0
      %v1583 = vadd.f32 %v1494, %v1582
      %v1584 = vpop.f32.mrf.mxu0
      %v1585 = vadd.f32 %v1496, %v1584
      %1586 = vmatmul.bf16.gmra.mxu0 %v633
      %v1587 = vpop.f32.mrf.mxu0
      %v1588 = vadd.f32 %v1499, %v1587
      %v1589 = vpop.f32.mrf.mxu0
      %v1590 = vadd.f32 %v1501, %v1589
      %1591 = vmatmul.bf16.gmra.mxu0 %v645
      %v1592 = vpop.f32.mrf.mxu0
      %v1593 = vadd.f32 %v1504, %v1592
      %v1594 = vpop.f32.mrf.mxu0
      %v1595 = vadd.f32 %v1506, %v1594
      %1596 = vmatmul.bf16.gmra.mxu0 %v657
      %v1597 = vpop.f32.mrf.mxu0
      %v1598 = vadd.f32 %v1509, %v1597
      %v1599 = vpop.f32.mrf.mxu0
      %v1600 = vadd.f32 %v1511, %v1599
      %1601 = vmatmul.bf16.gmra.mxu0 %v669
      %v1602 = vpop.f32.mrf.mxu0
      %v1603 = vadd.f32 %v1514, %v1602
      %v1604 = vpop.f32.mrf.mxu0
      %v1605 = vadd.f32 %v1516, %v1604
      %1606 = vdwg.mxu0
      %1607 = vmatpush.bf16.msra.mxu0 %v1404
      %1608 = vmatpush.bf16.msra.mxu0 %v1403
      %1609 = vmatpush.bf16.msra.mxu0 %v1402
      %1610 = vmatpush.bf16.msra.mxu0 %v1401
      %1611 = vmatpush.bf16.msra.mxu0 %v1400
      %1612 = vmatpush.bf16.msra.mxu0 %v1399
      %1613 = vmatpush.bf16.msra.mxu0 %v1398
      %1614 = vmatpush.bf16.msra.mxu0 %v1397
      %1615 = vmatmul.bf16.gmra.mxu0 %v689
      %v1616 = vpop.f32.mrf.mxu0
      %v1617 = vadd.f32 %v1528, %v1616
      %v1618 = vpop.f32.mrf.mxu0
      %v1619 = vadd.f32 %v1530, %v1618
      %1620 = vmatmul.bf16.gmra.mxu0 %v692
      %v1621 = vpop.f32.mrf.mxu0
      %v1622 = vadd.f32 %v1533, %v1621
      %v1623 = vpop.f32.mrf.mxu0
      %v1624 = vadd.f32 %v1535, %v1623
      %1625 = vmatmul.bf16.gmra.mxu0 %v695
      %v1626 = vpop.f32.mrf.mxu0
      %v1627 = vadd.f32 %v1538, %v1626
      %v1628 = vpop.f32.mrf.mxu0
      %v1629 = vadd.f32 %v1540, %v1628
      %1630 = vmatmul.bf16.gmra.mxu0 %v698
      %v1631 = vpop.f32.mrf.mxu0
      %v1632 = vadd.f32 %v1543, %v1631
      %v1633 = vpop.f32.mrf.mxu0
      %v1634 = vadd.f32 %v1545, %v1633
      %1635 = vmatmul.bf16.gmra.mxu0 %v701
      %v1636 = vpop.f32.mrf.mxu0
      %v1637 = vadd.f32 %v1548, %v1636
      %v1638 = vpop.f32.mrf.mxu0
      %v1639 = vadd.f32 %v1550, %v1638
      %1640 = vmatmul.bf16.gmra.mxu0 %v704
      %v1641 = vpop.f32.mrf.mxu0
      %v1642 = vadd.f32 %v1553, %v1641
      %v1643 = vpop.f32.mrf.mxu0
      %v1644 = vadd.f32 %v1555, %v1643
      %1645 = vmatmul.bf16.gmra.mxu0 %v707
      %v1646 = vpop.f32.mrf.mxu0
      %v1647 = vadd.f32 %v1558, %v1646
      %v1648 = vpop.f32.mrf.mxu0
      %v1649 = vadd.f32 %v1560, %v1648
      %1650 = vmatmul.bf16.gmra.mxu0 %v710
      %v1651 = vpop.f32.mrf.mxu0
      %v1652 = vadd.f32 %v1563, %v1651
      %v1653 = vpop.f32.mrf.mxu0
      %v1654 = vadd.f32 %v1565, %v1653
      %1655 = vmatmul.bf16.gmra.mxu0 %v713
      %v1656 = vpop.f32.mrf.mxu0
      %v1657 = vadd.f32 %v1568, %v1656
      %v1658 = vpop.f32.mrf.mxu0
      %v1659 = vadd.f32 %v1570, %v1658
      %1660 = vmatmul.bf16.gmra.mxu0 %v716
      %v1661 = vpop.f32.mrf.mxu0
      %v1662 = vadd.f32 %v1573, %v1661
      %v1663 = vpop.f32.mrf.mxu0
      %v1664 = vadd.f32 %v1575, %v1663
      %1665 = vmatmul.bf16.gmra.mxu0 %v719
      %v1666 = vpop.f32.mrf.mxu0
      %v1667 = vadd.f32 %v1578, %v1666
      %v1668 = vpop.f32.mrf.mxu0
      %v1669 = vadd.f32 %v1580, %v1668
      %1670 = vmatmul.bf16.gmra.mxu0 %v722
      %v1671 = vpop.f32.mrf.mxu0
      %v1672 = vadd.f32 %v1583, %v1671
      %v1673 = vpop.f32.mrf.mxu0
      %v1674 = vadd.f32 %v1585, %v1673
      %1675 = vmatmul.bf16.gmra.mxu0 %v725
      %v1676 = vpop.f32.mrf.mxu0
      %v1677 = vadd.f32 %v1588, %v1676
      %v1678 = vpop.f32.mrf.mxu0
      %v1679 = vadd.f32 %v1590, %v1678
      %1680 = vmatmul.bf16.gmra.mxu0 %v728
      %v1681 = vpop.f32.mrf.mxu0
      %v1682 = vadd.f32 %v1593, %v1681
      %v1683 = vpop.f32.mrf.mxu0
      %v1684 = vadd.f32 %v1595, %v1683
      %1685 = vmatmul.bf16.gmra.mxu0 %v731
      %v1686 = vpop.f32.mrf.mxu0
      %v1687 = vadd.f32 %v1598, %v1686
      %v1688 = vpop.f32.mrf.mxu0
      %v1689 = vadd.f32 %v1600, %v1688
      %1690 = vmatmul.bf16.gmra.mxu0 %v734
      %v1691 = vpop.f32.mrf.mxu0
      %v1692 = vadd.f32 %v1603, %v1691
      %v1693 = vpop.f32.mrf.mxu0
      %v1694 = vadd.f32 %v1605, %v1693
      %1695 = vdwg.mxu0
      %v1698 = vunpack.c.l.b16 %v330
      %v1699 = vunpack.c.l.b16 %v331
      %v1700 = vpack.c.b16 %v1699, %v1698
      %v1703 = vunpack.c.l.b16 %v332
      %v1704 = vpack.c.b16 %v1703, %v1703
      %v1706 = vshrl.u32 %v1700, 16
      %v1708 = vshll.u32 %v1700, 16
      %v1710 = vrot.slane %v1708, 1
      %v1711 = vor.u32 %v1706, %v1710
      %v1713 = vshll.u32 %v1704, 16
      %v1715 = vrot.slane %v1713, 1
      %v1716 = vsel %vm477, %v1711, %v1715
      %v1718 = vrot.slane %v1700, 1
      %v1719 = vrot.slane %v1704, 1
      %v1720 = vsel %vm686, %v1718, %v1719
      %s1722 = scalar_lea.vmem %s1, 384
      %v1723 = vld [vmem:[%s1722] sm:$0xf]
      %v1724 = vld [vmem:[%s1722 + $0x4] sm:$0xf]
      %v1725 = vld [vmem:[%s1722 + $0x8] sm:$0xf]
      %v1726 = vld [vmem:[%s1722 + $0xc] sm:$0xf]
      %v1727 = vld [vmem:[%s1722 + $0x10] sm:$0xf]
      %v1728 = vld [vmem:[%s1722 + $0x14] sm:$0xf]
      %v1729 = vld [vmem:[%s1722 + $0x18] sm:$0xf]
      %v1730 = vld [vmem:[%s1722 + $0x1c] sm:$0xf]
      %v1731 = vld [vmem:[%s1722 + $0x20] sm:$0xf]
      %v1732 = vld [vmem:[%s1722 + $0x24] sm:$0xf]
      %v1733 = vld [vmem:[%s1722 + $0x28] sm:$0xf]
      %v1734 = vld [vmem:[%s1722 + $0x2c] sm:$0xf]
      %v1735 = vld [vmem:[%s1722 + $0x30] sm:$0xf]
      %v1736 = vld [vmem:[%s1722 + $0x34] sm:$0xf]
      %v1737 = vld [vmem:[%s1722 + $0x38] sm:$0xf]
      %v1738 = vld [vmem:[%s1722 + $0x3c] sm:$0xf]
      %v1739 = vld [vmem:[%s1722 + $0x40] sm:$0xf]
      %v1740 = vld [vmem:[%s1722 + $0x44] sm:$0xf]
      %v1741 = vld [vmem:[%s1722 + $0x48] sm:$0xf]
      %v1742 = vld [vmem:[%s1722 + $0x4c] sm:$0xf]
      %v1743 = vld [vmem:[%s1722 + $0x50] sm:$0xf]
      %v1744 = vld [vmem:[%s1722 + $0x54] sm:$0xf]
      %v1745 = vld [vmem:[%s1722 + $0x58] sm:$0xf]
      %v1746 = vld [vmem:[%s1722 + $0x5c] sm:$0xf]
      %v1747 = vld [vmem:[%s1722 + $0x60] sm:$0xf]
      %v1748 = vld [vmem:[%s1722 + $0x64] sm:$0xf]
      %v1749 = vld [vmem:[%s1722 + $0x68] sm:$0xf]
      %v1750 = vld [vmem:[%s1722 + $0x6c] sm:$0xf]
      %v1751 = vld [vmem:[%s1722 + $0x70] sm:$0xf]
      %v1752 = vld [vmem:[%s1722 + $0x74] sm:$0xf]
      %v1753 = vld [vmem:[%s1722 + $0x78] sm:$0xf]
      %v1754 = vld [vmem:[%s1722 + $0x7c] sm:$0xf]
      %v1755 = vld [vmem:[%s1722 + $0x80] sm:$0xf]
      %v1756 = vld [vmem:[%s1722 + $0x84] sm:$0xf]
      %v1757 = vld [vmem:[%s1722 + $0x88] sm:$0xf]
      %v1758 = vld [vmem:[%s1722 + $0x8c] sm:$0xf]
      %v1759 = vld [vmem:[%s1722 + $0x90] sm:$0xf]
      %v1760 = vld [vmem:[%s1722 + $0x94] sm:$0xf]
      %v1761 = vld [vmem:[%s1722 + $0x98] sm:$0xf]
      %v1762 = vld [vmem:[%s1722 + $0x9c] sm:$0xf]
      %v1763 = vld [vmem:[%s1722 + $0xa0] sm:$0xf]
      %v1764 = vld [vmem:[%s1722 + $0xa4] sm:$0xf]
      %v1765 = vld [vmem:[%s1722 + $0xa8] sm:$0xf]
      %v1766 = vld [vmem:[%s1722 + $0xac] sm:$0xf]
      %v1767 = vld [vmem:[%s1722 + $0xb0] sm:$0xf]
      %v1768 = vld [vmem:[%s1722 + $0xb4] sm:$0xf]
      %v1769 = vld [vmem:[%s1722 + $0xb8] sm:$0xf]
      %v1770 = vld [vmem:[%s1722 + $0xbc] sm:$0xf]
      %v1819 = vunpack.c.l.b16 %v1723
      %v1820 = vunpack.c.l.b16 %v1724
      %v1821 = vunpack.c.l.b16 %v1725
      %v1822 = vunpack.c.l.b16 %v1726
      %v1823 = vunpack.c.l.b16 %v1727
      %v1824 = vunpack.c.l.b16 %v1728
      %v1825 = vunpack.c.l.b16 %v1729
      %v1826 = vunpack.c.l.b16 %v1730
      %v1827 = vunpack.c.l.b16 %v1731
      %v1828 = vunpack.c.l.b16 %v1732
      %v1829 = vunpack.c.l.b16 %v1733
      %v1830 = vunpack.c.l.b16 %v1734
      %v1831 = vunpack.c.l.b16 %v1735
      %v1832 = vunpack.c.l.b16 %v1736
      %v1833 = vunpack.c.l.b16 %v1737
      %v1834 = vunpack.c.l.b16 %v1738
      %v1835 = vunpack.c.l.b16 %v1739
      %v1836 = vunpack.c.l.b16 %v1740
      %v1837 = vunpack.c.l.b16 %v1741
      %v1838 = vunpack.c.l.b16 %v1742
      %v1839 = vunpack.c.l.b16 %v1743
      %v1840 = vunpack.c.l.b16 %v1744
      %v1841 = vunpack.c.l.b16 %v1745
      %v1842 = vunpack.c.l.b16 %v1746
      %v1843 = vunpack.c.l.b16 %v1747
      %v1844 = vunpack.c.l.b16 %v1748
      %v1845 = vunpack.c.l.b16 %v1749
      %v1846 = vunpack.c.l.b16 %v1750
      %v1847 = vunpack.c.l.b16 %v1751
      %v1848 = vunpack.c.l.b16 %v1752
      %v1849 = vunpack.c.l.b16 %v1753
      %v1850 = vunpack.c.l.b16 %v1754
      %v1851 = vunpack.c.l.b16 %v1755
      %v1852 = vunpack.c.l.b16 %v1756
      %v1853 = vunpack.c.l.b16 %v1757
      %v1854 = vunpack.c.l.b16 %v1758
      %v1855 = vunpack.c.l.b16 %v1759
      %v1856 = vunpack.c.l.b16 %v1760
      %v1857 = vunpack.c.l.b16 %v1761
      %v1858 = vunpack.c.l.b16 %v1762
      %v1859 = vunpack.c.l.b16 %v1763
      %v1860 = vunpack.c.l.b16 %v1764
      %v1861 = vunpack.c.l.b16 %v1765
      %v1862 = vunpack.c.l.b16 %v1766
      %v1863 = vunpack.c.l.b16 %v1767
      %v1864 = vunpack.c.l.b16 %v1768
      %v1865 = vunpack.c.l.b16 %v1769
      %v1866 = vunpack.c.l.b16 %v1770
      %v1867 = vpack.c.b16 %v1820, %v1819
      %v1868 = vpack.c.b16 %v1822, %v1821
      %v1869 = vpack.c.b16 %v1824, %v1823
      %v1870 = vpack.c.b16 %v1826, %v1825
      %v1871 = vpack.c.b16 %v1828, %v1827
      %v1872 = vpack.c.b16 %v1830, %v1829
      %v1873 = vpack.c.b16 %v1832, %v1831
      %v1874 = vpack.c.b16 %v1834, %v1833
      %v1875 = vpack.c.b16 %v1836, %v1835
      %v1876 = vpack.c.b16 %v1838, %v1837
      %v1877 = vpack.c.b16 %v1840, %v1839
      %v1878 = vpack.c.b16 %v1842, %v1841
      %v1879 = vpack.c.b16 %v1844, %v1843
      %v1880 = vpack.c.b16 %v1846, %v1845
      %v1881 = vpack.c.b16 %v1848, %v1847
      %v1882 = vpack.c.b16 %v1850, %v1849
      %v1883 = vpack.c.b16 %v1852, %v1851
      %v1884 = vpack.c.b16 %v1854, %v1853
      %v1885 = vpack.c.b16 %v1856, %v1855
      %v1886 = vpack.c.b16 %v1858, %v1857
      %v1887 = vpack.c.b16 %v1860, %v1859
      %v1888 = vpack.c.b16 %v1862, %v1861
      %v1889 = vpack.c.b16 %v1864, %v1863
      %v1890 = vpack.c.b16 %v1866, %v1865
      %1915 = vmatpush.bf16.msra.mxu0 %v1874
      %1916 = vmatpush.bf16.msra.mxu0 %v1873
      %1917 = vmatpush.bf16.msra.mxu0 %v1872
      %1918 = vmatpush.bf16.msra.mxu0 %v1871
      %1919 = vmatpush.bf16.msra.mxu0 %v1870
      %1920 = vmatpush.bf16.msra.mxu0 %v1869
      %1921 = vmatpush.bf16.msra.mxu0 %v1868
      %1922 = vmatpush.bf16.msra.mxu0 %v1867
      %1923 = vmatmul.bf16.gmra.mxu0 %v399
      %v1924 = vpop.f32.mrf.mxu0
      %v1925 = vadd.f32 0.0, %v1924
      %v1926 = vpop.f32.mrf.mxu0
      %v1927 = vadd.f32 0.0, %v1926
      %1928 = vmatmul.bf16.gmra.mxu0 %v400
      %v1929 = vpop.f32.mrf.mxu0
      %v1930 = vadd.f32 0.0, %v1929
      %v1931 = vpop.f32.mrf.mxu0
      %v1932 = vadd.f32 0.0, %v1931
      %1933 = vmatmul.bf16.gmra.mxu0 %v401
      %v1934 = vpop.f32.mrf.mxu0
      %v1935 = vadd.f32 0.0, %v1934
      %v1936 = vpop.f32.mrf.mxu0
      %v1937 = vadd.f32 0.0, %v1936
      %1938 = vmatmul.bf16.gmra.mxu0 %v402
      %v1939 = vpop.f32.mrf.mxu0
      %v1940 = vadd.f32 0.0, %v1939
      %v1941 = vpop.f32.mrf.mxu0
      %v1942 = vadd.f32 0.0, %v1941
      %1943 = vmatmul.bf16.gmra.mxu0 %v403
      %v1944 = vpop.f32.mrf.mxu0
      %v1945 = vadd.f32 0.0, %v1944
      %v1946 = vpop.f32.mrf.mxu0
      %v1947 = vadd.f32 0.0, %v1946
      %1948 = vmatmul.bf16.gmra.mxu0 %v404
      %v1949 = vpop.f32.mrf.mxu0
      %v1950 = vadd.f32 0.0, %v1949
      %v1951 = vpop.f32.mrf.mxu0
      %v1952 = vadd.f32 0.0, %v1951
      %1953 = vmatmul.bf16.gmra.mxu0 %v405
      %v1954 = vpop.f32.mrf.mxu0
      %v1955 = vadd.f32 0.0, %v1954
      %v1956 = vpop.f32.mrf.mxu0
      %v1957 = vadd.f32 0.0, %v1956
      %1958 = vmatmul.bf16.gmra.mxu0 %v406
      %v1959 = vpop.f32.mrf.mxu0
      %v1960 = vadd.f32 0.0, %v1959
      %v1961 = vpop.f32.mrf.mxu0
      %v1962 = vadd.f32 0.0, %v1961
      %1963 = vmatmul.bf16.gmra.mxu0 %v407
      %v1964 = vpop.f32.mrf.mxu0
      %v1965 = vadd.f32 0.0, %v1964
      %v1966 = vpop.f32.mrf.mxu0
      %v1967 = vadd.f32 0.0, %v1966
      %1968 = vmatmul.bf16.gmra.mxu0 %v408
      %v1969 = vpop.f32.mrf.mxu0
      %v1970 = vadd.f32 0.0, %v1969
      %v1971 = vpop.f32.mrf.mxu0
      %v1972 = vadd.f32 0.0, %v1971
      %1973 = vmatmul.bf16.gmra.mxu0 %v409
      %v1974 = vpop.f32.mrf.mxu0
      %v1975 = vadd.f32 0.0, %v1974
      %v1976 = vpop.f32.mrf.mxu0
      %v1977 = vadd.f32 0.0, %v1976
      %1978 = vmatmul.bf16.gmra.mxu0 %v410
      %v1979 = vpop.f32.mrf.mxu0
      %v1980 = vadd.f32 0.0, %v1979
      %v1981 = vpop.f32.mrf.mxu0
      %v1982 = vadd.f32 0.0, %v1981
      %1983 = vmatmul.bf16.gmra.mxu0 %v411
      %v1984 = vpop.f32.mrf.mxu0
      %v1985 = vadd.f32 0.0, %v1984
      %v1986 = vpop.f32.mrf.mxu0
      %v1987 = vadd.f32 0.0, %v1986
      %1988 = vmatmul.bf16.gmra.mxu0 %v412
      %v1989 = vpop.f32.mrf.mxu0
      %v1990 = vadd.f32 0.0, %v1989
      %v1991 = vpop.f32.mrf.mxu0
      %v1992 = vadd.f32 0.0, %v1991
      %1993 = vmatmul.bf16.gmra.mxu0 %v803
      %v1994 = vpop.f32.mrf.mxu0
      %v1995 = vadd.f32 0.0, %v1994
      %v1996 = vpop.f32.mrf.mxu0
      %v1997 = vadd.f32 0.0, %v1996
      %1998 = vmatmul.bf16.gmra.mxu0 %v1700
      %v1999 = vpop.f32.mrf.mxu0
      %v2000 = vadd.f32 0.0, %v1999
      %v2001 = vpop.f32.mrf.mxu0
      %v2002 = vadd.f32 0.0, %v2001
      %2003 = vdwg.mxu0
      %2004 = vmatpush.bf16.msra.mxu0 %v1882
      %2005 = vmatpush.bf16.msra.mxu0 %v1881
      %2006 = vmatpush.bf16.msra.mxu0 %v1880
      %2007 = vmatpush.bf16.msra.mxu0 %v1879
      %2008 = vmatpush.bf16.msra.mxu0 %v1878
      %2009 = vmatpush.bf16.msra.mxu0 %v1877
      %2010 = vmatpush.bf16.msra.mxu0 %v1876
      %2011 = vmatpush.bf16.msra.mxu0 %v1875
      %2012 = vmatmul.bf16.gmra.mxu0 %v513
      %v2013 = vpop.f32.mrf.mxu0
      %v2014 = vadd.f32 %v1925, %v2013
      %v2015 = vpop.f32.mrf.mxu0
      %v2016 = vadd.f32 %v1927, %v2015
      %2017 = vmatmul.bf16.gmra.mxu0 %v525
      %v2018 = vpop.f32.mrf.mxu0
      %v2019 = vadd.f32 %v1930, %v2018
      %v2020 = vpop.f32.mrf.mxu0
      %v2021 = vadd.f32 %v1932, %v2020
      %2022 = vmatmul.bf16.gmra.mxu0 %v537
      %v2023 = vpop.f32.mrf.mxu0
      %v2024 = vadd.f32 %v1935, %v2023
      %v2025 = vpop.f32.mrf.mxu0
      %v2026 = vadd.f32 %v1937, %v2025
      %2027 = vmatmul.bf16.gmra.mxu0 %v549
      %v2028 = vpop.f32.mrf.mxu0
      %v2029 = vadd.f32 %v1940, %v2028
      %v2030 = vpop.f32.mrf.mxu0
      %v2031 = vadd.f32 %v1942, %v2030
      %2032 = vmatmul.bf16.gmra.mxu0 %v561
      %v2033 = vpop.f32.mrf.mxu0
      %v2034 = vadd.f32 %v1945, %v2033
      %v2035 = vpop.f32.mrf.mxu0
      %v2036 = vadd.f32 %v1947, %v2035
      %2037 = vmatmul.bf16.gmra.mxu0 %v573
      %v2038 = vpop.f32.mrf.mxu0
      %v2039 = vadd.f32 %v1950, %v2038
      %v2040 = vpop.f32.mrf.mxu0
      %v2041 = vadd.f32 %v1952, %v2040
      %2042 = vmatmul.bf16.gmra.mxu0 %v585
      %v2043 = vpop.f32.mrf.mxu0
      %v2044 = vadd.f32 %v1955, %v2043
      %v2045 = vpop.f32.mrf.mxu0
      %v2046 = vadd.f32 %v1957, %v2045
      %2047 = vmatmul.bf16.gmra.mxu0 %v597
      %v2048 = vpop.f32.mrf.mxu0
      %v2049 = vadd.f32 %v1960, %v2048
      %v2050 = vpop.f32.mrf.mxu0
      %v2051 = vadd.f32 %v1962, %v2050
      %2052 = vmatmul.bf16.gmra.mxu0 %v609
      %v2053 = vpop.f32.mrf.mxu0
      %v2054 = vadd.f32 %v1965, %v2053
      %v2055 = vpop.f32.mrf.mxu0
      %v2056 = vadd.f32 %v1967, %v2055
      %2057 = vmatmul.bf16.gmra.mxu0 %v621
      %v2058 = vpop.f32.mrf.mxu0
      %v2059 = vadd.f32 %v1970, %v2058
      %v2060 = vpop.f32.mrf.mxu0
      %v2061 = vadd.f32 %v1972, %v2060
      %2062 = vmatmul.bf16.gmra.mxu0 %v633
      %v2063 = vpop.f32.mrf.mxu0
      %v2064 = vadd.f32 %v1975, %v2063
      %v2065 = vpop.f32.mrf.mxu0
      %v2066 = vadd.f32 %v1977, %v2065
      %2067 = vmatmul.bf16.gmra.mxu0 %v645
      %v2068 = vpop.f32.mrf.mxu0
      %v2069 = vadd.f32 %v1980, %v2068
      %v2070 = vpop.f32.mrf.mxu0
      %v2071 = vadd.f32 %v1982, %v2070
      %2072 = vmatmul.bf16.gmra.mxu0 %v657
      %v2073 = vpop.f32.mrf.mxu0
      %v2074 = vadd.f32 %v1985, %v2073
      %v2075 = vpop.f32.mrf.mxu0
      %v2076 = vadd.f32 %v1987, %v2075
      %2077 = vmatmul.bf16.gmra.mxu0 %v669
      %v2078 = vpop.f32.mrf.mxu0
      %v2079 = vadd.f32 %v1990, %v2078
      %v2080 = vpop.f32.mrf.mxu0
      %v2081 = vadd.f32 %v1992, %v2080
      %2082 = vmatmul.bf16.gmra.mxu0 %v819
      %v2083 = vpop.f32.mrf.mxu0
      %v2084 = vadd.f32 %v1995, %v2083
      %v2085 = vpop.f32.mrf.mxu0
      %v2086 = vadd.f32 %v1997, %v2085
      %2087 = vmatmul.bf16.gmra.mxu0 %v1716
      %v2088 = vpop.f32.mrf.mxu0
      %v2089 = vadd.f32 %v2000, %v2088
      %v2090 = vpop.f32.mrf.mxu0
      %v2091 = vadd.f32 %v2002, %v2090
      %2092 = vdwg.mxu0
      %2093 = vmatpush.bf16.msra.mxu0 %v1890
      %2094 = vmatpush.bf16.msra.mxu0 %v1889
      %2095 = vmatpush.bf16.msra.mxu0 %v1888
      %2096 = vmatpush.bf16.msra.mxu0 %v1887
      %2097 = vmatpush.bf16.msra.mxu0 %v1886
      %2098 = vmatpush.bf16.msra.mxu0 %v1885
      %2099 = vmatpush.bf16.msra.mxu0 %v1884
      %2100 = vmatpush.bf16.msra.mxu0 %v1883
      %2101 = vmatmul.bf16.gmra.mxu0 %v695
      %v2102 = vpop.f32.mrf.mxu0
      %v2103 = vadd.f32 %v2014, %v2102
      %v2104 = vpop.f32.mrf.mxu0
      %v2105 = vadd.f32 %v2016, %v2104
      %2106 = vmatmul.bf16.gmra.mxu0 %v698
      %v2107 = vpop.f32.mrf.mxu0
      %v2108 = vadd.f32 %v2019, %v2107
      %v2109 = vpop.f32.mrf.mxu0
      %v2110 = vadd.f32 %v2021, %v2109
      %2111 = vmatmul.bf16.gmra.mxu0 %v701
      %v2112 = vpop.f32.mrf.mxu0
      %v2113 = vadd.f32 %v2024, %v2112
      %v2114 = vpop.f32.mrf.mxu0
      %v2115 = vadd.f32 %v2026, %v2114
      %2116 = vmatmul.bf16.gmra.mxu0 %v704
      %v2117 = vpop.f32.mrf.mxu0
      %v2118 = vadd.f32 %v2029, %v2117
      %v2119 = vpop.f32.mrf.mxu0
      %v2120 = vadd.f32 %v2031, %v2119
      %2121 = vmatmul.bf16.gmra.mxu0 %v707
      %v2122 = vpop.f32.mrf.mxu0
      %v2123 = vadd.f32 %v2034, %v2122
      %v2124 = vpop.f32.mrf.mxu0
      %v2125 = vadd.f32 %v2036, %v2124
      %2126 = vmatmul.bf16.gmra.mxu0 %v710
      %v2127 = vpop.f32.mrf.mxu0
      %v2128 = vadd.f32 %v2039, %v2127
      %v2129 = vpop.f32.mrf.mxu0
      %v2130 = vadd.f32 %v2041, %v2129
      %2131 = vmatmul.bf16.gmra.mxu0 %v713
      %v2132 = vpop.f32.mrf.mxu0
      %v2133 = vadd.f32 %v2044, %v2132
      %v2134 = vpop.f32.mrf.mxu0
      %v2135 = vadd.f32 %v2046, %v2134
      %2136 = vmatmul.bf16.gmra.mxu0 %v716
      %v2137 = vpop.f32.mrf.mxu0
      %v2138 = vadd.f32 %v2049, %v2137
      %v2139 = vpop.f32.mrf.mxu0
      %v2140 = vadd.f32 %v2051, %v2139
      %2141 = vmatmul.bf16.gmra.mxu0 %v719
      %v2142 = vpop.f32.mrf.mxu0
      %v2143 = vadd.f32 %v2054, %v2142
      %v2144 = vpop.f32.mrf.mxu0
      %v2145 = vadd.f32 %v2056, %v2144
      %2146 = vmatmul.bf16.gmra.mxu0 %v722
      %v2147 = vpop.f32.mrf.mxu0
      %v2148 = vadd.f32 %v2059, %v2147
      %v2149 = vpop.f32.mrf.mxu0
      %v2150 = vadd.f32 %v2061, %v2149
      %2151 = vmatmul.bf16.gmra.mxu0 %v725
      %v2152 = vpop.f32.mrf.mxu0
      %v2153 = vadd.f32 %v2064, %v2152
      %v2154 = vpop.f32.mrf.mxu0
      %v2155 = vadd.f32 %v2066, %v2154
      %2156 = vmatmul.bf16.gmra.mxu0 %v728
      %v2157 = vpop.f32.mrf.mxu0
      %v2158 = vadd.f32 %v2069, %v2157
      %v2159 = vpop.f32.mrf.mxu0
      %v2160 = vadd.f32 %v2071, %v2159
      %2161 = vmatmul.bf16.gmra.mxu0 %v731
      %v2162 = vpop.f32.mrf.mxu0
      %v2163 = vadd.f32 %v2074, %v2162
      %v2164 = vpop.f32.mrf.mxu0
      %v2165 = vadd.f32 %v2076, %v2164
      %2166 = vmatmul.bf16.gmra.mxu0 %v734
      %v2167 = vpop.f32.mrf.mxu0
      %v2168 = vadd.f32 %v2079, %v2167
      %v2169 = vpop.f32.mrf.mxu0
      %v2170 = vadd.f32 %v2081, %v2169
      %2171 = vmatmul.bf16.gmra.mxu0 %v823
      %v2172 = vpop.f32.mrf.mxu0
      %v2173 = vadd.f32 %v2084, %v2172
      %v2174 = vpop.f32.mrf.mxu0
      %v2175 = vadd.f32 %v2086, %v2174
      %2176 = vmatmul.bf16.gmra.mxu0 %v1720
      %v2177 = vpop.f32.mrf.mxu0
      %v2178 = vadd.f32 %v2089, %v2177
      %v2179 = vpop.f32.mrf.mxu0
      %v2180 = vadd.f32 %v2091, %v2179
      %2181 = vdwg.mxu0
      %v2182 = vadd.f32 %v1617, %v2103
      %v2183 = vadd.f32 %v1619, %v2105
      %v2184 = vadd.f32 %v1622, %v2108
      %v2185 = vadd.f32 %v1624, %v2110
      %v2186 = vadd.f32 %v1627, %v2113
      %v2187 = vadd.f32 %v1629, %v2115
      %v2188 = vadd.f32 %v1632, %v2118
      %v2189 = vadd.f32 %v1634, %v2120
      %v2190 = vadd.f32 %v1637, %v2123
      %v2191 = vadd.f32 %v1639, %v2125
      %v2192 = vadd.f32 %v1642, %v2128
      %v2193 = vadd.f32 %v1644, %v2130
      %v2194 = vadd.f32 %v1647, %v2133
      %v2195 = vadd.f32 %v1649, %v2135
      %v2196 = vadd.f32 %v1652, %v2138
      %v2197 = vadd.f32 %v1654, %v2140
      %v2198 = vadd.f32 %v1657, %v2143
      %v2199 = vadd.f32 %v1659, %v2145
      %v2200 = vadd.f32 %v1662, %v2148
      %v2201 = vadd.f32 %v1664, %v2150
      %v2202 = vadd.f32 %v1667, %v2153
      %v2203 = vadd.f32 %v1669, %v2155
      %v2204 = vadd.f32 %v1672, %v2158
      %v2205 = vadd.f32 %v1674, %v2160
      %v2206 = vadd.f32 %v1677, %v2163
      %v2207 = vadd.f32 %v1679, %v2165
      %v2208 = vadd.f32 %v1682, %v2168
      %v2209 = vadd.f32 %v1684, %v2170
      %v2210 = vadd.f32 %v1687, %v2173
      %v2211 = vadd.f32 %v1689, %v2175
      %v2212 = vadd.f32 %v1692, %v2178
      %v2213 = vadd.f32 %v1694, %v2180
      %v2214 = vld [vmem:[%s2] sm:$0x1]
      %v2216 = vperm.slane %v2214, 0
      %v2218 = vmul.f32 %v2182, %v2216
      %v2219 = vmul.f32 %v2183, %v2216
      %v2220 = vmul.f32 %v2184, %v2216
      %v2221 = vmul.f32 %v2185, %v2216
      %v2222 = vmul.f32 %v2186, %v2216
      %v2223 = vmul.f32 %v2187, %v2216
      %v2224 = vmul.f32 %v2188, %v2216
      %v2225 = vmul.f32 %v2189, %v2216
      %v2226 = vmul.f32 %v2190, %v2216
      %v2227 = vmul.f32 %v2191, %v2216
      %v2228 = vmul.f32 %v2192, %v2216
      %v2229 = vmul.f32 %v2193, %v2216
      %v2230 = vmul.f32 %v2194, %v2216
      %v2231 = vmul.f32 %v2195, %v2216
      %v2232 = vmul.f32 %v2196, %v2216
      %v2233 = vmul.f32 %v2197, %v2216
      %v2234 = vmul.f32 %v2198, %v2216
      %v2235 = vmul.f32 %v2199, %v2216
      %v2236 = vmul.f32 %v2200, %v2216
      %v2237 = vmul.f32 %v2201, %v2216
      %v2238 = vmul.f32 %v2202, %v2216
      %v2239 = vmul.f32 %v2203, %v2216
      %v2240 = vmul.f32 %v2204, %v2216
      %v2241 = vmul.f32 %v2205, %v2216
      %v2242 = vmul.f32 %v2206, %v2216
      %v2243 = vmul.f32 %v2207, %v2216
      %v2244 = vmul.f32 %v2208, %v2216
      %v2245 = vmul.f32 %v2209, %v2216
      %v2246 = vmul.f32 %v2210, %v2216
      %v2247 = vmul.f32 %v2211, %v2216
      %v2248 = vmul.f32 %v2212, %v2216
      %v2249 = vmul.f32 %v2213, %v2216
      %v2250 = vld [vmem:[%s3] sm:$0x1]
      %v2252 = vperm.slane %v2250, 0
      %v2254 = vadd.f32 %v2218, %v2252
      %v2255 = vadd.f32 %v2219, %v2252
      %v2256 = vadd.f32 %v2220, %v2252
      %v2257 = vadd.f32 %v2221, %v2252
      %v2258 = vadd.f32 %v2222, %v2252
      %v2259 = vadd.f32 %v2223, %v2252
      %v2260 = vadd.f32 %v2224, %v2252
      %v2261 = vadd.f32 %v2225, %v2252
      %v2262 = vadd.f32 %v2226, %v2252
      %v2263 = vadd.f32 %v2227, %v2252
      %v2264 = vadd.f32 %v2228, %v2252
      %v2265 = vadd.f32 %v2229, %v2252
      %v2266 = vadd.f32 %v2230, %v2252
      %v2267 = vadd.f32 %v2231, %v2252
      %v2268 = vadd.f32 %v2232, %v2252
      %v2269 = vadd.f32 %v2233, %v2252
      %v2270 = vadd.f32 %v2234, %v2252
      %v2271 = vadd.f32 %v2235, %v2252
      %v2272 = vadd.f32 %v2236, %v2252
      %v2273 = vadd.f32 %v2237, %v2252
      %v2274 = vadd.f32 %v2238, %v2252
      %v2275 = vadd.f32 %v2239, %v2252
      %v2276 = vadd.f32 %v2240, %v2252
      %v2277 = vadd.f32 %v2241, %v2252
      %v2278 = vadd.f32 %v2242, %v2252
      %v2279 = vadd.f32 %v2243, %v2252
      %v2280 = vadd.f32 %v2244, %v2252
      %v2281 = vadd.f32 %v2245, %v2252
      %v2282 = vadd.f32 %v2246, %v2252
      %v2283 = vadd.f32 %v2247, %v2252
      %v2284 = vadd.f32 %v2248, %v2252
      %v2285 = vadd.f32 %v2249, %v2252
      %v2286 = vmax.f32 %v2254, 0.0
      %v2287 = vmax.f32 %v2255, 0.0
      %v2288 = vmax.f32 %v2256, 0.0
      %v2289 = vmax.f32 %v2257, 0.0
      %v2290 = vmax.f32 %v2258, 0.0
      %v2291 = vmax.f32 %v2259, 0.0
      %v2292 = vmax.f32 %v2260, 0.0
      %v2293 = vmax.f32 %v2261, 0.0
      %v2294 = vmax.f32 %v2262, 0.0
      %v2295 = vmax.f32 %v2263, 0.0
      %v2296 = vmax.f32 %v2264, 0.0
      %v2297 = vmax.f32 %v2265, 0.0
      %v2298 = vmax.f32 %v2266, 0.0
      %v2299 = vmax.f32 %v2267, 0.0
      %v2300 = vmax.f32 %v2268, 0.0
      %v2301 = vmax.f32 %v2269, 0.0
      %v2302 = vmax.f32 %v2270, 0.0
      %v2303 = vmax.f32 %v2271, 0.0
      %v2304 = vmax.f32 %v2272, 0.0
      %v2305 = vmax.f32 %v2273, 0.0
      %v2306 = vmax.f32 %v2274, 0.0
      %v2307 = vmax.f32 %v2275, 0.0
      %v2308 = vmax.f32 %v2276, 0.0
      %v2309 = vmax.f32 %v2277, 0.0
      %v2310 = vmax.f32 %v2278, 0.0
      %v2311 = vmax.f32 %v2279, 0.0
      %v2312 = vmax.f32 %v2280, 0.0
      %v2313 = vmax.f32 %v2281, 0.0
      %v2314 = vmax.f32 %v2282, 0.0
      %v2315 = vmax.f32 %v2283, 0.0
      %v2316 = vmax.f32 %v2284, 0.0
      %v2317 = vmax.f32 %v2285, 0.0
      %2318 = vst [vmem:[#allocation2] sm:$0xff] 0.0
      %2319 = vst [vmem:[#allocation2 + $0x8] sm:$0xff] 0.0
      %2320 = vst [vmem:[#allocation2 + $0x10] sm:$0x3] 0.0
      %s2321 = scalar_lea.vmem [#allocation2], 408
      %2322 = vst [vmem:[%s2321] sm:$0xff] 0.0
      %2323 = vst [vmem:[%s2321 + $0x8] sm:$0xff] 0.0
      %2324 = vst [vmem:[%s2321 + $0x10] sm:$0x3] 0.0
      %2325 = vst [vmem:[#allocation2] sm:$0x1] 0.0
      %2326 = vst [vmem:[#allocation2 + $0x18] sm:$0x1] 0.0
      %2327 = vst [vmem:[#allocation2 + $0x30] sm:$0x1] 0.0
      %2328 = vst [vmem:[#allocation2 + $0x48] sm:$0x1] 0.0
      %2329 = vst [vmem:[#allocation2 + $0x60] sm:$0x1] 0.0
      %2330 = vst [vmem:[#allocation2 + $0x78] sm:$0x1] 0.0
      %2331 = vst [vmem:[#allocation2 + $0x90] sm:$0x1] 0.0
      %2332 = vst [vmem:[#allocation2 + $0xa8] sm:$0x1] 0.0
      %2333 = vst [vmem:[#allocation2 + $0xc0] sm:$0x1] 0.0
      %2334 = vst [vmem:[#allocation2 + $0xd8] sm:$0x1] 0.0
      %2335 = vst [vmem:[#allocation2 + $0xf0] sm:$0x1] 0.0
      %2336 = vst [vmem:[#allocation2 + $0x108] sm:$0x1] 0.0
      %2337 = vst [vmem:[#allocation2 + $0x120] sm:$0x1] 0.0
      %2338 = vst [vmem:[#allocation2 + $0x138] sm:$0x1] 0.0
      %2339 = vst [vmem:[#allocation2 + $0x150] sm:$0x1] 0.0
      %2340 = vst [vmem:[#allocation2 + $0x168] sm:$0x1] 0.0
      %2341 = vst [vmem:[#allocation2 + $0x180] sm:$0x1] 0.0
      %2342 = vst [vmem:[#allocation2 + $0x198] sm:$0x1] 0.0
      %2343 = vst [vmem:[#allocation2 + $0x11] sm:$0x1] 0.0
      %2344 = vst [vmem:[#allocation2 + $0x29] sm:$0x1] 0.0
      %2345 = vst [vmem:[#allocation2 + $0x41] sm:$0x1] 0.0
      %2346 = vst [vmem:[#allocation2 + $0x59] sm:$0x1] 0.0
      %2347 = vst [vmem:[#allocation2 + $0x71] sm:$0x1] 0.0
      %2348 = vst [vmem:[#allocation2 + $0x89] sm:$0x1] 0.0
      %2349 = vst [vmem:[#allocation2 + $0xa1] sm:$0x1] 0.0
      %2350 = vst [vmem:[#allocation2 + $0xb9] sm:$0x1] 0.0
      %2351 = vst [vmem:[#allocation2 + $0xd1] sm:$0x1] 0.0
      %2352 = vst [vmem:[#allocation2 + $0xe9] sm:$0x1] 0.0
      %2353 = vst [vmem:[#allocation2 + $0x101] sm:$0x1] 0.0
      %2354 = vst [vmem:[#allocation2 + $0x119] sm:$0x1] 0.0
      %2355 = vst [vmem:[#allocation2 + $0x131] sm:$0x1] 0.0
      %2356 = vst [vmem:[#allocation2 + $0x149] sm:$0x1] 0.0
      %2357 = vst [vmem:[#allocation2 + $0x161] sm:$0x1] 0.0
      %2358 = vst [vmem:[#allocation2 + $0x179] sm:$0x1] 0.0
      %2359 = vst [vmem:[#allocation2 + $0x191] sm:$0x1] 0.0
      %2360 = vst [vmem:[#allocation2 + $0x1a9] sm:$0x1] 0.0
      %s2361 = scalar_lea.vmem [#allocation2], 24
      %2362 = vst [vmem:[%s2361 + $0x1] sm:$0xff] %v2286
      %2363 = vst [vmem:[%s2361 + $0x9] sm:$0xff] %v2287
      %2364 = vst [vmem:[%s2361 + $0x19] sm:$0xff] %v2288
      %2365 = vst [vmem:[%s2361 + $0x21] sm:$0xff] %v2289
      %2366 = vst [vmem:[%s2361 + $0x31] sm:$0xff] %v2290
      %2367 = vst [vmem:[%s2361 + $0x39] sm:$0xff] %v2291
      %2368 = vst [vmem:[%s2361 + $0x49] sm:$0xff] %v2292
      %2369 = vst [vmem:[%s2361 + $0x51] sm:$0xff] %v2293
      %2370 = vst [vmem:[%s2361 + $0x61] sm:$0xff] %v2294
      %2371 = vst [vmem:[%s2361 + $0x69] sm:$0xff] %v2295
      %2372 = vst [vmem:[%s2361 + $0x79] sm:$0xff] %v2296
      %2373 = vst [vmem:[%s2361 + $0x81] sm:$0xff] %v2297
      %2374 = vst [vmem:[%s2361 + $0x91] sm:$0xff] %v2298
      %2375 = vst [vmem:[%s2361 + $0x99] sm:$0xff] %v2299
      %2376 = vst [vmem:[%s2361 + $0xa9] sm:$0xff] %v2300
      %2377 = vst [vmem:[%s2361 + $0xb1] sm:$0xff] %v2301
      %2378 = vst [vmem:[%s2361 + $0xc1] sm:$0xff] %v2302
      %2379 = vst [vmem:[%s2361 + $0xc9] sm:$0xff] %v2303
      %2380 = vst [vmem:[%s2361 + $0xd9] sm:$0xff] %v2304
      %2381 = vst [vmem:[%s2361 + $0xe1] sm:$0xff] %v2305
      %2382 = vst [vmem:[%s2361 + $0xf1] sm:$0xff] %v2306
      %2383 = vst [vmem:[%s2361 + $0xf9] sm:$0xff] %v2307
      %2384 = vst [vmem:[%s2361 + $0x109] sm:$0xff] %v2308
      %2385 = vst [vmem:[%s2361 + $0x111] sm:$0xff] %v2309
      %2386 = vst [vmem:[%s2361 + $0x121] sm:$0xff] %v2310
      %2387 = vst [vmem:[%s2361 + $0x129] sm:$0xff] %v2311
      %2388 = vst [vmem:[%s2361 + $0x139] sm:$0xff] %v2312
      %2389 = vst [vmem:[%s2361 + $0x141] sm:$0xff] %v2313
      %2390 = vst [vmem:[%s2361 + $0x151] sm:$0xff] %v2314
      %2391 = vst [vmem:[%s2361 + $0x159] sm:$0xff] %v2315
      %2392 = vst [vmem:[%s2361 + $0x169] sm:$0xff] %v2316
      %2393 = vst [vmem:[%s2361 + $0x171] sm:$0xff] %v2317
      %v2394 = vld [vmem:[#allocation2] sm:$0xff]
      %v2395 = vld [vmem:[#allocation2 + $0x8] sm:$0xff]
      %v2396 = vld [vmem:[#allocation2 + $0x10] sm:$0x3]
      %v2397 = vld [vmem:[#allocation2 + $0x18] sm:$0xff]
      %v2398 = vld [vmem:[#allocation2 + $0x20] sm:$0xff]
      %v2399 = vld [vmem:[#allocation2 + $0x28] sm:$0x3]
      %v2400 = vld [vmem:[#allocation2 + $0x30] sm:$0xff]
      %v2401 = vld [vmem:[#allocation2 + $0x38] sm:$0xff]
      %v2402 = vld [vmem:[#allocation2 + $0x40] sm:$0x3]
      %v2403 = vld [vmem:[#allocation2 + $0x48] sm:$0xff]
      %v2404 = vld [vmem:[#allocation2 + $0x50] sm:$0xff]
      %v2405 = vld [vmem:[#allocation2 + $0x58] sm:$0x3]
      %v2406 = vld [vmem:[#allocation2 + $0x60] sm:$0xff]
      %v2407 = vld [vmem:[#allocation2 + $0x68] sm:$0xff]
      %v2408 = vld [vmem:[#allocation2 + $0x70] sm:$0x3]
      %v2409 = vld [vmem:[#allocation2 + $0x78] sm:$0xff]
      %v2410 = vld [vmem:[#allocation2 + $0x80] sm:$0xff]
      %v2411 = vld [vmem:[#allocation2 + $0x88] sm:$0x3]
      %v2412 = vld [vmem:[#allocation2 + $0x90] sm:$0xff]
      %v2413 = vld [vmem:[#allocation2 + $0x98] sm:$0xff]
      %v2414 = vld [vmem:[#allocation2 + $0xa0] sm:$0x3]
      %v2415 = vld [vmem:[#allocation2 + $0xa8] sm:$0xff]
      %v2416 = vld [vmem:[#allocation2 + $0xb0] sm:$0xff]
      %v2417 = vld [vmem:[#allocation2 + $0xb8] sm:$0x3]
      %v2418 = vld [vmem:[#allocation2 + $0xc0] sm:$0xff]
      %v2419 = vld [vmem:[#allocation2 + $0xc8] sm:$0xff]
      %v2420 = vld [vmem:[#allocation2 + $0xd0] sm:$0x3]
      %v2421 = vld [vmem:[#allocation2 + $0xd8] sm:$0xff]
      %v2422 = vld [vmem:[#allocation2 + $0xe0] sm:$0xff]
      %v2423 = vld [vmem:[#allocation2 + $0xe8] sm:$0x3]
      %v2424 = vld [vmem:[#allocation2 + $0xf0] sm:$0xff]
      %v2425 = vld [vmem:[#allocation2 + $0xf8] sm:$0xff]
      %v2426 = vld [vmem:[#allocation2 + $0x100] sm:$0x3]
      %v2427 = vld [vmem:[#allocation2 + $0x108] sm:$0xff]
      %v2428 = vld [vmem:[#allocation2 + $0x110] sm:$0xff]
      %v2429 = vld [vmem:[#allocation2 + $0x118] sm:$0x3]
      %v2430 = vld [vmem:[#allocation2 + $0x120] sm:$0xff]
      %v2431 = vld [vmem:[#allocation2 + $0x128] sm:$0xff]
      %v2432 = vld [vmem:[#allocation2 + $0x130] sm:$0x3]
      %v2433 = vld [vmem:[#allocation2 + $0x138] sm:$0xff]
      %v2434 = vld [vmem:[#allocation2 + $0x140] sm:$0xff]
      %v2435 = vld [vmem:[#allocation2 + $0x148] sm:$0x3]
      %v2436 = vld [vmem:[#allocation2 + $0x150] sm:$0xff]
      %v2437 = vld [vmem:[#allocation2 + $0x158] sm:$0xff]
      %v2438 = vld [vmem:[#allocation2 + $0x160] sm:$0x3]
      %v2439 = vld [vmem:[#allocation2 + $0x168] sm:$0xff]
      %v2440 = vld [vmem:[#allocation2 + $0x170] sm:$0xff]
      %v2441 = vld [vmem:[#allocation2 + $0x178] sm:$0x3]
      %v2442 = vld [vmem:[#allocation2 + $0x180] sm:$0xff]
      %v2443 = vld [vmem:[#allocation2 + $0x188] sm:$0xff]
      %v2444 = vld [vmem:[#allocation2 + $0x190] sm:$0x3]
      %v2445 = vld [vmem:[#allocation2 + $0x198] sm:$0xff]
      %v2446 = vld [vmem:[#allocation2 + $0x1a0] sm:$0xff]
      %v2447 = vld [vmem:[#allocation2 + $0x1a8] sm:$0x3]
      %v2448 = vpack.c.bf16 %v2394, %v2394
      %v2449 = vpack.c.bf16 %v2395, %v2395
      %v2450 = vpack.c.bf16 %v2396, %v2396
      %v2451 = vpack.c.bf16 %v2397, %v2397
      %v2452 = vpack.c.bf16 %v2398, %v2398
      %v2453 = vpack.c.bf16 %v2399, %v2399
      %v2454 = vpack.c.bf16 %v2400, %v2400
      %v2455 = vpack.c.bf16 %v2401, %v2401
      %v2456 = vpack.c.bf16 %v2402, %v2402
      %v2457 = vpack.c.bf16 %v2403, %v2403
      %v2458 = vpack.c.bf16 %v2404, %v2404
      %v2459 = vpack.c.bf16 %v2405, %v2405
      %v2460 = vpack.c.bf16 %v2406, %v2406
      %v2461 = vpack.c.bf16 %v2407, %v2407
      %v2462 = vpack.c.bf16 %v2408, %v2408
      %v2463 = vpack.c.bf16 %v2409, %v2409
      %v2464 = vpack.c.bf16 %v2410, %v2410
      %v2465 = vpack.c.bf16 %v2411, %v2411
      %v2466 = vpack.c.bf16 %v2412, %v2412
      %v2467 = vpack.c.bf16 %v2413, %v2413
      %v2468 = vpack.c.bf16 %v2414, %v2414
      %v2469 = vpack.c.bf16 %v2415, %v2415
      %v2470 = vpack.c.bf16 %v2416, %v2416
      %v2471 = vpack.c.bf16 %v2417, %v2417
      %v2472 = vpack.c.bf16 %v2418, %v2418
      %v2473 = vpack.c.bf16 %v2419, %v2419
      %v2474 = vpack.c.bf16 %v2420, %v2420
      %v2475 = vpack.c.bf16 %v2421, %v2421
      %v2476 = vpack.c.bf16 %v2422, %v2422
      %v2477 = vpack.c.bf16 %v2423, %v2423
      %v2478 = vpack.c.bf16 %v2424, %v2424
      %v2479 = vpack.c.bf16 %v2425, %v2425
      %v2480 = vpack.c.bf16 %v2426, %v2426
      %v2481 = vpack.c.bf16 %v2427, %v2427
      %v2482 = vpack.c.bf16 %v2428, %v2428
      %v2483 = vpack.c.bf16 %v2429, %v2429
      %v2484 = vpack.c.bf16 %v2430, %v2430
      %v2485 = vpack.c.bf16 %v2431, %v2431
      %v2486 = vpack.c.bf16 %v2432, %v2432
      %v2487 = vpack.c.bf16 %v2433, %v2433
      %v2488 = vpack.c.bf16 %v2434, %v2434
      %v2489 = vpack.c.bf16 %v2435, %v2435
      %v2490 = vpack.c.bf16 %v2436, %v2436
      %v2491 = vpack.c.bf16 %v2437, %v2437
      %v2492 = vpack.c.bf16 %v2438, %v2438
      %v2493 = vpack.c.bf16 %v2439, %v2439
      %v2494 = vpack.c.bf16 %v2440, %v2440
      %v2495 = vpack.c.bf16 %v2441, %v2441
      %v2496 = vpack.c.bf16 %v2442, %v2442
      %v2497 = vpack.c.bf16 %v2443, %v2443
      %v2498 = vpack.c.bf16 %v2444, %v2444
      %v2499 = vpack.c.bf16 %v2445, %v2445
      %v2500 = vpack.c.bf16 %v2446, %v2446
      %v2501 = vpack.c.bf16 %v2447, %v2447
      %v2534 = vunpack.c.l.b16 %v2448
      %v2535 = vunpack.c.l.b16 %v2449
      %v2536 = vunpack.c.l.b16 %v2451
      %v2537 = vunpack.c.l.b16 %v2452
      %v2538 = vunpack.c.l.b16 %v2454
      %v2539 = vunpack.c.l.b16 %v2455
      %v2540 = vunpack.c.l.b16 %v2457
      %v2541 = vunpack.c.l.b16 %v2458
      %v2542 = vunpack.c.l.b16 %v2460
      %v2543 = vunpack.c.l.b16 %v2461
      %v2544 = vunpack.c.l.b16 %v2463
      %v2545 = vunpack.c.l.b16 %v2464
      %v2546 = vunpack.c.l.b16 %v2466
      %v2547 = vunpack.c.l.b16 %v2467
      %v2548 = vunpack.c.l.b16 %v2469
      %v2549 = vunpack.c.l.b16 %v2470
      %v2550 = vunpack.c.l.b16 %v2472
      %v2551 = vunpack.c.l.b16 %v2473
      %v2552 = vunpack.c.l.b16 %v2475
      %v2553 = vunpack.c.l.b16 %v2476
      %v2554 = vunpack.c.l.b16 %v2478
      %v2555 = vunpack.c.l.b16 %v2479
      %v2556 = vunpack.c.l.b16 %v2481
      %v2557 = vunpack.c.l.b16 %v2482
      %v2558 = vunpack.c.l.b16 %v2484
      %v2559 = vunpack.c.l.b16 %v2485
      %v2560 = vunpack.c.l.b16 %v2487
      %v2561 = vunpack.c.l.b16 %v2488
      %v2562 = vunpack.c.l.b16 %v2490
      %v2563 = vunpack.c.l.b16 %v2491
      %v2564 = vunpack.c.l.b16 %v2493
      %v2565 = vunpack.c.l.b16 %v2494
      %v2566 = vpack.c.b16 %v2535, %v2534
      %v2567 = vpack.c.b16 %v2537, %v2536
      %v2568 = vpack.c.b16 %v2539, %v2538
      %v2569 = vpack.c.b16 %v2541, %v2540
      %v2570 = vpack.c.b16 %v2543, %v2542
      %v2571 = vpack.c.b16 %v2545, %v2544
      %v2572 = vpack.c.b16 %v2547, %v2546
      %v2573 = vpack.c.b16 %v2549, %v2548
      %v2574 = vpack.c.b16 %v2551, %v2550
      %v2575 = vpack.c.b16 %v2553, %v2552
      %v2576 = vpack.c.b16 %v2555, %v2554
      %v2577 = vpack.c.b16 %v2557, %v2556
      %v2578 = vpack.c.b16 %v2559, %v2558
      %v2579 = vpack.c.b16 %v2561, %v2560
      %v2580 = vpack.c.b16 %v2563, %v2562
      %v2581 = vpack.c.b16 %v2565, %v2564
      %v2614 = vunpack.c.l.b16 %v2450
      %v2615 = vunpack.c.l.b16 %v2453
      %v2616 = vunpack.c.l.b16 %v2456
      %v2617 = vunpack.c.l.b16 %v2459
      %v2618 = vunpack.c.l.b16 %v2462
      %v2619 = vunpack.c.l.b16 %v2465
      %v2620 = vunpack.c.l.b16 %v2468
      %v2621 = vunpack.c.l.b16 %v2471
      %v2622 = vunpack.c.l.b16 %v2474
      %v2623 = vunpack.c.l.b16 %v2477
      %v2624 = vunpack.c.l.b16 %v2480
      %v2625 = vunpack.c.l.b16 %v2483
      %v2626 = vunpack.c.l.b16 %v2486
      %v2627 = vunpack.c.l.b16 %v2489
      %v2628 = vunpack.c.l.b16 %v2492
      %v2629 = vunpack.c.l.b16 %v2495
      %v2630 = vpack.c.b16 %v2614, %v2614
      %v2631 = vpack.c.b16 %v2615, %v2615
      %v2632 = vpack.c.b16 %v2616, %v2616
      %v2633 = vpack.c.b16 %v2617, %v2617
      %v2634 = vpack.c.b16 %v2618, %v2618
      %v2635 = vpack.c.b16 %v2619, %v2619
      %v2636 = vpack.c.b16 %v2620, %v2620
      %v2637 = vpack.c.b16 %v2621, %v2621
      %v2638 = vpack.c.b16 %v2622, %v2622
      %v2639 = vpack.c.b16 %v2623, %v2623
      %v2640 = vpack.c.b16 %v2624, %v2624
      %v2641 = vpack.c.b16 %v2625, %v2625
      %v2642 = vpack.c.b16 %v2626, %v2626
      %v2643 = vpack.c.b16 %v2627, %v2627
      %v2644 = vpack.c.b16 %v2628, %v2628
      %v2645 = vpack.c.b16 %v2629, %v2629
      %v2647 = vshrl.u32 %v2566, 16
      %v2649 = vshll.u32 %v2566, 16
      %v2651 = vrot.slane %v2649, 1
      %v2652 = vor.u32 %v2647, %v2651
      %v2654 = vshll.u32 %v2630, 16
      %v2656 = vrot.slane %v2654, 1
      %v2657 = vsel %vm477, %v2652, %v2656
      %v2659 = vshrl.u32 %v2567, 16
      %v2661 = vshll.u32 %v2567, 16
      %v2663 = vrot.slane %v2661, 1
      %v2664 = vor.u32 %v2659, %v2663
      %v2666 = vshll.u32 %v2631, 16
      %v2668 = vrot.slane %v2666, 1
      %v2669 = vsel %vm477, %v2664, %v2668
      %v2671 = vshrl.u32 %v2568, 16
      %v2673 = vshll.u32 %v2568, 16
      %v2675 = vrot.slane %v2673, 1
      %v2676 = vor.u32 %v2671, %v2675
      %v2678 = vshll.u32 %v2632, 16
      %v2680 = vrot.slane %v2678, 1
      %v2681 = vsel %vm477, %v2676, %v2680
      %v2683 = vshrl.u32 %v2569, 16
      %v2685 = vshll.u32 %v2569, 16
      %v2687 = vrot.slane %v2685, 1
      %v2688 = vor.u32 %v2683, %v2687
      %v2690 = vshll.u32 %v2633, 16
      %v2692 = vrot.slane %v2690, 1
      %v2693 = vsel %vm477, %v2688, %v2692
      %v2695 = vshrl.u32 %v2570, 16
      %v2697 = vshll.u32 %v2570, 16
      %v2699 = vrot.slane %v2697, 1
      %v2700 = vor.u32 %v2695, %v2699
      %v2702 = vshll.u32 %v2634, 16
      %v2704 = vrot.slane %v2702, 1
      %v2705 = vsel %vm477, %v2700, %v2704
      %v2707 = vshrl.u32 %v2571, 16
      %v2709 = vshll.u32 %v2571, 16
      %v2711 = vrot.slane %v2709, 1
      %v2712 = vor.u32 %v2707, %v2711
      %v2714 = vshll.u32 %v2635, 16
      %v2716 = vrot.slane %v2714, 1
      %v2717 = vsel %vm477, %v2712, %v2716
      %v2719 = vshrl.u32 %v2572, 16
      %v2721 = vshll.u32 %v2572, 16
      %v2723 = vrot.slane %v2721, 1
      %v2724 = vor.u32 %v2719, %v2723
      %v2726 = vshll.u32 %v2636, 16
      %v2728 = vrot.slane %v2726, 1
      %v2729 = vsel %vm477, %v2724, %v2728
      %v2731 = vshrl.u32 %v2573, 16
      %v2733 = vshll.u32 %v2573, 16
      %v2735 = vrot.slane %v2733, 1
      %v2736 = vor.u32 %v2731, %v2735
      %v2738 = vshll.u32 %v2637, 16
      %v2740 = vrot.slane %v2738, 1
      %v2741 = vsel %vm477, %v2736, %v2740
      %v2743 = vshrl.u32 %v2574, 16
      %v2745 = vshll.u32 %v2574, 16
      %v2747 = vrot.slane %v2745, 1
      %v2748 = vor.u32 %v2743, %v2747
      %v2750 = vshll.u32 %v2638, 16
      %v2752 = vrot.slane %v2750, 1
      %v2753 = vsel %vm477, %v2748, %v2752
      %v2755 = vshrl.u32 %v2575, 16
      %v2757 = vshll.u32 %v2575, 16
      %v2759 = vrot.slane %v2757, 1
      %v2760 = vor.u32 %v2755, %v2759
      %v2762 = vshll.u32 %v2639, 16
      %v2764 = vrot.slane %v2762, 1
      %v2765 = vsel %vm477, %v2760, %v2764
      %v2767 = vshrl.u32 %v2576, 16
      %v2769 = vshll.u32 %v2576, 16
      %v2771 = vrot.slane %v2769, 1
      %v2772 = vor.u32 %v2767, %v2771
      %v2774 = vshll.u32 %v2640, 16
      %v2776 = vrot.slane %v2774, 1
      %v2777 = vsel %vm477, %v2772, %v2776
      %v2779 = vshrl.u32 %v2577, 16
      %v2781 = vshll.u32 %v2577, 16
      %v2783 = vrot.slane %v2781, 1
      %v2784 = vor.u32 %v2779, %v2783
      %v2786 = vshll.u32 %v2641, 16
      %v2788 = vrot.slane %v2786, 1
      %v2789 = vsel %vm477, %v2784, %v2788
      %v2791 = vshrl.u32 %v2578, 16
      %v2793 = vshll.u32 %v2578, 16
      %v2795 = vrot.slane %v2793, 1
      %v2796 = vor.u32 %v2791, %v2795
      %v2798 = vshll.u32 %v2642, 16
      %v2800 = vrot.slane %v2798, 1
      %v2801 = vsel %vm477, %v2796, %v2800
      %v2803 = vshrl.u32 %v2579, 16
      %v2805 = vshll.u32 %v2579, 16
      %v2807 = vrot.slane %v2805, 1
      %v2808 = vor.u32 %v2803, %v2807
      %v2810 = vshll.u32 %v2643, 16
      %v2812 = vrot.slane %v2810, 1
      %v2813 = vsel %vm477, %v2808, %v2812
      %v2815 = vshrl.u32 %v2580, 16
      %v2817 = vshll.u32 %v2580, 16
      %v2819 = vrot.slane %v2817, 1
      %v2820 = vor.u32 %v2815, %v2819
      %v2822 = vshll.u32 %v2644, 16
      %v2824 = vrot.slane %v2822, 1
      %v2825 = vsel %vm477, %v2820, %v2824
      %v2827 = vshrl.u32 %v2581, 16
      %v2829 = vshll.u32 %v2581, 16
      %v2831 = vrot.slane %v2829, 1
      %v2832 = vor.u32 %v2827, %v2831
      %v2834 = vshll.u32 %v2645, 16
      %v2836 = vrot.slane %v2834, 1
      %v2837 = vsel %vm477, %v2832, %v2836
      %v2854 = vrot.slane %v2566, 1
      %v2855 = vrot.slane %v2630, 1
      %v2856 = vsel %vm686, %v2854, %v2855
      %v2857 = vrot.slane %v2567, 1
      %v2858 = vrot.slane %v2631, 1
      %v2859 = vsel %vm686, %v2857, %v2858
      %v2860 = vrot.slane %v2568, 1
      %v2861 = vrot.slane %v2632, 1
      %v2862 = vsel %vm686, %v2860, %v2861
      %v2863 = vrot.slane %v2569, 1
      %v2864 = vrot.slane %v2633, 1
      %v2865 = vsel %vm686, %v2863, %v2864
      %v2866 = vrot.slane %v2570, 1
      %v2867 = vrot.slane %v2634, 1
      %v2868 = vsel %vm686, %v2866, %v2867
      %v2869 = vrot.slane %v2571, 1
      %v2870 = vrot.slane %v2635, 1
      %v2871 = vsel %vm686, %v2869, %v2870
      %v2872 = vrot.slane %v2572, 1
      %v2873 = vrot.slane %v2636, 1
      %v2874 = vsel %vm686, %v2872, %v2873
      %v2875 = vrot.slane %v2573, 1
      %v2876 = vrot.slane %v2637, 1
      %v2877 = vsel %vm686, %v2875, %v2876
      %v2878 = vrot.slane %v2574, 1
      %v2879 = vrot.slane %v2638, 1
      %v2880 = vsel %vm686, %v2878, %v2879
      %v2881 = vrot.slane %v2575, 1
      %v2882 = vrot.slane %v2639, 1
      %v2883 = vsel %vm686, %v2881, %v2882
      %v2884 = vrot.slane %v2576, 1
      %v2885 = vrot.slane %v2640, 1
      %v2886 = vsel %vm686, %v2884, %v2885
      %v2887 = vrot.slane %v2577, 1
      %v2888 = vrot.slane %v2641, 1
      %v2889 = vsel %vm686, %v2887, %v2888
      %v2890 = vrot.slane %v2578, 1
      %v2891 = vrot.slane %v2642, 1
      %v2892 = vsel %vm686, %v2890, %v2891
      %v2893 = vrot.slane %v2579, 1
      %v2894 = vrot.slane %v2643, 1
      %v2895 = vsel %vm686, %v2893, %v2894
      %v2896 = vrot.slane %v2580, 1
      %v2897 = vrot.slane %v2644, 1
      %v2898 = vsel %vm686, %v2896, %v2897
      %v2899 = vrot.slane %v2581, 1
      %v2900 = vrot.slane %v2645, 1
      %v2901 = vsel %vm686, %v2899, %v2900
      %v2918 = vld [vmem:[%s4] sm:$0xf]
      %v2919 = vld [vmem:[%s4 + $0x4] sm:$0xf]
      %v2920 = vld [vmem:[%s4 + $0x8] sm:$0xf]
      %v2921 = vld [vmem:[%s4 + $0xc] sm:$0xf]
      %v2922 = vld [vmem:[%s4 + $0x10] sm:$0xf]
      %v2923 = vld [vmem:[%s4 + $0x14] sm:$0xf]
      %v2924 = vld [vmem:[%s4 + $0x18] sm:$0xf]
      %v2925 = vld [vmem:[%s4 + $0x1c] sm:$0xf]
      %v2926 = vld [vmem:[%s4 + $0x20] sm:$0xf]
      %v2927 = vld [vmem:[%s4 + $0x24] sm:$0xf]
      %v2928 = vld [vmem:[%s4 + $0x28] sm:$0xf]
      %v2929 = vld [vmem:[%s4 + $0x2c] sm:$0xf]
      %v2930 = vld [vmem:[%s4 + $0x30] sm:$0xf]
      %v2931 = vld [vmem:[%s4 + $0x34] sm:$0xf]
      %v2932 = vld [vmem:[%s4 + $0x38] sm:$0xf]
      %v2933 = vld [vmem:[%s4 + $0x3c] sm:$0xf]
      %v2934 = vld [vmem:[%s4 + $0x40] sm:$0xf]
      %v2935 = vld [vmem:[%s4 + $0x44] sm:$0xf]
      %v2936 = vld [vmem:[%s4 + $0x48] sm:$0xf]
      %v2937 = vld [vmem:[%s4 + $0x4c] sm:$0xf]
      %v2938 = vld [vmem:[%s4 + $0x50] sm:$0xf]
      %v2939 = vld [vmem:[%s4 + $0x54] sm:$0xf]
      %v2940 = vld [vmem:[%s4 + $0x58] sm:$0xf]
      %v2941 = vld [vmem:[%s4 + $0x5c] sm:$0xf]
      %v2942 = vld [vmem:[%s4 + $0x60] sm:$0xf]
      %v2943 = vld [vmem:[%s4 + $0x64] sm:$0xf]
      %v2944 = vld [vmem:[%s4 + $0x68] sm:$0xf]
      %v2945 = vld [vmem:[%s4 + $0x6c] sm:$0xf]
      %v2946 = vld [vmem:[%s4 + $0x70] sm:$0xf]
      %v2947 = vld [vmem:[%s4 + $0x74] sm:$0xf]
      %v2948 = vld [vmem:[%s4 + $0x78] sm:$0xf]
      %v2949 = vld [vmem:[%s4 + $0x7c] sm:$0xf]
      %v2950 = vld [vmem:[%s4 + $0x80] sm:$0xf]
      %v2951 = vld [vmem:[%s4 + $0x84] sm:$0xf]
      %v2952 = vld [vmem:[%s4 + $0x88] sm:$0xf]
      %v2953 = vld [vmem:[%s4 + $0x8c] sm:$0xf]
      %v2954 = vld [vmem:[%s4 + $0x90] sm:$0xf]
      %v2955 = vld [vmem:[%s4 + $0x94] sm:$0xf]
      %v2956 = vld [vmem:[%s4 + $0x98] sm:$0xf]
      %v2957 = vld [vmem:[%s4 + $0x9c] sm:$0xf]
      %v2958 = vld [vmem:[%s4 + $0xa0] sm:$0xf]
      %v2959 = vld [vmem:[%s4 + $0xa4] sm:$0xf]
      %v2960 = vld [vmem:[%s4 + $0xa8] sm:$0xf]
      %v2961 = vld [vmem:[%s4 + $0xac] sm:$0xf]
      %v2962 = vld [vmem:[%s4 + $0xb0] sm:$0xf]
      %v2963 = vld [vmem:[%s4 + $0xb4] sm:$0xf]
      %v2964 = vld [vmem:[%s4 + $0xb8] sm:$0xf]
      %v2965 = vld [vmem:[%s4 + $0xbc] sm:$0xf]
      %v2968 = vunpack.c.l.b16 %v2496
      %v2969 = vunpack.c.l.b16 %v2497
      %v2970 = vpack.c.b16 %v2969, %v2968
      %v2973 = vunpack.c.l.b16 %v2498
      %v2974 = vpack.c.b16 %v2973, %v2973
      %v2976 = vshrl.u32 %v2970, 16
      %v2978 = vshll.u32 %v2970, 16
      %v2980 = vrot.slane %v2978, 1
      %v2981 = vor.u32 %v2976, %v2980
      %v2983 = vshll.u32 %v2974, 16
      %v2985 = vrot.slane %v2983, 1
      %v2986 = vsel %vm477, %v2981, %v2985
      %v2988 = vrot.slane %v2970, 1
      %v2989 = vrot.slane %v2974, 1
      %v2990 = vsel %vm686, %v2988, %v2989
      %s2992 = scalar_lea.vmem %s4, 192
      %v2993 = vld [vmem:[%s2992] sm:$0xf]
      %v2994 = vld [vmem:[%s2992 + $0x4] sm:$0xf]
      %v2995 = vld [vmem:[%s2992 + $0x8] sm:$0xf]
      %v2996 = vld [vmem:[%s2992 + $0xc] sm:$0xf]
      %v2997 = vld [vmem:[%s2992 + $0x10] sm:$0xf]
      %v2998 = vld [vmem:[%s2992 + $0x14] sm:$0xf]
      %v2999 = vld [vmem:[%s2992 + $0x18] sm:$0xf]
      %v3000 = vld [vmem:[%s2992 + $0x1c] sm:$0xf]
      %v3001 = vld [vmem:[%s2992 + $0x20] sm:$0xf]
      %v3002 = vld [vmem:[%s2992 + $0x24] sm:$0xf]
      %v3003 = vld [vmem:[%s2992 + $0x28] sm:$0xf]
      %v3004 = vld [vmem:[%s2992 + $0x2c] sm:$0xf]
      %v3005 = vld [vmem:[%s2992 + $0x30] sm:$0xf]
      %v3006 = vld [vmem:[%s2992 + $0x34] sm:$0xf]
      %v3007 = vld [vmem:[%s2992 + $0x38] sm:$0xf]
      %v3008 = vld [vmem:[%s2992 + $0x3c] sm:$0xf]
      %v3009 = vld [vmem:[%s2992 + $0x40] sm:$0xf]
      %v3010 = vld [vmem:[%s2992 + $0x44] sm:$0xf]
      %v3011 = vld [vmem:[%s2992 + $0x48] sm:$0xf]
      %v3012 = vld [vmem:[%s2992 + $0x4c] sm:$0xf]
      %v3013 = vld [vmem:[%s2992 + $0x50] sm:$0xf]
      %v3014 = vld [vmem:[%s2992 + $0x54] sm:$0xf]
      %v3015 = vld [vmem:[%s2992 + $0x58] sm:$0xf]
      %v3016 = vld [vmem:[%s2992 + $0x5c] sm:$0xf]
      %v3017 = vld [vmem:[%s2992 + $0x60] sm:$0xf]
      %v3018 = vld [vmem:[%s2992 + $0x64] sm:$0xf]
      %v3019 = vld [vmem:[%s2992 + $0x68] sm:$0xf]
      %v3020 = vld [vmem:[%s2992 + $0x6c] sm:$0xf]
      %v3021 = vld [vmem:[%s2992 + $0x70] sm:$0xf]
      %v3022 = vld [vmem:[%s2992 + $0x74] sm:$0xf]
      %v3023 = vld [vmem:[%s2992 + $0x78] sm:$0xf]
      %v3024 = vld [vmem:[%s2992 + $0x7c] sm:$0xf]
      %v3025 = vld [vmem:[%s2992 + $0x80] sm:$0xf]
      %v3026 = vld [vmem:[%s2992 + $0x84] sm:$0xf]
      %v3027 = vld [vmem:[%s2992 + $0x88] sm:$0xf]
      %v3028 = vld [vmem:[%s2992 + $0x8c] sm:$0xf]
      %v3029 = vld [vmem:[%s2992 + $0x90] sm:$0xf]
      %v3030 = vld [vmem:[%s2992 + $0x94] sm:$0xf]
      %v3031 = vld [vmem:[%s2992 + $0x98] sm:$0xf]
      %v3032 = vld [vmem:[%s2992 + $0x9c] sm:$0xf]
      %v3033 = vld [vmem:[%s2992 + $0xa0] sm:$0xf]
      %v3034 = vld [vmem:[%s2992 + $0xa4] sm:$0xf]
      %v3035 = vld [vmem:[%s2992 + $0xa8] sm:$0xf]
      %v3036 = vld [vmem:[%s2992 + $0xac] sm:$0xf]
      %v3037 = vld [vmem:[%s2992 + $0xb0] sm:$0xf]
      %v3038 = vld [vmem:[%s2992 + $0xb4] sm:$0xf]
      %v3039 = vld [vmem:[%s2992 + $0xb8] sm:$0xf]
      %v3040 = vld [vmem:[%s2992 + $0xbc] sm:$0xf]
      %v3089 = vunpack.c.l.b16 %v2993
      %v3090 = vunpack.c.l.b16 %v2994
      %v3091 = vunpack.c.l.b16 %v2995
      %v3092 = vunpack.c.l.b16 %v2996
      %v3093 = vunpack.c.l.b16 %v2997
      %v3094 = vunpack.c.l.b16 %v2998
      %v3095 = vunpack.c.l.b16 %v2999
      %v3096 = vunpack.c.l.b16 %v3000
      %v3097 = vunpack.c.l.b16 %v3001
      %v3098 = vunpack.c.l.b16 %v3002
      %v3099 = vunpack.c.l.b16 %v3003
      %v3100 = vunpack.c.l.b16 %v3004
      %v3101 = vunpack.c.l.b16 %v3005
      %v3102 = vunpack.c.l.b16 %v3006
      %v3103 = vunpack.c.l.b16 %v3007
      %v3104 = vunpack.c.l.b16 %v3008
      %v3105 = vunpack.c.l.b16 %v3009
      %v3106 = vunpack.c.l.b16 %v3010
      %v3107 = vunpack.c.l.b16 %v3011
      %v3108 = vunpack.c.l.b16 %v3012
      %v3109 = vunpack.c.l.b16 %v3013
      %v3110 = vunpack.c.l.b16 %v3014
      %v3111 = vunpack.c.l.b16 %v3015
      %v3112 = vunpack.c.l.b16 %v3016
      %v3113 = vunpack.c.l.b16 %v3017
      %v3114 = vunpack.c.l.b16 %v3018
      %v3115 = vunpack.c.l.b16 %v3019
      %v3116 = vunpack.c.l.b16 %v3020
      %v3117 = vunpack.c.l.b16 %v3021
      %v3118 = vunpack.c.l.b16 %v3022
      %v3119 = vunpack.c.l.b16 %v3023
      %v3120 = vunpack.c.l.b16 %v3024
      %v3121 = vunpack.c.l.b16 %v3025
      %v3122 = vunpack.c.l.b16 %v3026
      %v3123 = vunpack.c.l.b16 %v3027
      %v3124 = vunpack.c.l.b16 %v3028
      %v3125 = vunpack.c.l.b16 %v3029
      %v3126 = vunpack.c.l.b16 %v3030
      %v3127 = vunpack.c.l.b16 %v3031
      %v3128 = vunpack.c.l.b16 %v3032
      %v3129 = vunpack.c.l.b16 %v3033
      %v3130 = vunpack.c.l.b16 %v3034
      %v3131 = vunpack.c.l.b16 %v3035
      %v3132 = vunpack.c.l.b16 %v3036
      %v3133 = vunpack.c.l.b16 %v3037
      %v3134 = vunpack.c.l.b16 %v3038
      %v3135 = vunpack.c.l.b16 %v3039
      %v3136 = vunpack.c.l.b16 %v3040
      %v3137 = vpack.c.b16 %v3090, %v3089
      %v3138 = vpack.c.b16 %v3092, %v3091
      %v3139 = vpack.c.b16 %v3094, %v3093
      %v3140 = vpack.c.b16 %v3096, %v3095
      %v3141 = vpack.c.b16 %v3098, %v3097
      %v3142 = vpack.c.b16 %v3100, %v3099
      %v3143 = vpack.c.b16 %v3102, %v3101
      %v3144 = vpack.c.b16 %v3104, %v3103
      %v3145 = vpack.c.b16 %v3106, %v3105
      %v3146 = vpack.c.b16 %v3108, %v3107
      %v3147 = vpack.c.b16 %v3110, %v3109
      %v3148 = vpack.c.b16 %v3112, %v3111
      %v3149 = vpack.c.b16 %v3114, %v3113
      %v3150 = vpack.c.b16 %v3116, %v3115
      %v3151 = vpack.c.b16 %v3118, %v3117
      %v3152 = vpack.c.b16 %v3120, %v3119
      %v3153 = vpack.c.b16 %v3122, %v3121
      %v3154 = vpack.c.b16 %v3124, %v3123
      %v3155 = vpack.c.b16 %v3126, %v3125
      %v3156 = vpack.c.b16 %v3128, %v3127
      %v3157 = vpack.c.b16 %v3130, %v3129
      %v3158 = vpack.c.b16 %v3132, %v3131
      %v3159 = vpack.c.b16 %v3134, %v3133
      %v3160 = vpack.c.b16 %v3136, %v3135
      %3185 = vmatpush.bf16.msra.mxu0 %v3144
      %3186 = vmatpush.bf16.msra.mxu0 %v3143
      %3187 = vmatpush.bf16.msra.mxu0 %v3142
      %3188 = vmatpush.bf16.msra.mxu0 %v3141
      %3189 = vmatpush.bf16.msra.mxu0 %v3140
      %3190 = vmatpush.bf16.msra.mxu0 %v3139
      %3191 = vmatpush.bf16.msra.mxu0 %v3138
      %3192 = vmatpush.bf16.msra.mxu0 %v3137
      %3193 = vmatmul.bf16.gmra.mxu0 %v2567
      %v3194 = vpop.f32.mrf.mxu0
      %v3195 = vadd.f32 0.0, %v3194
      %v3196 = vpop.f32.mrf.mxu0
      %v3197 = vadd.f32 0.0, %v3196
      %3198 = vmatmul.bf16.gmra.mxu0 %v2568
      %v3199 = vpop.f32.mrf.mxu0
      %v3200 = vadd.f32 0.0, %v3199
      %v3201 = vpop.f32.mrf.mxu0
      %v3202 = vadd.f32 0.0, %v3201
      %3203 = vmatmul.bf16.gmra.mxu0 %v2569
      %v3204 = vpop.f32.mrf.mxu0
      %v3205 = vadd.f32 0.0, %v3204
      %v3206 = vpop.f32.mrf.mxu0
      %v3207 = vadd.f32 0.0, %v3206
      %3208 = vmatmul.bf16.gmra.mxu0 %v2570
      %v3209 = vpop.f32.mrf.mxu0
      %v3210 = vadd.f32 0.0, %v3209
      %v3211 = vpop.f32.mrf.mxu0
      %v3212 = vadd.f32 0.0, %v3211
      %3213 = vmatmul.bf16.gmra.mxu0 %v2571
      %v3214 = vpop.f32.mrf.mxu0
      %v3215 = vadd.f32 0.0, %v3214
      %v3216 = vpop.f32.mrf.mxu0
      %v3217 = vadd.f32 0.0, %v3216
      %3218 = vmatmul.bf16.gmra.mxu0 %v2572
      %v3219 = vpop.f32.mrf.mxu0
      %v3220 = vadd.f32 0.0, %v3219
      %v3221 = vpop.f32.mrf.mxu0
      %v3222 = vadd.f32 0.0, %v3221
      %3223 = vmatmul.bf16.gmra.mxu0 %v2573
      %v3224 = vpop.f32.mrf.mxu0
      %v3225 = vadd.f32 0.0, %v3224
      %v3226 = vpop.f32.mrf.mxu0
      %v3227 = vadd.f32 0.0, %v3226
      %3228 = vmatmul.bf16.gmra.mxu0 %v2574
      %v3229 = vpop.f32.mrf.mxu0
      %v3230 = vadd.f32 0.0, %v3229
      %v3231 = vpop.f32.mrf.mxu0
      %v3232 = vadd.f32 0.0, %v3231
      %3233 = vmatmul.bf16.gmra.mxu0 %v2575
      %v3234 = vpop.f32.mrf.mxu0
      %v3235 = vadd.f32 0.0, %v3234
      %v3236 = vpop.f32.mrf.mxu0
      %v3237 = vadd.f32 0.0, %v3236
      %3238 = vmatmul.bf16.gmra.mxu0 %v2576
      %v3239 = vpop.f32.mrf.mxu0
      %v3240 = vadd.f32 0.0, %v3239
      %v3241 = vpop.f32.mrf.mxu0
      %v3242 = vadd.f32 0.0, %v3241
      %3243 = vmatmul.bf16.gmra.mxu0 %v2577
      %v3244 = vpop.f32.mrf.mxu0
      %v3245 = vadd.f32 0.0, %v3244
      %v3246 = vpop.f32.mrf.mxu0
      %v3247 = vadd.f32 0.0, %v3246
      %3248 = vmatmul.bf16.gmra.mxu0 %v2578
      %v3249 = vpop.f32.mrf.mxu0
      %v3250 = vadd.f32 0.0, %v3249
      %v3251 = vpop.f32.mrf.mxu0
      %v3252 = vadd.f32 0.0, %v3251
      %3253 = vmatmul.bf16.gmra.mxu0 %v2579
      %v3254 = vpop.f32.mrf.mxu0
      %v3255 = vadd.f32 0.0, %v3254
      %v3256 = vpop.f32.mrf.mxu0
      %v3257 = vadd.f32 0.0, %v3256
      %3258 = vmatmul.bf16.gmra.mxu0 %v2580
      %v3259 = vpop.f32.mrf.mxu0
      %v3260 = vadd.f32 0.0, %v3259
      %v3261 = vpop.f32.mrf.mxu0
      %v3262 = vadd.f32 0.0, %v3261
      %3263 = vmatmul.bf16.gmra.mxu0 %v2581
      %v3264 = vpop.f32.mrf.mxu0
      %v3265 = vadd.f32 0.0, %v3264
      %v3266 = vpop.f32.mrf.mxu0
      %v3267 = vadd.f32 0.0, %v3266
      %3268 = vmatmul.bf16.gmra.mxu0 %v2970
      %v3269 = vpop.f32.mrf.mxu0
      %v3270 = vadd.f32 0.0, %v3269
      %v3271 = vpop.f32.mrf.mxu0
      %v3272 = vadd.f32 0.0, %v3271
      %3273 = vdwg.mxu0
      %3274 = vmatpush.bf16.msra.mxu0 %v3152
      %3275 = vmatpush.bf16.msra.mxu0 %v3151
      %3276 = vmatpush.bf16.msra.mxu0 %v3150
      %3277 = vmatpush.bf16.msra.mxu0 %v3149
      %3278 = vmatpush.bf16.msra.mxu0 %v3148
      %3279 = vmatpush.bf16.msra.mxu0 %v3147
      %3280 = vmatpush.bf16.msra.mxu0 %v3146
      %3281 = vmatpush.bf16.msra.mxu0 %v3145
      %3282 = vmatmul.bf16.gmra.mxu0 %v2669
      %v3283 = vpop.f32.mrf.mxu0
      %v3284 = vadd.f32 %v3195, %v3283
      %v3285 = vpop.f32.mrf.mxu0
      %v3286 = vadd.f32 %v3197, %v3285
      %3287 = vmatmul.bf16.gmra.mxu0 %v2681
      %v3288 = vpop.f32.mrf.mxu0
      %v3289 = vadd.f32 %v3200, %v3288
      %v3290 = vpop.f32.mrf.mxu0
      %v3291 = vadd.f32 %v3202, %v3290
      %3292 = vmatmul.bf16.gmra.mxu0 %v2693
      %v3293 = vpop.f32.mrf.mxu0
      %v3294 = vadd.f32 %v3205, %v3293
      %v3295 = vpop.f32.mrf.mxu0
      %v3296 = vadd.f32 %v3207, %v3295
      %3297 = vmatmul.bf16.gmra.mxu0 %v2705
      %v3298 = vpop.f32.mrf.mxu0
      %v3299 = vadd.f32 %v3210, %v3298
      %v3300 = vpop.f32.mrf.mxu0
      %v3301 = vadd.f32 %v3212, %v3300
      %3302 = vmatmul.bf16.gmra.mxu0 %v2717
      %v3303 = vpop.f32.mrf.mxu0
      %v3304 = vadd.f32 %v3215, %v3303
      %v3305 = vpop.f32.mrf.mxu0
      %v3306 = vadd.f32 %v3217, %v3305
      %3307 = vmatmul.bf16.gmra.mxu0 %v2729
      %v3308 = vpop.f32.mrf.mxu0
      %v3309 = vadd.f32 %v3220, %v3308
      %v3310 = vpop.f32.mrf.mxu0
      %v3311 = vadd.f32 %v3222, %v3310
      %3312 = vmatmul.bf16.gmra.mxu0 %v2741
      %v3313 = vpop.f32.mrf.mxu0
      %v3314 = vadd.f32 %v3225, %v3313
      %v3315 = vpop.f32.mrf.mxu0
      %v3316 = vadd.f32 %v3227, %v3315
      %3317 = vmatmul.bf16.gmra.mxu0 %v2753
      %v3318 = vpop.f32.mrf.mxu0
      %v3319 = vadd.f32 %v3230, %v3318
      %v3320 = vpop.f32.mrf.mxu0
      %v3321 = vadd.f32 %v3232, %v3320
      %3322 = vmatmul.bf16.gmra.mxu0 %v2765
      %v3323 = vpop.f32.mrf.mxu0
      %v3324 = vadd.f32 %v3235, %v3323
      %v3325 = vpop.f32.mrf.mxu0
      %v3326 = vadd.f32 %v3237, %v3325
      %3327 = vmatmul.bf16.gmra.mxu0 %v2777
      %v3328 = vpop.f32.mrf.mxu0
      %v3329 = vadd.f32 %v3240, %v3328
      %v3330 = vpop.f32.mrf.mxu0
      %v3331 = vadd.f32 %v3242, %v3330
      %3332 = vmatmul.bf16.gmra.mxu0 %v2789
      %v3333 = vpop.f32.mrf.mxu0
      %v3334 = vadd.f32 %v3245, %v3333
      %v3335 = vpop.f32.mrf.mxu0
      %v3336 = vadd.f32 %v3247, %v3335
      %3337 = vmatmul.bf16.gmra.mxu0 %v2801
      %v3338 = vpop.f32.mrf.mxu0
      %v3339 = vadd.f32 %v3250, %v3338
      %v3340 = vpop.f32.mrf.mxu0
      %v3341 = vadd.f32 %v3252, %v3340
      %3342 = vmatmul.bf16.gmra.mxu0 %v2813
      %v3343 = vpop.f32.mrf.mxu0
      %v3344 = vadd.f32 %v3255, %v3343
      %v3345 = vpop.f32.mrf.mxu0
      %v3346 = vadd.f32 %v3257, %v3345
      %3347 = vmatmul.bf16.gmra.mxu0 %v2825
      %v3348 = vpop.f32.mrf.mxu0
      %v3349 = vadd.f32 %v3260, %v3348
      %v3350 = vpop.f32.mrf.mxu0
      %v3351 = vadd.f32 %v3262, %v3350
      %3352 = vmatmul.bf16.gmra.mxu0 %v2837
      %v3353 = vpop.f32.mrf.mxu0
      %v3354 = vadd.f32 %v3265, %v3353
      %v3355 = vpop.f32.mrf.mxu0
      %v3356 = vadd.f32 %v3267, %v3355
      %3357 = vmatmul.bf16.gmra.mxu0 %v2986
      %v3358 = vpop.f32.mrf.mxu0
      %v3359 = vadd.f32 %v3270, %v3358
      %v3360 = vpop.f32.mrf.mxu0
      %v3361 = vadd.f32 %v3272, %v3360
      %3362 = vdwg.mxu0
      %3363 = vmatpush.bf16.msra.mxu0 %v3160
      %3364 = vmatpush.bf16.msra.mxu0 %v3159
      %3365 = vmatpush.bf16.msra.mxu0 %v3158
      %3366 = vmatpush.bf16.msra.mxu0 %v3157
      %3367 = vmatpush.bf16.msra.mxu0 %v3156
      %3368 = vmatpush.bf16.msra.mxu0 %v3155
      %3369 = vmatpush.bf16.msra.mxu0 %v3154
      %3370 = vmatpush.bf16.msra.mxu0 %v3153
      %3371 = vmatmul.bf16.gmra.mxu0 %v2859
      %v3372 = vpop.f32.mrf.mxu0
      %v3373 = vadd.f32 %v3284, %v3372
      %v3374 = vpop.f32.mrf.mxu0
      %v3375 = vadd.f32 %v3286, %v3374
      %3376 = vmatmul.bf16.gmra.mxu0 %v2862
      %v3377 = vpop.f32.mrf.mxu0
      %v3378 = vadd.f32 %v3289, %v3377
      %v3379 = vpop.f32.mrf.mxu0
      %v3380 = vadd.f32 %v3291, %v3379
      %3381 = vmatmul.bf16.gmra.mxu0 %v2865
      %v3382 = vpop.f32.mrf.mxu0
      %v3383 = vadd.f32 %v3294, %v3382
      %v3384 = vpop.f32.mrf.mxu0
      %v3385 = vadd.f32 %v3296, %v3384
      %3386 = vmatmul.bf16.gmra.mxu0 %v2868
      %v3387 = vpop.f32.mrf.mxu0
      %v3388 = vadd.f32 %v3299, %v3387
      %v3389 = vpop.f32.mrf.mxu0
      %v3390 = vadd.f32 %v3301, %v3389
      %3391 = vmatmul.bf16.gmra.mxu0 %v2871
      %v3392 = vpop.f32.mrf.mxu0
      %v3393 = vadd.f32 %v3304, %v3392
      %v3394 = vpop.f32.mrf.mxu0
      %v3395 = vadd.f32 %v3306, %v3394
      %3396 = vmatmul.bf16.gmra.mxu0 %v2874
      %v3397 = vpop.f32.mrf.mxu0
      %v3398 = vadd.f32 %v3309, %v3397
      %v3399 = vpop.f32.mrf.mxu0
      %v3400 = vadd.f32 %v3311, %v3399
      %3401 = vmatmul.bf16.gmra.mxu0 %v2877
      %v3402 = vpop.f32.mrf.mxu0
      %v3403 = vadd.f32 %v3314, %v3402
      %v3404 = vpop.f32.mrf.mxu0
      %v3405 = vadd.f32 %v3316, %v3404
      %3406 = vmatmul.bf16.gmra.mxu0 %v2880
      %v3407 = vpop.f32.mrf.mxu0
      %v3408 = vadd.f32 %v3319, %v3407
      %v3409 = vpop.f32.mrf.mxu0
      %v3410 = vadd.f32 %v3321, %v3409
      %3411 = vmatmul.bf16.gmra.mxu0 %v2883
      %v3412 = vpop.f32.mrf.mxu0
      %v3413 = vadd.f32 %v3324, %v3412
      %v3414 = vpop.f32.mrf.mxu0
      %v3415 = vadd.f32 %v3326, %v3414
      %3416 = vmatmul.bf16.gmra.mxu0 %v2886
      %v3417 = vpop.f32.mrf.mxu0
      %v3418 = vadd.f32 %v3329, %v3417
      %v3419 = vpop.f32.mrf.mxu0
      %v3420 = vadd.f32 %v3331, %v3419
      %3421 = vmatmul.bf16.gmra.mxu0 %v2889
      %v3422 = vpop.f32.mrf.mxu0
      %v3423 = vadd.f32 %v3334, %v3422
      %v3424 = vpop.f32.mrf.mxu0
      %v3425 = vadd.f32 %v3336, %v3424
      %3426 = vmatmul.bf16.gmra.mxu0 %v2892
      %v3427 = vpop.f32.mrf.mxu0
      %v3428 = vadd.f32 %v3339, %v3427
      %v3429 = vpop.f32.mrf.mxu0
      %v3430 = vadd.f32 %v3341, %v3429
      %3431 = vmatmul.bf16.gmra.mxu0 %v2895
      %v3432 = vpop.f32.mrf.mxu0
      %v3433 = vadd.f32 %v3344, %v3432
      %v3434 = vpop.f32.mrf.mxu0
      %v3435 = vadd.f32 %v3346, %v3434
      %3436 = vmatmul.bf16.gmra.mxu0 %v2898
      %v3437 = vpop.f32.mrf.mxu0
      %v3438 = vadd.f32 %v3349, %v3437
      %v3439 = vpop.f32.mrf.mxu0
      %v3440 = vadd.f32 %v3351, %v3439
      %3441 = vmatmul.bf16.gmra.mxu0 %v2901
      %v3442 = vpop.f32.mrf.mxu0
      %v3443 = vadd.f32 %v3354, %v3442
      %v3444 = vpop.f32.mrf.mxu0
      %v3445 = vadd.f32 %v3356, %v3444
      %3446 = vmatmul.bf16.gmra.mxu0 %v2990
      %v3447 = vpop.f32.mrf.mxu0
      %v3448 = vadd.f32 %v3359, %v3447
      %v3449 = vpop.f32.mrf.mxu0
      %v3450 = vadd.f32 %v3361, %v3449
      %3451 = vdwg.mxu0
      %v3500 = vunpack.c.l.b16 %v2918
      %v3501 = vunpack.c.l.b16 %v2919
      %v3502 = vunpack.c.l.b16 %v2920
      %v3503 = vunpack.c.l.b16 %v2921
      %v3504 = vunpack.c.l.b16 %v2922
      %v3505 = vunpack.c.l.b16 %v2923
      %v3506 = vunpack.c.l.b16 %v2924
      %v3507 = vunpack.c.l.b16 %v2925
      %v3508 = vunpack.c.l.b16 %v2926
      %v3509 = vunpack.c.l.b16 %v2927
      %v3510 = vunpack.c.l.b16 %v2928
      %v3511 = vunpack.c.l.b16 %v2929
      %v3512 = vunpack.c.l.b16 %v2930
      %v3513 = vunpack.c.l.b16 %v2931
      %v3514 = vunpack.c.l.b16 %v2932
      %v3515 = vunpack.c.l.b16 %v2933
      %v3516 = vunpack.c.l.b16 %v2934
      %v3517 = vunpack.c.l.b16 %v2935
      %v3518 = vunpack.c.l.b16 %v2936
      %v3519 = vunpack.c.l.b16 %v2937
      %v3520 = vunpack.c.l.b16 %v2938
      %v3521 = vunpack.c.l.b16 %v2939
      %v3522 = vunpack.c.l.b16 %v2940
      %v3523 = vunpack.c.l.b16 %v2941
      %v3524 = vunpack.c.l.b16 %v2942
      %v3525 = vunpack.c.l.b16 %v2943
      %v3526 = vunpack.c.l.b16 %v2944
      %v3527 = vunpack.c.l.b16 %v2945
      %v3528 = vunpack.c.l.b16 %v2946
      %v3529 = vunpack.c.l.b16 %v2947
      %v3530 = vunpack.c.l.b16 %v2948
      %v3531 = vunpack.c.l.b16 %v2949
      %v3532 = vunpack.c.l.b16 %v2950
      %v3533 = vunpack.c.l.b16 %v2951
      %v3534 = vunpack.c.l.b16 %v2952
      %v3535 = vunpack.c.l.b16 %v2953
      %v3536 = vunpack.c.l.b16 %v2954
      %v3537 = vunpack.c.l.b16 %v2955
      %v3538 = vunpack.c.l.b16 %v2956
      %v3539 = vunpack.c.l.b16 %v2957
      %v3540 = vunpack.c.l.b16 %v2958
      %v3541 = vunpack.c.l.b16 %v2959
      %v3542 = vunpack.c.l.b16 %v2960
      %v3543 = vunpack.c.l.b16 %v2961
      %v3544 = vunpack.c.l.b16 %v2962
      %v3545 = vunpack.c.l.b16 %v2963
      %v3546 = vunpack.c.l.b16 %v2964
      %v3547 = vunpack.c.l.b16 %v2965
      %v3548 = vpack.c.b16 %v3501, %v3500
      %v3549 = vpack.c.b16 %v3503, %v3502
      %v3550 = vpack.c.b16 %v3505, %v3504
      %v3551 = vpack.c.b16 %v3507, %v3506
      %v3552 = vpack.c.b16 %v3509, %v3508
      %v3553 = vpack.c.b16 %v3511, %v3510
      %v3554 = vpack.c.b16 %v3513, %v3512
      %v3555 = vpack.c.b16 %v3515, %v3514
      %v3556 = vpack.c.b16 %v3517, %v3516
      %v3557 = vpack.c.b16 %v3519, %v3518
      %v3558 = vpack.c.b16 %v3521, %v3520
      %v3559 = vpack.c.b16 %v3523, %v3522
      %v3560 = vpack.c.b16 %v3525, %v3524
      %v3561 = vpack.c.b16 %v3527, %v3526
      %v3562 = vpack.c.b16 %v3529, %v3528
      %v3563 = vpack.c.b16 %v3531, %v3530
      %v3564 = vpack.c.b16 %v3533, %v3532
      %v3565 = vpack.c.b16 %v3535, %v3534
      %v3566 = vpack.c.b16 %v3537, %v3536
      %v3567 = vpack.c.b16 %v3539, %v3538
      %v3568 = vpack.c.b16 %v3541, %v3540
      %v3569 = vpack.c.b16 %v3543, %v3542
      %v3570 = vpack.c.b16 %v3545, %v3544
      %v3571 = vpack.c.b16 %v3547, %v3546
      %3596 = vmatpush.bf16.msra.mxu0 %v3555
      %3597 = vmatpush.bf16.msra.mxu0 %v3554
      %3598 = vmatpush.bf16.msra.mxu0 %v3553
      %3599 = vmatpush.bf16.msra.mxu0 %v3552
      %3600 = vmatpush.bf16.msra.mxu0 %v3551
      %3601 = vmatpush.bf16.msra.mxu0 %v3550
      %3602 = vmatpush.bf16.msra.mxu0 %v3549
      %3603 = vmatpush.bf16.msra.mxu0 %v3548
      %3604 = vmatmul.bf16.gmra.mxu0 %v2566
      %v3605 = vpop.f32.mrf.mxu0
      %v3606 = vadd.f32 %v3373, %v3605
      %v3607 = vpop.f32.mrf.mxu0
      %v3608 = vadd.f32 %v3375, %v3607
      %3609 = vmatmul.bf16.gmra.mxu0 %v2567
      %v3610 = vpop.f32.mrf.mxu0
      %v3611 = vadd.f32 %v3378, %v3610
      %v3612 = vpop.f32.mrf.mxu0
      %v3613 = vadd.f32 %v3380, %v3612
      %3614 = vmatmul.bf16.gmra.mxu0 %v2568
      %v3615 = vpop.f32.mrf.mxu0
      %v3616 = vadd.f32 %v3383, %v3615
      %v3617 = vpop.f32.mrf.mxu0
      %v3618 = vadd.f32 %v3385, %v3617
      %3619 = vmatmul.bf16.gmra.mxu0 %v2569
      %v3620 = vpop.f32.mrf.mxu0
      %v3621 = vadd.f32 %v3388, %v3620
      %v3622 = vpop.f32.mrf.mxu0
      %v3623 = vadd.f32 %v3390, %v3622
      %3624 = vmatmul.bf16.gmra.mxu0 %v2570
      %v3625 = vpop.f32.mrf.mxu0
      %v3626 = vadd.f32 %v3393, %v3625
      %v3627 = vpop.f32.mrf.mxu0
      %v3628 = vadd.f32 %v3395, %v3627
      %3629 = vmatmul.bf16.gmra.mxu0 %v2571
      %v3630 = vpop.f32.mrf.mxu0
      %v3631 = vadd.f32 %v3398, %v3630
      %v3632 = vpop.f32.mrf.mxu0
      %v3633 = vadd.f32 %v3400, %v3632
      %3634 = vmatmul.bf16.gmra.mxu0 %v2572
      %v3635 = vpop.f32.mrf.mxu0
      %v3636 = vadd.f32 %v3403, %v3635
      %v3637 = vpop.f32.mrf.mxu0
      %v3638 = vadd.f32 %v3405, %v3637
      %3639 = vmatmul.bf16.gmra.mxu0 %v2573
      %v3640 = vpop.f32.mrf.mxu0
      %v3641 = vadd.f32 %v3408, %v3640
      %v3642 = vpop.f32.mrf.mxu0
      %v3643 = vadd.f32 %v3410, %v3642
      %3644 = vmatmul.bf16.gmra.mxu0 %v2574
      %v3645 = vpop.f32.mrf.mxu0
      %v3646 = vadd.f32 %v3413, %v3645
      %v3647 = vpop.f32.mrf.mxu0
      %v3648 = vadd.f32 %v3415, %v3647
      %3649 = vmatmul.bf16.gmra.mxu0 %v2575
      %v3650 = vpop.f32.mrf.mxu0
      %v3651 = vadd.f32 %v3418, %v3650
      %v3652 = vpop.f32.mrf.mxu0
      %v3653 = vadd.f32 %v3420, %v3652
      %3654 = vmatmul.bf16.gmra.mxu0 %v2576
      %v3655 = vpop.f32.mrf.mxu0
      %v3656 = vadd.f32 %v3423, %v3655
      %v3657 = vpop.f32.mrf.mxu0
      %v3658 = vadd.f32 %v3425, %v3657
      %3659 = vmatmul.bf16.gmra.mxu0 %v2577
      %v3660 = vpop.f32.mrf.mxu0
      %v3661 = vadd.f32 %v3428, %v3660
      %v3662 = vpop.f32.mrf.mxu0
      %v3663 = vadd.f32 %v3430, %v3662
      %3664 = vmatmul.bf16.gmra.mxu0 %v2578
      %v3665 = vpop.f32.mrf.mxu0
      %v3666 = vadd.f32 %v3433, %v3665
      %v3667 = vpop.f32.mrf.mxu0
      %v3668 = vadd.f32 %v3435, %v3667
      %3669 = vmatmul.bf16.gmra.mxu0 %v2579
      %v3670 = vpop.f32.mrf.mxu0
      %v3671 = vadd.f32 %v3438, %v3670
      %v3672 = vpop.f32.mrf.mxu0
      %v3673 = vadd.f32 %v3440, %v3672
      %3674 = vmatmul.bf16.gmra.mxu0 %v2580
      %v3675 = vpop.f32.mrf.mxu0
      %v3676 = vadd.f32 %v3443, %v3675
      %v3677 = vpop.f32.mrf.mxu0
      %v3678 = vadd.f32 %v3445, %v3677
      %3679 = vmatmul.bf16.gmra.mxu0 %v2581
      %v3680 = vpop.f32.mrf.mxu0
      %v3681 = vadd.f32 %v3448, %v3680
      %v3682 = vpop.f32.mrf.mxu0
      %v3683 = vadd.f32 %v3450, %v3682
      %3684 = vdwg.mxu0
      %3685 = vmatpush.bf16.msra.mxu0 %v3563
      %3686 = vmatpush.bf16.msra.mxu0 %v3562
      %3687 = vmatpush.bf16.msra.mxu0 %v3561
      %3688 = vmatpush.bf16.msra.mxu0 %v3560
      %3689 = vmatpush.bf16.msra.mxu0 %v3559
      %3690 = vmatpush.bf16.msra.mxu0 %v3558
      %3691 = vmatpush.bf16.msra.mxu0 %v3557
      %3692 = vmatpush.bf16.msra.mxu0 %v3556
      %3693 = vmatmul.bf16.gmra.mxu0 %v2657
      %v3694 = vpop.f32.mrf.mxu0
      %v3695 = vadd.f32 %v3606, %v3694
      %v3696 = vpop.f32.mrf.mxu0
      %v3697 = vadd.f32 %v3608, %v3696
      %3698 = vmatmul.bf16.gmra.mxu0 %v2669
      %v3699 = vpop.f32.mrf.mxu0
      %v3700 = vadd.f32 %v3611, %v3699
      %v3701 = vpop.f32.mrf.mxu0
      %v3702 = vadd.f32 %v3613, %v3701
      %3703 = vmatmul.bf16.gmra.mxu0 %v2681
      %v3704 = vpop.f32.mrf.mxu0
      %v3705 = vadd.f32 %v3616, %v3704
      %v3706 = vpop.f32.mrf.mxu0
      %v3707 = vadd.f32 %v3618, %v3706
      %3708 = vmatmul.bf16.gmra.mxu0 %v2693
      %v3709 = vpop.f32.mrf.mxu0
      %v3710 = vadd.f32 %v3621, %v3709
      %v3711 = vpop.f32.mrf.mxu0
      %v3712 = vadd.f32 %v3623, %v3711
      %3713 = vmatmul.bf16.gmra.mxu0 %v2705
      %v3714 = vpop.f32.mrf.mxu0
      %v3715 = vadd.f32 %v3626, %v3714
      %v3716 = vpop.f32.mrf.mxu0
      %v3717 = vadd.f32 %v3628, %v3716
      %3718 = vmatmul.bf16.gmra.mxu0 %v2717
      %v3719 = vpop.f32.mrf.mxu0
      %v3720 = vadd.f32 %v3631, %v3719
      %v3721 = vpop.f32.mrf.mxu0
      %v3722 = vadd.f32 %v3633, %v3721
      %3723 = vmatmul.bf16.gmra.mxu0 %v2729
      %v3724 = vpop.f32.mrf.mxu0
      %v3725 = vadd.f32 %v3636, %v3724
      %v3726 = vpop.f32.mrf.mxu0
      %v3727 = vadd.f32 %v3638, %v3726
      %3728 = vmatmul.bf16.gmra.mxu0 %v2741
      %v3729 = vpop.f32.mrf.mxu0
      %v3730 = vadd.f32 %v3641, %v3729
      %v3731 = vpop.f32.mrf.mxu0
      %v3732 = vadd.f32 %v3643, %v3731
      %3733 = vmatmul.bf16.gmra.mxu0 %v2753
      %v3734 = vpop.f32.mrf.mxu0
      %v3735 = vadd.f32 %v3646, %v3734
      %v3736 = vpop.f32.mrf.mxu0
      %v3737 = vadd.f32 %v3648, %v3736
      %3738 = vmatmul.bf16.gmra.mxu0 %v2765
      %v3739 = vpop.f32.mrf.mxu0
      %v3740 = vadd.f32 %v3651, %v3739
      %v3741 = vpop.f32.mrf.mxu0
      %v3742 = vadd.f32 %v3653, %v3741
      %3743 = vmatmul.bf16.gmra.mxu0 %v2777
      %v3744 = vpop.f32.mrf.mxu0
      %v3745 = vadd.f32 %v3656, %v3744
      %v3746 = vpop.f32.mrf.mxu0
      %v3747 = vadd.f32 %v3658, %v3746
      %3748 = vmatmul.bf16.gmra.mxu0 %v2789
      %v3749 = vpop.f32.mrf.mxu0
      %v3750 = vadd.f32 %v3661, %v3749
      %v3751 = vpop.f32.mrf.mxu0
      %v3752 = vadd.f32 %v3663, %v3751
      %3753 = vmatmul.bf16.gmra.mxu0 %v2801
      %v3754 = vpop.f32.mrf.mxu0
      %v3755 = vadd.f32 %v3666, %v3754
      %v3756 = vpop.f32.mrf.mxu0
      %v3757 = vadd.f32 %v3668, %v3756
      %3758 = vmatmul.bf16.gmra.mxu0 %v2813
      %v3759 = vpop.f32.mrf.mxu0
      %v3760 = vadd.f32 %v3671, %v3759
      %v3761 = vpop.f32.mrf.mxu0
      %v3762 = vadd.f32 %v3673, %v3761
      %3763 = vmatmul.bf16.gmra.mxu0 %v2825
      %v3764 = vpop.f32.mrf.mxu0
      %v3765 = vadd.f32 %v3676, %v3764
      %v3766 = vpop.f32.mrf.mxu0
      %v3767 = vadd.f32 %v3678, %v3766
      %3768 = vmatmul.bf16.gmra.mxu0 %v2837
      %v3769 = vpop.f32.mrf.mxu0
      %v3770 = vadd.f32 %v3681, %v3769
      %v3771 = vpop.f32.mrf.mxu0
      %v3772 = vadd.f32 %v3683, %v3771
      %3773 = vdwg.mxu0
      %3774 = vmatpush.bf16.msra.mxu0 %v3571
      %3775 = vmatpush.bf16.msra.mxu0 %v3570
      %3776 = vmatpush.bf16.msra.mxu0 %v3569
      %3777 = vmatpush.bf16.msra.mxu0 %v3568
      %3778 = vmatpush.bf16.msra.mxu0 %v3567
      %3779 = vmatpush.bf16.msra.mxu0 %v3566
      %3780 = vmatpush.bf16.msra.mxu0 %v3565
      %3781 = vmatpush.bf16.msra.mxu0 %v3564
      %3782 = vmatmul.bf16.gmra.mxu0 %v2856
      %v3783 = vpop.f32.mrf.mxu0
      %v3784 = vadd.f32 %v3695, %v3783
      %v3785 = vpop.f32.mrf.mxu0
      %v3786 = vadd.f32 %v3697, %v3785
      %3787 = vmatmul.bf16.gmra.mxu0 %v2859
      %v3788 = vpop.f32.mrf.mxu0
      %v3789 = vadd.f32 %v3700, %v3788
      %v3790 = vpop.f32.mrf.mxu0
      %v3791 = vadd.f32 %v3702, %v3790
      %3792 = vmatmul.bf16.gmra.mxu0 %v2862
      %v3793 = vpop.f32.mrf.mxu0
      %v3794 = vadd.f32 %v3705, %v3793
      %v3795 = vpop.f32.mrf.mxu0
      %v3796 = vadd.f32 %v3707, %v3795
      %3797 = vmatmul.bf16.gmra.mxu0 %v2865
      %v3798 = vpop.f32.mrf.mxu0
      %v3799 = vadd.f32 %v3710, %v3798
      %v3800 = vpop.f32.mrf.mxu0
      %v3801 = vadd.f32 %v3712, %v3800
      %3802 = vmatmul.bf16.gmra.mxu0 %v2868
      %v3803 = vpop.f32.mrf.mxu0
      %v3804 = vadd.f32 %v3715, %v3803
      %v3805 = vpop.f32.mrf.mxu0
      %v3806 = vadd.f32 %v3717, %v3805
      %3807 = vmatmul.bf16.gmra.mxu0 %v2871
      %v3808 = vpop.f32.mrf.mxu0
      %v3809 = vadd.f32 %v3720, %v3808
      %v3810 = vpop.f32.mrf.mxu0
      %v3811 = vadd.f32 %v3722, %v3810
      %3812 = vmatmul.bf16.gmra.mxu0 %v2874
      %v3813 = vpop.f32.mrf.mxu0
      %v3814 = vadd.f32 %v3725, %v3813
      %v3815 = vpop.f32.mrf.mxu0
      %v3816 = vadd.f32 %v3727, %v3815
      %3817 = vmatmul.bf16.gmra.mxu0 %v2877
      %v3818 = vpop.f32.mrf.mxu0
      %v3819 = vadd.f32 %v3730, %v3818
      %v3820 = vpop.f32.mrf.mxu0
      %v3821 = vadd.f32 %v3732, %v3820
      %3822 = vmatmul.bf16.gmra.mxu0 %v2880
      %v3823 = vpop.f32.mrf.mxu0
      %v3824 = vadd.f32 %v3735, %v3823
      %v3825 = vpop.f32.mrf.mxu0
      %v3826 = vadd.f32 %v3737, %v3825
      %3827 = vmatmul.bf16.gmra.mxu0 %v2883
      %v3828 = vpop.f32.mrf.mxu0
      %v3829 = vadd.f32 %v3740, %v3828
      %v3830 = vpop.f32.mrf.mxu0
      %v3831 = vadd.f32 %v3742, %v3830
      %3832 = vmatmul.bf16.gmra.mxu0 %v2886
      %v3833 = vpop.f32.mrf.mxu0
      %v3834 = vadd.f32 %v3745, %v3833
      %v3835 = vpop.f32.mrf.mxu0
      %v3836 = vadd.f32 %v3747, %v3835
      %3837 = vmatmul.bf16.gmra.mxu0 %v2889
      %v3838 = vpop.f32.mrf.mxu0
      %v3839 = vadd.f32 %v3750, %v3838
      %v3840 = vpop.f32.mrf.mxu0
      %v3841 = vadd.f32 %v3752, %v3840
      %3842 = vmatmul.bf16.gmra.mxu0 %v2892
      %v3843 = vpop.f32.mrf.mxu0
      %v3844 = vadd.f32 %v3755, %v3843
      %v3845 = vpop.f32.mrf.mxu0
      %v3846 = vadd.f32 %v3757, %v3845
      %3847 = vmatmul.bf16.gmra.mxu0 %v2895
      %v3848 = vpop.f32.mrf.mxu0
      %v3849 = vadd.f32 %v3760, %v3848
      %v3850 = vpop.f32.mrf.mxu0
      %v3851 = vadd.f32 %v3762, %v3850
      %3852 = vmatmul.bf16.gmra.mxu0 %v2898
      %v3853 = vpop.f32.mrf.mxu0
      %v3854 = vadd.f32 %v3765, %v3853
      %v3855 = vpop.f32.mrf.mxu0
      %v3856 = vadd.f32 %v3767, %v3855
      %3857 = vmatmul.bf16.gmra.mxu0 %v2901
      %v3858 = vpop.f32.mrf.mxu0
      %v3859 = vadd.f32 %v3770, %v3858
      %v3860 = vpop.f32.mrf.mxu0
      %v3861 = vadd.f32 %v3772, %v3860
      %3862 = vdwg.mxu0
      %v3865 = vunpack.c.l.b16 %v2499
      %v3866 = vunpack.c.l.b16 %v2500
      %v3867 = vpack.c.b16 %v3866, %v3865
      %v3870 = vunpack.c.l.b16 %v2501
      %v3871 = vpack.c.b16 %v3870, %v3870
      %v3873 = vshrl.u32 %v3867, 16
      %v3875 = vshll.u32 %v3867, 16
      %v3877 = vrot.slane %v3875, 1
      %v3878 = vor.u32 %v3873, %v3877
      %v3880 = vshll.u32 %v3871, 16
      %v3882 = vrot.slane %v3880, 1
      %v3883 = vsel %vm477, %v3878, %v3882
      %v3885 = vrot.slane %v3867, 1
      %v3886 = vrot.slane %v3871, 1
      %v3887 = vsel %vm686, %v3885, %v3886
      %s3889 = scalar_lea.vmem %s4, 384
      %v3890 = vld [vmem:[%s3889] sm:$0xf]
      %v3891 = vld [vmem:[%s3889 + $0x4] sm:$0xf]
      %v3892 = vld [vmem:[%s3889 + $0x8] sm:$0xf]
      %v3893 = vld [vmem:[%s3889 + $0xc] sm:$0xf]
      %v3894 = vld [vmem:[%s3889 + $0x10] sm:$0xf]
      %v3895 = vld [vmem:[%s3889 + $0x14] sm:$0xf]
      %v3896 = vld [vmem:[%s3889 + $0x18] sm:$0xf]
      %v3897 = vld [vmem:[%s3889 + $0x1c] sm:$0xf]
      %v3898 = vld [vmem:[%s3889 + $0x20] sm:$0xf]
      %v3899 = vld [vmem:[%s3889 + $0x24] sm:$0xf]
      %v3900 = vld [vmem:[%s3889 + $0x28] sm:$0xf]
      %v3901 = vld [vmem:[%s3889 + $0x2c] sm:$0xf]
      %v3902 = vld [vmem:[%s3889 + $0x30] sm:$0xf]
      %v3903 = vld [vmem:[%s3889 + $0x34] sm:$0xf]
      %v3904 = vld [vmem:[%s3889 + $0x38] sm:$0xf]
      %v3905 = vld [vmem:[%s3889 + $0x3c] sm:$0xf]
      %v3906 = vld [vmem:[%s3889 + $0x40] sm:$0xf]
      %v3907 = vld [vmem:[%s3889 + $0x44] sm:$0xf]
      %v3908 = vld [vmem:[%s3889 + $0x48] sm:$0xf]
      %v3909 = vld [vmem:[%s3889 + $0x4c] sm:$0xf]
      %v3910 = vld [vmem:[%s3889 + $0x50] sm:$0xf]
      %v3911 = vld [vmem:[%s3889 + $0x54] sm:$0xf]
      %v3912 = vld [vmem:[%s3889 + $0x58] sm:$0xf]
      %v3913 = vld [vmem:[%s3889 + $0x5c] sm:$0xf]
      %v3914 = vld [vmem:[%s3889 + $0x60] sm:$0xf]
      %v3915 = vld [vmem:[%s3889 + $0x64] sm:$0xf]
      %v3916 = vld [vmem:[%s3889 + $0x68] sm:$0xf]
      %v3917 = vld [vmem:[%s3889 + $0x6c] sm:$0xf]
      %v3918 = vld [vmem:[%s3889 + $0x70] sm:$0xf]
      %v3919 = vld [vmem:[%s3889 + $0x74] sm:$0xf]
      %v3920 = vld [vmem:[%s3889 + $0x78] sm:$0xf]
      %v3921 = vld [vmem:[%s3889 + $0x7c] sm:$0xf]
      %v3922 = vld [vmem:[%s3889 + $0x80] sm:$0xf]
      %v3923 = vld [vmem:[%s3889 + $0x84] sm:$0xf]
      %v3924 = vld [vmem:[%s3889 + $0x88] sm:$0xf]
      %v3925 = vld [vmem:[%s3889 + $0x8c] sm:$0xf]
      %v3926 = vld [vmem:[%s3889 + $0x90] sm:$0xf]
      %v3927 = vld [vmem:[%s3889 + $0x94] sm:$0xf]
      %v3928 = vld [vmem:[%s3889 + $0x98] sm:$0xf]
      %v3929 = vld [vmem:[%s3889 + $0x9c] sm:$0xf]
      %v3930 = vld [vmem:[%s3889 + $0xa0] sm:$0xf]
      %v3931 = vld [vmem:[%s3889 + $0xa4] sm:$0xf]
      %v3932 = vld [vmem:[%s3889 + $0xa8] sm:$0xf]
      %v3933 = vld [vmem:[%s3889 + $0xac] sm:$0xf]
      %v3934 = vld [vmem:[%s3889 + $0xb0] sm:$0xf]
      %v3935 = vld [vmem:[%s3889 + $0xb4] sm:$0xf]
      %v3936 = vld [vmem:[%s3889 + $0xb8] sm:$0xf]
      %v3937 = vld [vmem:[%s3889 + $0xbc] sm:$0xf]
      %v3986 = vunpack.c.l.b16 %v3890
      %v3987 = vunpack.c.l.b16 %v3891
      %v3988 = vunpack.c.l.b16 %v3892
      %v3989 = vunpack.c.l.b16 %v3893
      %v3990 = vunpack.c.l.b16 %v3894
      %v3991 = vunpack.c.l.b16 %v3895
      %v3992 = vunpack.c.l.b16 %v3896
      %v3993 = vunpack.c.l.b16 %v3897
      %v3994 = vunpack.c.l.b16 %v3898
      %v3995 = vunpack.c.l.b16 %v3899
      %v3996 = vunpack.c.l.b16 %v3900
      %v3997 = vunpack.c.l.b16 %v3901
      %v3998 = vunpack.c.l.b16 %v3902
      %v3999 = vunpack.c.l.b16 %v3903
      %v4000 = vunpack.c.l.b16 %v3904
      %v4001 = vunpack.c.l.b16 %v3905
      %v4002 = vunpack.c.l.b16 %v3906
      %v4003 = vunpack.c.l.b16 %v3907
      %v4004 = vunpack.c.l.b16 %v3908
      %v4005 = vunpack.c.l.b16 %v3909
      %v4006 = vunpack.c.l.b16 %v3910
      %v4007 = vunpack.c.l.b16 %v3911
      %v4008 = vunpack.c.l.b16 %v3912
      %v4009 = vunpack.c.l.b16 %v3913
      %v4010 = vunpack.c.l.b16 %v3914
      %v4011 = vunpack.c.l.b16 %v3915
      %v4012 = vunpack.c.l.b16 %v3916
      %v4013 = vunpack.c.l.b16 %v3917
      %v4014 = vunpack.c.l.b16 %v3918
      %v4015 = vunpack.c.l.b16 %v3919
      %v4016 = vunpack.c.l.b16 %v3920
      %v4017 = vunpack.c.l.b16 %v3921
      %v4018 = vunpack.c.l.b16 %v3922
      %v4019 = vunpack.c.l.b16 %v3923
      %v4020 = vunpack.c.l.b16 %v3924
      %v4021 = vunpack.c.l.b16 %v3925
      %v4022 = vunpack.c.l.b16 %v3926
      %v4023 = vunpack.c.l.b16 %v3927
      %v4024 = vunpack.c.l.b16 %v3928
      %v4025 = vunpack.c.l.b16 %v3929
      %v4026 = vunpack.c.l.b16 %v3930
      %v4027 = vunpack.c.l.b16 %v3931
      %v4028 = vunpack.c.l.b16 %v3932
      %v4029 = vunpack.c.l.b16 %v3933
      %v4030 = vunpack.c.l.b16 %v3934
      %v4031 = vunpack.c.l.b16 %v3935
      %v4032 = vunpack.c.l.b16 %v3936
      %v4033 = vunpack.c.l.b16 %v3937
      %v4034 = vpack.c.b16 %v3987, %v3986
      %v4035 = vpack.c.b16 %v3989, %v3988
      %v4036 = vpack.c.b16 %v3991, %v3990
      %v4037 = vpack.c.b16 %v3993, %v3992
      %v4038 = vpack.c.b16 %v3995, %v3994
      %v4039 = vpack.c.b16 %v3997, %v3996
      %v4040 = vpack.c.b16 %v3999, %v3998
      %v4041 = vpack.c.b16 %v4001, %v4000
      %v4042 = vpack.c.b16 %v4003, %v4002
      %v4043 = vpack.c.b16 %v4005, %v4004
      %v4044 = vpack.c.b16 %v4007, %v4006
      %v4045 = vpack.c.b16 %v4009, %v4008
      %v4046 = vpack.c.b16 %v4011, %v4010
      %v4047 = vpack.c.b16 %v4013, %v4012
      %v4048 = vpack.c.b16 %v4015, %v4014
      %v4049 = vpack.c.b16 %v4017, %v4016
      %v4050 = vpack.c.b16 %v4019, %v4018
      %v4051 = vpack.c.b16 %v4021, %v4020
      %v4052 = vpack.c.b16 %v4023, %v4022
      %v4053 = vpack.c.b16 %v4025, %v4024
      %v4054 = vpack.c.b16 %v4027, %v4026
      %v4055 = vpack.c.b16 %v4029, %v4028
      %v4056 = vpack.c.b16 %v4031, %v4030
      %v4057 = vpack.c.b16 %v4033, %v4032
      %4082 = vmatpush.bf16.msra.mxu0 %v4041
      %4083 = vmatpush.bf16.msra.mxu0 %v4040
      %4084 = vmatpush.bf16.msra.mxu0 %v4039
      %4085 = vmatpush.bf16.msra.mxu0 %v4038
      %4086 = vmatpush.bf16.msra.mxu0 %v4037
      %4087 = vmatpush.bf16.msra.mxu0 %v4036
      %4088 = vmatpush.bf16.msra.mxu0 %v4035
      %4089 = vmatpush.bf16.msra.mxu0 %v4034
      %4090 = vmatmul.bf16.gmra.mxu0 %v2568
      %v4091 = vpop.f32.mrf.mxu0
      %v4092 = vadd.f32 0.0, %v4091
      %v4093 = vpop.f32.mrf.mxu0
      %v4094 = vadd.f32 0.0, %v4093
      %4095 = vmatmul.bf16.gmra.mxu0 %v2569
      %v4096 = vpop.f32.mrf.mxu0
      %v4097 = vadd.f32 0.0, %v4096
      %v4098 = vpop.f32.mrf.mxu0
      %v4099 = vadd.f32 0.0, %v4098
      %4100 = vmatmul.bf16.gmra.mxu0 %v2570
      %v4101 = vpop.f32.mrf.mxu0
      %v4102 = vadd.f32 0.0, %v4101
      %v4103 = vpop.f32.mrf.mxu0
      %v4104 = vadd.f32 0.0, %v4103
      %4105 = vmatmul.bf16.gmra.mxu0 %v2571
      %v4106 = vpop.f32.mrf.mxu0
      %v4107 = vadd.f32 0.0, %v4106
      %v4108 = vpop.f32.mrf.mxu0
      %v4109 = vadd.f32 0.0, %v4108
      %4110 = vmatmul.bf16.gmra.mxu0 %v2572
      %v4111 = vpop.f32.mrf.mxu0
      %v4112 = vadd.f32 0.0, %v4111
      %v4113 = vpop.f32.mrf.mxu0
      %v4114 = vadd.f32 0.0, %v4113
      %4115 = vmatmul.bf16.gmra.mxu0 %v2573
      %v4116 = vpop.f32.mrf.mxu0
      %v4117 = vadd.f32 0.0, %v4116
      %v4118 = vpop.f32.mrf.mxu0
      %v4119 = vadd.f32 0.0, %v4118
      %4120 = vmatmul.bf16.gmra.mxu0 %v2574
      %v4121 = vpop.f32.mrf.mxu0
      %v4122 = vadd.f32 0.0, %v4121
      %v4123 = vpop.f32.mrf.mxu0
      %v4124 = vadd.f32 0.0, %v4123
      %4125 = vmatmul.bf16.gmra.mxu0 %v2575
      %v4126 = vpop.f32.mrf.mxu0
      %v4127 = vadd.f32 0.0, %v4126
      %v4128 = vpop.f32.mrf.mxu0
      %v4129 = vadd.f32 0.0, %v4128
      %4130 = vmatmul.bf16.gmra.mxu0 %v2576
      %v4131 = vpop.f32.mrf.mxu0
      %v4132 = vadd.f32 0.0, %v4131
      %v4133 = vpop.f32.mrf.mxu0
      %v4134 = vadd.f32 0.0, %v4133
      %4135 = vmatmul.bf16.gmra.mxu0 %v2577
      %v4136 = vpop.f32.mrf.mxu0
      %v4137 = vadd.f32 0.0, %v4136
      %v4138 = vpop.f32.mrf.mxu0
      %v4139 = vadd.f32 0.0, %v4138
      %4140 = vmatmul.bf16.gmra.mxu0 %v2578
      %v4141 = vpop.f32.mrf.mxu0
      %v4142 = vadd.f32 0.0, %v4141
      %v4143 = vpop.f32.mrf.mxu0
      %v4144 = vadd.f32 0.0, %v4143
      %4145 = vmatmul.bf16.gmra.mxu0 %v2579
      %v4146 = vpop.f32.mrf.mxu0
      %v4147 = vadd.f32 0.0, %v4146
      %v4148 = vpop.f32.mrf.mxu0
      %v4149 = vadd.f32 0.0, %v4148
      %4150 = vmatmul.bf16.gmra.mxu0 %v2580
      %v4151 = vpop.f32.mrf.mxu0
      %v4152 = vadd.f32 0.0, %v4151
      %v4153 = vpop.f32.mrf.mxu0
      %v4154 = vadd.f32 0.0, %v4153
      %4155 = vmatmul.bf16.gmra.mxu0 %v2581
      %v4156 = vpop.f32.mrf.mxu0
      %v4157 = vadd.f32 0.0, %v4156
      %v4158 = vpop.f32.mrf.mxu0
      %v4159 = vadd.f32 0.0, %v4158
      %4160 = vmatmul.bf16.gmra.mxu0 %v2970
      %v4161 = vpop.f32.mrf.mxu0
      %v4162 = vadd.f32 0.0, %v4161
      %v4163 = vpop.f32.mrf.mxu0
      %v4164 = vadd.f32 0.0, %v4163
      %4165 = vmatmul.bf16.gmra.mxu0 %v3867
      %v4166 = vpop.f32.mrf.mxu0
      %v4167 = vadd.f32 0.0, %v4166
      %v4168 = vpop.f32.mrf.mxu0
      %v4169 = vadd.f32 0.0, %v4168
      %4170 = vdwg.mxu0
      %4171 = vmatpush.bf16.msra.mxu0 %v4049
      %4172 = vmatpush.bf16.msra.mxu0 %v4048
      %4173 = vmatpush.bf16.msra.mxu0 %v4047
      %4174 = vmatpush.bf16.msra.mxu0 %v4046
      %4175 = vmatpush.bf16.msra.mxu0 %v4045
      %4176 = vmatpush.bf16.msra.mxu0 %v4044
      %4177 = vmatpush.bf16.msra.mxu0 %v4043
      %4178 = vmatpush.bf16.msra.mxu0 %v4042
      %4179 = vmatmul.bf16.gmra.mxu0 %v2681
      %v4180 = vpop.f32.mrf.mxu0
      %v4181 = vadd.f32 %v4092, %v4180
      %v4182 = vpop.f32.mrf.mxu0
      %v4183 = vadd.f32 %v4094, %v4182
      %4184 = vmatmul.bf16.gmra.mxu0 %v2693
      %v4185 = vpop.f32.mrf.mxu0
      %v4186 = vadd.f32 %v4097, %v4185
      %v4187 = vpop.f32.mrf.mxu0
      %v4188 = vadd.f32 %v4099, %v4187
      %4189 = vmatmul.bf16.gmra.mxu0 %v2705
      %v4190 = vpop.f32.mrf.mxu0
      %v4191 = vadd.f32 %v4102, %v4190
      %v4192 = vpop.f32.mrf.mxu0
      %v4193 = vadd.f32 %v4104, %v4192
      %4194 = vmatmul.bf16.gmra.mxu0 %v2717
      %v4195 = vpop.f32.mrf.mxu0
      %v4196 = vadd.f32 %v4107, %v4195
      %v4197 = vpop.f32.mrf.mxu0
      %v4198 = vadd.f32 %v4109, %v4197
      %4199 = vmatmul.bf16.gmra.mxu0 %v2729
      %v4200 = vpop.f32.mrf.mxu0
      %v4201 = vadd.f32 %v4112, %v4200
      %v4202 = vpop.f32.mrf.mxu0
      %v4203 = vadd.f32 %v4114, %v4202
      %4204 = vmatmul.bf16.gmra.mxu0 %v2741
      %v4205 = vpop.f32.mrf.mxu0
      %v4206 = vadd.f32 %v4117, %v4205
      %v4207 = vpop.f32.mrf.mxu0
      %v4208 = vadd.f32 %v4119, %v4207
      %4209 = vmatmul.bf16.gmra.mxu0 %v2753
      %v4210 = vpop.f32.mrf.mxu0
      %v4211 = vadd.f32 %v4122, %v4210
      %v4212 = vpop.f32.mrf.mxu0
      %v4213 = vadd.f32 %v4124, %v4212
      %4214 = vmatmul.bf16.gmra.mxu0 %v2765
      %v4215 = vpop.f32.mrf.mxu0
      %v4216 = vadd.f32 %v4127, %v4215
      %v4217 = vpop.f32.mrf.mxu0
      %v4218 = vadd.f32 %v4129, %v4217
      %4219 = vmatmul.bf16.gmra.mxu0 %v2777
      %v4220 = vpop.f32.mrf.mxu0
      %v4221 = vadd.f32 %v4132, %v4220
      %v4222 = vpop.f32.mrf.mxu0
      %v4223 = vadd.f32 %v4134, %v4222
      %4224 = vmatmul.bf16.gmra.mxu0 %v2789
      %v4225 = vpop.f32.mrf.mxu0
      %v4226 = vadd.f32 %v4137, %v4225
      %v4227 = vpop.f32.mrf.mxu0
      %v4228 = vadd.f32 %v4139, %v4227
      %4229 = vmatmul.bf16.gmra.mxu0 %v2801
      %v4230 = vpop.f32.mrf.mxu0
      %v4231 = vadd.f32 %v4142, %v4230
      %v4232 = vpop.f32.mrf.mxu0
      %v4233 = vadd.f32 %v4144, %v4232
      %4234 = vmatmul.bf16.gmra.mxu0 %v2813
      %v4235 = vpop.f32.mrf.mxu0
      %v4236 = vadd.f32 %v4147, %v4235
      %v4237 = vpop.f32.mrf.mxu0
      %v4238 = vadd.f32 %v4149, %v4237
      %4239 = vmatmul.bf16.gmra.mxu0 %v2825
      %v4240 = vpop.f32.mrf.mxu0
      %v4241 = vadd.f32 %v4152, %v4240
      %v4242 = vpop.f32.mrf.mxu0
      %v4243 = vadd.f32 %v4154, %v4242
      %4244 = vmatmul.bf16.gmra.mxu0 %v2837
      %v4245 = vpop.f32.mrf.mxu0
      %v4246 = vadd.f32 %v4157, %v4245
      %v4247 = vpop.f32.mrf.mxu0
      %v4248 = vadd.f32 %v4159, %v4247
      %4249 = vmatmul.bf16.gmra.mxu0 %v2986
      %v4250 = vpop.f32.mrf.mxu0
      %v4251 = vadd.f32 %v4162, %v4250
      %v4252 = vpop.f32.mrf.mxu0
      %v4253 = vadd.f32 %v4164, %v4252
      %4254 = vmatmul.bf16.gmra.mxu0 %v3883
      %v4255 = vpop.f32.mrf.mxu0
      %v4256 = vadd.f32 %v4167, %v4255
      %v4257 = vpop.f32.mrf.mxu0
      %v4258 = vadd.f32 %v4169, %v4257
      %4259 = vdwg.mxu0
      %4260 = vmatpush.bf16.msra.mxu0 %v4057
      %4261 = vmatpush.bf16.msra.mxu0 %v4056
      %4262 = vmatpush.bf16.msra.mxu0 %v4055
      %4263 = vmatpush.bf16.msra.mxu0 %v4054
      %4264 = vmatpush.bf16.msra.mxu0 %v4053
      %4265 = vmatpush.bf16.msra.mxu0 %v4052
      %4266 = vmatpush.bf16.msra.mxu0 %v4051
      %4267 = vmatpush.bf16.msra.mxu0 %v4050
      %4268 = vmatmul.bf16.gmra.mxu0 %v2862
      %v4269 = vpop.f32.mrf.mxu0
      %v4270 = vadd.f32 %v4181, %v4269
      %v4271 = vpop.f32.mrf.mxu0
      %v4272 = vadd.f32 %v4183, %v4271
      %4273 = vmatmul.bf16.gmra.mxu0 %v2865
      %v4274 = vpop.f32.mrf.mxu0
      %v4275 = vadd.f32 %v4186, %v4274
      %v4276 = vpop.f32.mrf.mxu0
      %v4277 = vadd.f32 %v4188, %v4276
      %4278 = vmatmul.bf16.gmra.mxu0 %v2868
      %v4279 = vpop.f32.mrf.mxu0
      %v4280 = vadd.f32 %v4191, %v4279
      %v4281 = vpop.f32.mrf.mxu0
      %v4282 = vadd.f32 %v4193, %v4281
      %4283 = vmatmul.bf16.gmra.mxu0 %v2871
      %v4284 = vpop.f32.mrf.mxu0
      %v4285 = vadd.f32 %v4196, %v4284
      %v4286 = vpop.f32.mrf.mxu0
      %v4287 = vadd.f32 %v4198, %v4286
      %4288 = vmatmul.bf16.gmra.mxu0 %v2874
      %v4289 = vpop.f32.mrf.mxu0
      %v4290 = vadd.f32 %v4201, %v4289
      %v4291 = vpop.f32.mrf.mxu0
      %v4292 = vadd.f32 %v4203, %v4291
      %4293 = vmatmul.bf16.gmra.mxu0 %v2877
      %v4294 = vpop.f32.mrf.mxu0
      %v4295 = vadd.f32 %v4206, %v4294
      %v4296 = vpop.f32.mrf.mxu0
      %v4297 = vadd.f32 %v4208, %v4296
      %4298 = vmatmul.bf16.gmra.mxu0 %v2880
      %v4299 = vpop.f32.mrf.mxu0
      %v4300 = vadd.f32 %v4211, %v4299
      %v4301 = vpop.f32.mrf.mxu0
      %v4302 = vadd.f32 %v4213, %v4301
      %4303 = vmatmul.bf16.gmra.mxu0 %v2883
      %v4304 = vpop.f32.mrf.mxu0
      %v4305 = vadd.f32 %v4216, %v4304
      %v4306 = vpop.f32.mrf.mxu0
      %v4307 = vadd.f32 %v4218, %v4306
      %4308 = vmatmul.bf16.gmra.mxu0 %v2886
      %v4309 = vpop.f32.mrf.mxu0
      %v4310 = vadd.f32 %v4221, %v4309
      %v4311 = vpop.f32.mrf.mxu0
      %v4312 = vadd.f32 %v4223, %v4311
      %4313 = vmatmul.bf16.gmra.mxu0 %v2889
      %v4314 = vpop.f32.mrf.mxu0
      %v4315 = vadd.f32 %v4226, %v4314
      %v4316 = vpop.f32.mrf.mxu0
      %v4317 = vadd.f32 %v4228, %v4316
      %4318 = vmatmul.bf16.gmra.mxu0 %v2892
      %v4319 = vpop.f32.mrf.mxu0
      %v4320 = vadd.f32 %v4231, %v4319
      %v4321 = vpop.f32.mrf.mxu0
      %v4322 = vadd.f32 %v4233, %v4321
      %4323 = vmatmul.bf16.gmra.mxu0 %v2895
      %v4324 = vpop.f32.mrf.mxu0
      %v4325 = vadd.f32 %v4236, %v4324
      %v4326 = vpop.f32.mrf.mxu0
      %v4327 = vadd.f32 %v4238, %v4326
      %4328 = vmatmul.bf16.gmra.mxu0 %v2898
      %v4329 = vpop.f32.mrf.mxu0
      %v4330 = vadd.f32 %v4241, %v4329
      %v4331 = vpop.f32.mrf.mxu0
      %v4332 = vadd.f32 %v4243, %v4331
      %4333 = vmatmul.bf16.gmra.mxu0 %v2901
      %v4334 = vpop.f32.mrf.mxu0
      %v4335 = vadd.f32 %v4246, %v4334
      %v4336 = vpop.f32.mrf.mxu0
      %v4337 = vadd.f32 %v4248, %v4336
      %4338 = vmatmul.bf16.gmra.mxu0 %v2990
      %v4339 = vpop.f32.mrf.mxu0
      %v4340 = vadd.f32 %v4251, %v4339
      %v4341 = vpop.f32.mrf.mxu0
      %v4342 = vadd.f32 %v4253, %v4341
      %4343 = vmatmul.bf16.gmra.mxu0 %v3887
      %v4344 = vpop.f32.mrf.mxu0
      %v4345 = vadd.f32 %v4256, %v4344
      %v4346 = vpop.f32.mrf.mxu0
      %v4347 = vadd.f32 %v4258, %v4346
      %4348 = vdwg.mxu0
      %v4349 = vadd.f32 %v3784, %v4270
      %v4350 = vadd.f32 %v3786, %v4272
      %v4351 = vadd.f32 %v3789, %v4275
      %v4352 = vadd.f32 %v3791, %v4277
      %v4353 = vadd.f32 %v3794, %v4280
      %v4354 = vadd.f32 %v3796, %v4282
      %v4355 = vadd.f32 %v3799, %v4285
      %v4356 = vadd.f32 %v3801, %v4287
      %v4357 = vadd.f32 %v3804, %v4290
      %v4358 = vadd.f32 %v3806, %v4292
      %v4359 = vadd.f32 %v3809, %v4295
      %v4360 = vadd.f32 %v3811, %v4297
      %v4361 = vadd.f32 %v3814, %v4300
      %v4362 = vadd.f32 %v3816, %v4302
      %v4363 = vadd.f32 %v3819, %v4305
      %v4364 = vadd.f32 %v3821, %v4307
      %v4365 = vadd.f32 %v3824, %v4310
      %v4366 = vadd.f32 %v3826, %v4312
      %v4367 = vadd.f32 %v3829, %v4315
      %v4368 = vadd.f32 %v3831, %v4317
      %v4369 = vadd.f32 %v3834, %v4320
      %v4370 = vadd.f32 %v3836, %v4322
      %v4371 = vadd.f32 %v3839, %v4325
      %v4372 = vadd.f32 %v3841, %v4327
      %v4373 = vadd.f32 %v3844, %v4330
      %v4374 = vadd.f32 %v3846, %v4332
      %v4375 = vadd.f32 %v3849, %v4335
      %v4376 = vadd.f32 %v3851, %v4337
      %v4377 = vadd.f32 %v3854, %v4340
      %v4378 = vadd.f32 %v3856, %v4342
      %v4379 = vadd.f32 %v3859, %v4345
      %v4380 = vadd.f32 %v3861, %v4347
      %v4381 = vld [vmem:[%s5] sm:$0x1]
      %v4383 = vperm.slane %v4381, 0
      %v4385 = vmul.f32 %v4349, %v4383
      %v4386 = vmul.f32 %v4350, %v4383
      %v4387 = vmul.f32 %v4351, %v4383
      %v4388 = vmul.f32 %v4352, %v4383
      %v4389 = vmul.f32 %v4353, %v4383
      %v4390 = vmul.f32 %v4354, %v4383
      %v4391 = vmul.f32 %v4355, %v4383
      %v4392 = vmul.f32 %v4356, %v4383
      %v4393 = vmul.f32 %v4357, %v4383
      %v4394 = vmul.f32 %v4358, %v4383
      %v4395 = vmul.f32 %v4359, %v4383
      %v4396 = vmul.f32 %v4360, %v4383
      %v4397 = vmul.f32 %v4361, %v4383
      %v4398 = vmul.f32 %v4362, %v4383
      %v4399 = vmul.f32 %v4363, %v4383
      %v4400 = vmul.f32 %v4364, %v4383
      %v4401 = vmul.f32 %v4365, %v4383
      %v4402 = vmul.f32 %v4366, %v4383
      %v4403 = vmul.f32 %v4367, %v4383
      %v4404 = vmul.f32 %v4368, %v4383
      %v4405 = vmul.f32 %v4369, %v4383
      %v4406 = vmul.f32 %v4370, %v4383
      %v4407 = vmul.f32 %v4371, %v4383
      %v4408 = vmul.f32 %v4372, %v4383
      %v4409 = vmul.f32 %v4373, %v4383
      %v4410 = vmul.f32 %v4374, %v4383
      %v4411 = vmul.f32 %v4375, %v4383
      %v4412 = vmul.f32 %v4376, %v4383
      %v4413 = vmul.f32 %v4377, %v4383
      %v4414 = vmul.f32 %v4378, %v4383
      %v4415 = vmul.f32 %v4379, %v4383
      %v4416 = vmul.f32 %v4380, %v4383
      %v4417 = vld [vmem:[%s6] sm:$0x1]
      %v4419 = vperm.slane %v4417, 0
      %v4421 = vadd.f32 %v4385, %v4419
      %v4422 = vadd.f32 %v4386, %v4419
      %v4423 = vadd.f32 %v4387, %v4419
      %v4424 = vadd.f32 %v4388, %v4419
      %v4425 = vadd.f32 %v4389, %v4419
      %v4426 = vadd.f32 %v4390, %v4419
      %v4427 = vadd.f32 %v4391, %v4419
      %v4428 = vadd.f32 %v4392, %v4419
      %v4429 = vadd.f32 %v4393, %v4419
      %v4430 = vadd.f32 %v4394, %v4419
      %v4431 = vadd.f32 %v4395, %v4419
      %v4432 = vadd.f32 %v4396, %v4419
      %v4433 = vadd.f32 %v4397, %v4419
      %v4434 = vadd.f32 %v4398, %v4419
      %v4435 = vadd.f32 %v4399, %v4419
      %v4436 = vadd.f32 %v4400, %v4419
      %v4437 = vadd.f32 %v4401, %v4419
      %v4438 = vadd.f32 %v4402, %v4419
      %v4439 = vadd.f32 %v4403, %v4419
      %v4440 = vadd.f32 %v4404, %v4419
      %v4441 = vadd.f32 %v4405, %v4419
      %v4442 = vadd.f32 %v4406, %v4419
      %v4443 = vadd.f32 %v4407, %v4419
      %v4444 = vadd.f32 %v4408, %v4419
      %v4445 = vadd.f32 %v4409, %v4419
      %v4446 = vadd.f32 %v4410, %v4419
      %v4447 = vadd.f32 %v4411, %v4419
      %v4448 = vadd.f32 %v4412, %v4419
      %v4449 = vadd.f32 %v4413, %v4419
      %v4450 = vadd.f32 %v4414, %v4419
      %v4451 = vadd.f32 %v4415, %v4419
      %v4452 = vadd.f32 %v4416, %v4419
      %v4453 = vunpack.c.l.bf16 %v282
      %v4454 = vunpack.c.l.bf16 %v283
      %v4455 = vunpack.c.l.bf16 %v284
      %v4456 = vunpack.c.l.bf16 %v285
      %v4457 = vunpack.c.l.bf16 %v286
      %v4458 = vunpack.c.l.bf16 %v287
      %v4459 = vunpack.c.l.bf16 %v288
      %v4460 = vunpack.c.l.bf16 %v289
      %v4461 = vunpack.c.l.bf16 %v290
      %v4462 = vunpack.c.l.bf16 %v291
      %v4463 = vunpack.c.l.bf16 %v292
      %v4464 = vunpack.c.l.bf16 %v293
      %v4465 = vunpack.c.l.bf16 %v294
      %v4466 = vunpack.c.l.bf16 %v295
      %v4467 = vunpack.c.l.bf16 %v296
      %v4468 = vunpack.c.l.bf16 %v297
      %v4469 = vunpack.c.l.bf16 %v298
      %v4470 = vunpack.c.l.bf16 %v299
      %v4471 = vunpack.c.l.bf16 %v300
      %v4472 = vunpack.c.l.bf16 %v301
      %v4473 = vunpack.c.l.bf16 %v302
      %v4474 = vunpack.c.l.bf16 %v303
      %v4475 = vunpack.c.l.bf16 %v304
      %v4476 = vunpack.c.l.bf16 %v305
      %v4477 = vunpack.c.l.bf16 %v306
      %v4478 = vunpack.c.l.bf16 %v307
      %v4479 = vunpack.c.l.bf16 %v308
      %v4480 = vunpack.c.l.bf16 %v309
      %v4481 = vunpack.c.l.bf16 %v310
      %v4482 = vunpack.c.l.bf16 %v311
      %v4483 = vunpack.c.l.bf16 %v312
      %v4484 = vunpack.c.l.bf16 %v313
      %v4485 = vunpack.c.l.bf16 %v314
      %v4486 = vunpack.c.l.bf16 %v315
      %v4487 = vunpack.c.l.bf16 %v316
      %v4488 = vunpack.c.l.bf16 %v317
      %v4489 = vunpack.c.l.bf16 %v318
      %v4490 = vunpack.c.l.bf16 %v319
      %v4491 = vunpack.c.l.bf16 %v320
      %v4492 = vunpack.c.l.bf16 %v321
      %v4493 = vunpack.c.l.bf16 %v322
      %v4494 = vunpack.c.l.bf16 %v323
      %v4495 = vunpack.c.l.bf16 %v324
      %v4496 = vunpack.c.l.bf16 %v325
      %v4497 = vunpack.c.l.bf16 %v326
      %v4498 = vunpack.c.l.bf16 %v327
      %v4499 = vunpack.c.l.bf16 %v328
      %v4500 = vunpack.c.l.bf16 %v329
      %vm4549 = vcmask 1046528
      %v4550 = vrot.slane %v4453, 1
      %v4551 = vrot.slane %v4454, 1
      %v4552 = vsel %vm4549, %v4550, %v4551
      %v4553 = vrot.slane %v4455, 1
      %v4554 = vsel %vm4549, %v4551, %v4553
      %v4555 = vrot.slane %v4456, 1
      %v4556 = vrot.slane %v4457, 1
      %v4557 = vsel %vm4549, %v4555, %v4556
      %v4558 = vrot.slane %v4458, 1
      %v4559 = vsel %vm4549, %v4556, %v4558
      %v4560 = vrot.slane %v4459, 1
      %v4561 = vrot.slane %v4460, 1
      %v4562 = vsel %vm4549, %v4560, %v4561
      %v4563 = vrot.slane %v4461, 1
      %v4564 = vsel %vm4549, %v4561, %v4563
      %v4565 = vrot.slane %v4462, 1
      %v4566 = vrot.slane %v4463, 1
      %v4567 = vsel %vm4549, %v4565, %v4566
      %v4568 = vrot.slane %v4464, 1
      %v4569 = vsel %vm4549, %v4566, %v4568
      %v4570 = vrot.slane %v4465, 1
      %v4571 = vrot.slane %v4466, 1
      %v4572 = vsel %vm4549, %v4570, %v4571
      %v4573 = vrot.slane %v4467, 1
      %v4574 = vsel %vm4549, %v4571, %v4573
      %v4575 = vrot.slane %v4468, 1
      %v4576 = vrot.slane %v4469, 1
      %v4577 = vsel %vm4549, %v4575, %v4576
      %v4578 = vrot.slane %v4470, 1
      %v4579 = vsel %vm4549, %v4576, %v4578
      %v4580 = vrot.slane %v4471, 1
      %v4581 = vrot.slane %v4472, 1
      %v4582 = vsel %vm4549, %v4580, %v4581
      %v4583 = vrot.slane %v4473, 1
      %v4584 = vsel %vm4549, %v4581, %v4583
      %v4585 = vrot.slane %v4474, 1
      %v4586 = vrot.slane %v4475, 1
      %v4587 = vsel %vm4549, %v4585, %v4586
      %v4588 = vrot.slane %v4476, 1
      %v4589 = vsel %vm4549, %v4586, %v4588
      %v4590 = vrot.slane %v4477, 1
      %v4591 = vrot.slane %v4478, 1
      %v4592 = vsel %vm4549, %v4590, %v4591
      %v4593 = vrot.slane %v4479, 1
      %v4594 = vsel %vm4549, %v4591, %v4593
      %v4595 = vrot.slane %v4480, 1
      %v4596 = vrot.slane %v4481, 1
      %v4597 = vsel %vm4549, %v4595, %v4596
      %v4598 = vrot.slane %v4482, 1
      %v4599 = vsel %vm4549, %v4596, %v4598
      %v4600 = vrot.slane %v4483, 1
      %v4601 = vrot.slane %v4484, 1
      %v4602 = vsel %vm4549, %v4600, %v4601
      %v4603 = vrot.slane %v4485, 1
      %v4604 = vsel %vm4549, %v4601, %v4603
      %v4605 = vrot.slane %v4486, 1
      %v4606 = vrot.slane %v4487, 1
      %v4607 = vsel %vm4549, %v4605, %v4606
      %v4608 = vrot.slane %v4488, 1
      %v4609 = vsel %vm4549, %v4606, %v4608
      %v4610 = vrot.slane %v4489, 1
      %v4611 = vrot.slane %v4490, 1
      %v4612 = vsel %vm4549, %v4610, %v4611
      %v4613 = vrot.slane %v4491, 1
      %v4614 = vsel %vm4549, %v4611, %v4613
      %v4615 = vrot.slane %v4492, 1
      %v4616 = vrot.slane %v4493, 1
      %v4617 = vsel %vm4549, %v4615, %v4616
      %v4618 = vrot.slane %v4494, 1
      %v4619 = vsel %vm4549, %v4616, %v4618
      %v4620 = vrot.slane %v4495, 1
      %v4621 = vrot.slane %v4496, 1
      %v4622 = vsel %vm4549, %v4620, %v4621
      %v4623 = vrot.slane %v4497, 1
      %v4624 = vsel %vm4549, %v4621, %v4623
      %v4625 = vrot.slane %v4498, 1
      %v4626 = vrot.slane %v4499, 1
      %v4627 = vsel %vm4549, %v4625, %v4626
      %v4628 = vrot.slane %v4500, 1
      %v4629 = vsel %vm4549, %v4626, %v4628
      %v4662 = vadd.f32 %v4421, %v4552
      %v4663 = vadd.f32 %v4422, %v4554
      %v4664 = vadd.f32 %v4423, %v4557
      %v4665 = vadd.f32 %v4424, %v4559
      %v4666 = vadd.f32 %v4425, %v4562
      %v4667 = vadd.f32 %v4426, %v4564
      %v4668 = vadd.f32 %v4427, %v4567
      %v4669 = vadd.f32 %v4428, %v4569
      %v4670 = vadd.f32 %v4429, %v4572
      %v4671 = vadd.f32 %v4430, %v4574
      %v4672 = vadd.f32 %v4431, %v4577
      %v4673 = vadd.f32 %v4432, %v4579
      %v4674 = vadd.f32 %v4433, %v4582
      %v4675 = vadd.f32 %v4434, %v4584
      %v4676 = vadd.f32 %v4435, %v4587
      %v4677 = vadd.f32 %v4436, %v4589
      %v4678 = vadd.f32 %v4437, %v4592
      %v4679 = vadd.f32 %v4438, %v4594
      %v4680 = vadd.f32 %v4439, %v4597
      %v4681 = vadd.f32 %v4440, %v4599
      %v4682 = vadd.f32 %v4441, %v4602
      %v4683 = vadd.f32 %v4442, %v4604
      %v4684 = vadd.f32 %v4443, %v4607
      %v4685 = vadd.f32 %v4444, %v4609
      %v4686 = vadd.f32 %v4445, %v4612
      %v4687 = vadd.f32 %v4446, %v4614
      %v4688 = vadd.f32 %v4447, %v4617
      %v4689 = vadd.f32 %v4448, %v4619
      %v4690 = vadd.f32 %v4449, %v4622
      %v4691 = vadd.f32 %v4450, %v4624
      %v4692 = vadd.f32 %v4451, %v4627
      %v4693 = vadd.f32 %v4452, %v4629
      %v4694 = vmax.f32 %v4662, 0.0
      %v4695 = vmax.f32 %v4663, 0.0
      %v4696 = vmax.f32 %v4664, 0.0
      %v4697 = vmax.f32 %v4665, 0.0
      %v4698 = vmax.f32 %v4666, 0.0
      %v4699 = vmax.f32 %v4667, 0.0
      %v4700 = vmax.f32 %v4668, 0.0
      %v4701 = vmax.f32 %v4669, 0.0
      %v4702 = vmax.f32 %v4670, 0.0
      %v4703 = vmax.f32 %v4671, 0.0
      %v4704 = vmax.f32 %v4672, 0.0
      %v4705 = vmax.f32 %v4673, 0.0
      %v4706 = vmax.f32 %v4674, 0.0
      %v4707 = vmax.f32 %v4675, 0.0
      %v4708 = vmax.f32 %v4676, 0.0
      %v4709 = vmax.f32 %v4677, 0.0
      %v4710 = vmax.f32 %v4678, 0.0
      %v4711 = vmax.f32 %v4679, 0.0
      %v4712 = vmax.f32 %v4680, 0.0
      %v4713 = vmax.f32 %v4681, 0.0
      %v4714 = vmax.f32 %v4682, 0.0
      %v4715 = vmax.f32 %v4683, 0.0
      %v4716 = vmax.f32 %v4684, 0.0
      %v4717 = vmax.f32 %v4685, 0.0
      %v4718 = vmax.f32 %v4686, 0.0
      %v4719 = vmax.f32 %v4687, 0.0
      %v4720 = vmax.f32 %v4688, 0.0
      %v4721 = vmax.f32 %v4689, 0.0
      %v4722 = vmax.f32 %v4690, 0.0
      %v4723 = vmax.f32 %v4691, 0.0
      %v4724 = vmax.f32 %v4692, 0.0
      %v4725 = vmax.f32 %v4693, 0.0
      %4726 = vst [vmem:[%s278] sm:$0xff] %v4694
      %4727 = vst [vmem:[%s278 + $0x8] sm:$0xff] %v4695
      %4728 = vst [vmem:[%s278 + $0x10] sm:$0xff] %v4696
      %4729 = vst [vmem:[%s278 + $0x18] sm:$0xff] %v4697
      %4730 = vst [vmem:[%s278 + $0x20] sm:$0xff] %v4698
      %4731 = vst [vmem:[%s278 + $0x28] sm:$0xff] %v4699
      %4732 = vst [vmem:[%s278 + $0x30] sm:$0xff] %v4700
      %4733 = vst [vmem:[%s278 + $0x38] sm:$0xff] %v4701
      %4734 = vst [vmem:[%s278 + $0x40] sm:$0xff] %v4702
      %4735 = vst [vmem:[%s278 + $0x48] sm:$0xff] %v4703
      %4736 = vst [vmem:[%s278 + $0x50] sm:$0xff] %v4704
      %4737 = vst [vmem:[%s278 + $0x58] sm:$0xff] %v4705
      %4738 = vst [vmem:[%s278 + $0x60] sm:$0xff] %v4706
      %4739 = vst [vmem:[%s278 + $0x68] sm:$0xff] %v4707
      %4740 = vst [vmem:[%s278 + $0x70] sm:$0xff] %v4708
      %4741 = vst [vmem:[%s278 + $0x78] sm:$0xff] %v4709
      %4742 = vst [vmem:[%s278 + $0x80] sm:$0xff] %v4710
      %4743 = vst [vmem:[%s278 + $0x88] sm:$0xff] %v4711
      %4744 = vst [vmem:[%s278 + $0x90] sm:$0xff] %v4712
      %4745 = vst [vmem:[%s278 + $0x98] sm:$0xff] %v4713
      %4746 = vst [vmem:[%s278 + $0xa0] sm:$0xff] %v4714
      %4747 = vst [vmem:[%s278 + $0xa8] sm:$0xff] %v4715
      %4748 = vst [vmem:[%s278 + $0xb0] sm:$0xff] %v4716
      %4749 = vst [vmem:[%s278 + $0xb8] sm:$0xff] %v4717
      %4750 = vst [vmem:[%s278 + $0xc0] sm:$0xff] %v4718
      %4751 = vst [vmem:[%s278 + $0xc8] sm:$0xff] %v4719
      %4752 = vst [vmem:[%s278 + $0xd0] sm:$0xff] %v4720
      %4753 = vst [vmem:[%s278 + $0xd8] sm:$0xff] %v4721
      %4754 = vst [vmem:[%s278 + $0xe0] sm:$0xff] %v4722
      %4755 = vst [vmem:[%s278 + $0xe8] sm:$0xff] %v4723
      %4756 = vst [vmem:[%s278 + $0xf0] sm:$0xff] %v4724
      %4757 = vst [vmem:[%s278 + $0xf8] sm:$0xff] %v4725
      %p4758 = scmp.lt.s32.totalorder %s18, 1
      %s4759 = scalar_select %p4758, %s18, 1
      %s4760 = smul.addr %s4759, 32
      %s4761 = smul.addr %s4760, 8
      %s4762 = scalar_lea.vmem %s7, %s4761
      // Predicated region
      $region49: #{resblock_forward.1} parent=47 // pred_check
        %p4763 = pneg %p188
      $region50: #{resblock_forward.1} parent=47 // pred_check_branch
        %4765 = sbr.rel (%p4763) target = $region52
      $region51: #{resblock_forward.1} parent=47 // pred_region
        _
      $region52: #{resblock_forward.1} parent=47 // pred_fallthru
        _
    $region48: #{resblock_forward.1} parent=5 // pred_fallthru
      _
    %p4766 = scmp.le.s32.totalorder 2, %s13
    // Predicated region
    $region53: #{resblock_forward.1} parent=5 // pred_check
      %p4767 = pneg %p4766
    $region54: #{resblock_forward.1} parent=5 // pred_check_branch
      %4769 = sbr.rel (%p4767) target = $region56
    $region55: #{resblock_forward.1} parent=5 // pred_region
      %s4770 = ssub.s32 %s13, 2
      // Predicated region
      $region57: #{resblock_forward.1} parent=55 // pred_check
        %p4771 = pneg %p194
      $region58: #{resblock_forward.1} parent=55 // pred_check_branch
        %4773 = sbr.rel (%p4771) target = $region60
      $region59: #{resblock_forward.1} parent=55 // pred_region
        %p4774 = scmp.lt.s32.totalorder %s19, 1
        %s4775 = scalar_select %p4774, %s19, 1
        %s4776 = smul.addr %s4775, 32
        %s4777 = smul.addr %s4776, 8
        %s4778 = scalar_lea.vmem %s7, %s4777
      $region60: #{resblock_forward.1} parent=55 // pred_fallthru
        _
    $region56: #{resblock_forward.1} parent=5 // pred_fallthru
      _
  $region6: #{resblock_forward.1} parent=0 // loop_footer
    %s17 = sadd.s32 1, %s13
  $region7: #{resblock_forward.1} parent=0 // loop_footer_branch
    %12 = sbr.rel target = $region3
  $region8: #{resblock_forward.1} parent=0 // loop_exit
    _

</llo_original>
